<compile_context>
chip_gen: v6e
topology: v6e:2x2x1
jax: 0.10.0
libtpu: 0.0.40
codegen_flags: <defaults>
</compile_context>

<pallas_src>
import functools
import math

import jax
import jax.numpy as jnp
from jax import lax
from jax.experimental import pallas as pl
from jax.experimental.pallas import tpu as pltpu

_LANES = 128
_SUBLANES = 8


def _round_up(x, m):
    return ((x + m - 1) // m) * m


def _attention_kernel(q_ref, k_ref, v_ref,
                      wq_ref, bq_ref, wk_ref, bk_ref, wv_ref, bv_ref,
                      wo_ref, bo_ref,
                      o_ref,
                      kp_ref, vp_ref,
                      *, num_heads, head_dim, hoist_kv, mxu_dtype):
    H, dh = num_heads, head_dim

    def project_kv():
        k = k_ref[0]                                    # (Nk, E)
        v = v_ref[0]                                    # (Nk, E)
        nk = k.shape[0]
        kp = jnp.dot(k, wk_ref[...], preferred_element_type=jnp.float32) + bk_ref[...]
        vp = jnp.dot(v, wv_ref[...], preferred_element_type=jnp.float32) + bv_ref[...]
        # Head-major scratch layout so the per-q-tile work is just two batched
        # matmuls + softmax (no per-step relayout of the Nk-sized tensors).
        kp_ref[...] = jnp.transpose(kp.reshape(nk, H, dh), (1, 0, 2)).astype(kp_ref.dtype)
        vp_ref[...] = jnp.transpose(vp.reshape(nk, H, dh), (1, 0, 2)).astype(vp_ref.dtype)

    if hoist_kv:
        # Recompute only when a new batch element starts (q-tile axis is the
        # innermost grid axis, marked "arbitrary"; scratch persists across it).
        @pl.when(pl.program_id(1) == 0)
        def _():
            project_kv()
    else:
        project_kv()

    q = q_ref[0]                                        # (TQ, E)
    tq = q.shape[0]
    # 1/sqrt(dh) is already folded into wq/bq by the wrapper.
    qp = jnp.dot(q, wq_ref[...], preferred_element_type=jnp.float32) + bq_ref[...]
    qh = jnp.transpose(qp.reshape(tq, H, dh), (1, 0, 2)).astype(mxu_dtype)   # (H,TQ,dh)
    kh = kp_ref[...]                                    # (H, Nk, dh)
    vh = vp_ref[...]                                    # (H, Nk, dh)

    # Batched scores over heads: (H, TQ, Nk), f32 accumulation on the MXU.
    s = lax.dot_general(qh, kh, (((2,), (2,)), ((0,), (0,))),
                        preferred_element_type=jnp.float32)
    m = jnp.max(s, axis=-1, keepdims=True)
    p = jnp.exp(s - m)                                  # f32 softmax math
    denom = jnp.sum(p, axis=-1, keepdims=True)
    # Unnormalized P @ V, then one small EUP reciprocal + (H,TQ,dh) multiply.
    o = lax.dot_general(p.astype(mxu_dtype), vh, (((2,), (1,)), ((0,), (0,))),
                        preferred_element_type=jnp.float32)
    o = o * pl.reciprocal(denom, approx=True)
    attn_out = jnp.transpose(o, (1, 0, 2)).reshape(tq, H * dh)   # (TQ, D)

    out = jnp.dot(attn_out.astype(mxu_dtype), wo_ref[...],
                  preferred_element_type=jnp.float32) + bo_ref[...]
    o_ref[0] = out.astype(o_ref.dtype)


def _est_vmem_bytes(tq, nk, e, d, h, dh, in_bytes):
    """Rough per-step VMEM footprint (lane-padded) used to size q_tile."""
    f32 = 4
    ep, dp, dhp, nkp = (_round_up(x, _LANES) for x in (e, d, dh, nk))
    io_blocks = 2 * (2 * tq * ep) * in_bytes          # q + out, double-buffered
    kv_blocks = 2 * (2 * nk * ep) * in_bytes          # k + v (worst case 2 bufs)
    weights = (3 * e * dp + d * ep + 3 * dp + ep) * in_bytes
    kv_scratch = 2 * h * nk * dhp * f32               # kp/vp head-major scratch
    scores = 2 * h * tq * nkp * f32                   # scores + probs
    temps = 3 * tq * dp * f32                         # qp / qh / attn_out temps
    return io_blocks + kv_blocks + weights + kv_scratch + scores + temps


def attention(q, k, v, params, num_heads, *, q_tile=None, hoist_kv=None,
              single_buffer_static=True):
    """q: (B,Nq,E), k/v: (B,Nk,E). params: wq/wk/wv (E,D), wo (D,E), biases.

    Weights are in (in, out) layout (PyTorch nn.Linear weight.T, one-time
    transform at checkpoint load).
    """
    B, Nq, E = q.shape
    Bk, Nk, Ek = k.shape
    assert B == Bk and Ek == E and v.shape == k.shape
    wq, bq = params["wq"], params["bq"]
    wk, bk = params["wk"], params["bk"]
    wv, bv = params["wv"], params["bv"]
    wo, bo = params["wo"], params["bo"]
    D = wq.shape[1]
    assert D % num_heads == 0, "num_heads must divide internal_dim"
    dh = D // num_heads

    # Fold the 1/sqrt(dh) softmax scale into the static query projection
    # (one-time weight transform; ideally done at checkpoint-load time).
    scale = 1.0 / math.sqrt(dh)
    wq = (wq * scale).astype(wq.dtype)
    bq = (bq * scale).astype(bq.dtype)

    # Per-generation VMEM budget (v7x: 64 MiB/TC; v5e/v6e: 128 MiB).
    try:
        vmem_cap = int(pltpu.get_tpu_info().vmem_capacity_bytes)
    except Exception:
        vmem_cap = 64 * 1024 * 1024        # conservative: v7x per-TensorCore
    vmem_limit = max(32 * 1024 * 1024,
                     min(vmem_cap * 3 // 4, 100 * 1024 * 1024))

    in_bytes = q.dtype.itemsize
    if q_tile is None:
        if Nq <= 512:
            q_tile = _round_up(Nq, _SUBLANES)
        else:
            q_tile = 512
            while (q_tile > 128 and
                   _est_vmem_bytes(q_tile, Nk, E, D, num_heads, dh, in_bytes)
                   > int(0.6 * vmem_limit)):
                q_tile //= 2
    q_tile = max(_SUBLANES, _round_up(q_tile, _SUBLANES))

    # Padded/masked tail for indivisible Nq (query rows are independent under
    # softmax, so zero-padded rows are simply sliced off afterwards).
    nt = pl.cdiv(Nq, q_tile)
    Nq_pad = nt * q_tile
    q_in = q if Nq_pad == Nq else jnp.pad(q, ((0, 0), (0, Nq_pad - Nq), (0, 0)))

    if hoist_kv is None:
        # For B == 1 with several q-tiles, keep the q-tile axis "parallel"
        # (v7x megacore occupancy) and accept the K/V-projection recompute.
        hoist_kv = (B >= 2) or (nt == 1)

    # bf16 inputs -> bf16 MXU operands (2x MXU throughput); f32 accumulation
    # and f32 softmax statistics are kept regardless (mandatory on v5e).
    mxu_dtype = jnp.bfloat16 if q.dtype == jnp.bfloat16 else jnp.float32

    bq2, bk2, bv2, bo2 = (x.reshape(1, -1) for x in (bq, bk, bv, bo))

    kernel = functools.partial(_attention_kernel, num_heads=num_heads,
                               head_dim=dh, hoist_kv=hoist_kv,
                               mxu_dtype=mxu_dtype)

    kv_proj_steps = B * (1 if hoist_kv else nt)
    cost = pl.CostEstimate(
        flops=int(2 * B * Nq_pad * E * D              # q projection
                  + 4 * kv_proj_steps * Nk * E * D    # k/v projections
                  + 4 * B * Nq_pad * Nk * D           # scores + P@V
                  + 2 * B * Nq_pad * D * E),          # output projection
        transcendentals=int(B * num_heads * Nq_pad * (Nk + 1)),
        bytes_accessed=int((q_in.size + k.size + v.size) * in_bytes
                           + B * Nq_pad * E * in_bytes
                           + (wq.size + wk.size + wv.size + wo.size
                              + 3 * D + E) * wq.dtype.itemsize),
    )

    out_shape = jax.ShapeDtypeStruct((B, Nq_pad, E), q.dtype)
    q_spec = pl.BlockSpec((1, q_tile, E), lambda b, t: (b, t, 0))
    out_spec = pl.BlockSpec((1, q_tile, E), lambda b, t: (b, t, 0))

    def build_in_specs(single_buffer):
        # k/v and the weights/biases only change their block index with b
        # (or never): single-buffering them halves their VMEM footprint.
        extra = dict(pipeline_mode=pl.Buffered(1)) if single_buffer else {}
        kv_spec = pl.BlockSpec((1, Nk, E), lambda b, t: (b, 0, 0), **extra)

        def const(shape):
            return pl.BlockSpec(shape, lambda b, t: (0, 0), **extra)

        return [q_spec, kv_spec, kv_spec,
                const((E, D)), const((1, D)),     # Wq, bq (pre-scaled)
                const((E, D)), const((1, D)),     # Wk, bk
                const((E, D)), const((1, D)),     # Wv, bv
                const((D, E)), const((1, E))]     # Wo, bo

    def call(in_specs):
        return pl.pallas_call(
            kernel,
            out_shape=out_shape,
            grid_spec=pltpu.PrefetchScalarGridSpec(
                num_scalar_prefetch=0,
                grid=(B, nt),
                in_specs=in_specs,
                out_specs=out_spec,
                scratch_shapes=[pltpu.VMEM((num_heads, Nk, dh), mxu_dtype),
                                pltpu.VMEM((num_heads, Nk, dh), mxu_dtype)]),
            compiler_params=pltpu.CompilerParams(
                dimension_semantics=("parallel",
                                     "arbitrary" if hoist_kv else "parallel"),
                vmem_limit_bytes=vmem_limit),
            cost_estimate=cost,
        )(q_in, k, v, wq, bq2, wk, bk2, wv, bv2, wo, bo2)

    if single_buffer_static:
        try:
            out = call(build_in_specs(True))
        except Exception:
            # pipeline_mode not supported on this runtime -> default buffering.
            out = call(build_in_specs(False))
    else:
        out = call(build_in_specs(False))

    return out if Nq_pad == Nq else out[:, :Nq, :]


def _reference(q, k, v, params, num_heads):
    """Pure-JAX reference mirroring the PyTorch Attention.forward."""
    wq, bq = params["wq"], params["bq"]
    wk, bk = params["wk"], params["bk"]
    wv, bv = params["wv"], params["bv"]
    wo, bo = params["wo"], params["bo"]
    qp = q @ wq + bq
    kp = k @ wk + bk
    vp = v @ wv + bv

    def split(x):
        b, n, c = x.shape
        return x.reshape(b, n, num_heads, c // num_heads).transpose(0, 2, 1, 3)

    qh, kh, vh = split(qp), split(kp), split(vp)
    dh = qh.shape[-1]
    attn = jnp.einsum("bhqd,bhkd->bhqk", qh, kh) / math.sqrt(dh)
    attn = jax.nn.softmax(attn, axis=-1)
    o = jnp.einsum("bhqk,bhkd->bhqd", attn, vh)
    o = o.transpose(0, 2, 1, 3).reshape(q.shape[0], q.shape[1], -1)
    return o @ wo + bo


if __name__ == "__main__":
    key = jax.random.PRNGKey(0)
    ks = jax.random.split(key, 11)

    # embedding_dim=32, num_heads=4, downsample_rate=1 -> internal_dim=32
    B, Nq, Nk, E, H = 2, 8, 16, 32, 4
    D = E
    q = jax.random.normal(ks[0], (B, Nq, E), dtype=jnp.float32)
    k = jax.random.normal(ks[1], (B, Nk, E), dtype=jnp.float32)
    v = jax.random.normal(ks[2], (B, Nk, E), dtype=jnp.float32)

    sc = 1.0 / math.sqrt(E)
    params = {
        "wq": jax.random.normal(ks[3], (E, D), dtype=jnp.float32) * sc,
        "bq": jax.random.normal(ks[4], (D,), dtype=jnp.float32) * 0.1,
        "wk": jax.random.normal(ks[5], (E, D), dtype=jnp.float32) * sc,
        "bk": jax.random.normal(ks[6], (D,), dtype=jnp.float32) * 0.1,
        "wv": jax.random.normal(ks[7], (E, D), dtype=jnp.float32) * sc,
        "bv": jax.random.normal(ks[8], (D,), dtype=jnp.float32) * 0.1,
        "wo": jax.random.normal(ks[9], (D, E), dtype=jnp.float32) * sc,
        "bo": jax.random.normal(ks[10], (E,), dtype=jnp.float32) * 0.1,
    }

    out = attention(q, k, v, params, H)
    out = jax.block_until_ready(out)

    ref = _reference(q, k, v, params, H)
    assert out.shape == (B, Nq, E), out.shape
    max_err = float(jnp.abs(out - ref).max())
    assert jnp.allclose(out, ref, atol=5e-3, rtol=5e-3), max_err
    print("KERNEL_OK")
</pallas_src>

<mosaic_0001>
module attributes {stable_mosaic.version = 11 : i64} {
  func.func @_attention_kernel(%arg0: i32, %arg1: i32, %arg2: memref<1x8x32xf32, #tpu.memory_space<vmem>>, %arg3: memref<1x16x32xf32, #tpu.memory_space<vmem>>, %arg4: memref<1x16x32xf32, #tpu.memory_space<vmem>>, %arg5: memref<32x32xf32, #tpu.memory_space<vmem>>, %arg6: memref<1x32xf32, #tpu.memory_space<vmem>>, %arg7: memref<32x32xf32, #tpu.memory_space<vmem>>, %arg8: memref<1x32xf32, #tpu.memory_space<vmem>>, %arg9: memref<32x32xf32, #tpu.memory_space<vmem>>, %arg10: memref<1x32xf32, #tpu.memory_space<vmem>>, %arg11: memref<32x32xf32, #tpu.memory_space<vmem>>, %arg12: memref<1x32xf32, #tpu.memory_space<vmem>>, %arg13: memref<1x8x32xf32, #tpu.memory_space<vmem>>, %arg14: memref<4x16x8xf32, #tpu.memory_space<vmem>>, %arg15: memref<4x16x8xf32, #tpu.memory_space<vmem>>) attributes {dimension_semantics = [#tpu.dimension_semantics<parallel>, #tpu.dimension_semantics<arbitrary>], iteration_bounds = array<i64: 2, 1>, scalar_prefetch = 0 : i64, scratch_operands = 2 : i64, tpu.core_type = #tpu.core_type<tc>, window_params = [{transform_indices = @transform_0, window_bounds = array<i64: 1, 8, 32>}, {pipeline_mode = #tpu.pipeline_mode<synchronous>, transform_indices = @transform_1, window_bounds = array<i64: 1, 16, 32>}, {pipeline_mode = #tpu.pipeline_mode<synchronous>, transform_indices = @transform_2, window_bounds = array<i64: 1, 16, 32>}, {pipeline_mode = #tpu.pipeline_mode<synchronous>, transform_indices = @transform_3, window_bounds = array<i64: 32, 32>}, {pipeline_mode = #tpu.pipeline_mode<synchronous>, transform_indices = @transform_4, window_bounds = array<i64: 1, 32>}, {pipeline_mode = #tpu.pipeline_mode<synchronous>, transform_indices = @transform_5, window_bounds = array<i64: 32, 32>}, {pipeline_mode = #tpu.pipeline_mode<synchronous>, transform_indices = @transform_6, window_bounds = array<i64: 1, 32>}, {pipeline_mode = #tpu.pipeline_mode<synchronous>, transform_indices = @transform_7, window_bounds = array<i64: 32, 32>}, {pipeline_mode = #tpu.pipeline_mode<synchronous>, transform_indices = @transform_8, window_bounds = array<i64: 1, 32>}, {pipeline_mode = #tpu.pipeline_mode<synchronous>, transform_indices = @transform_9, window_bounds = array<i64: 32, 32>}, {pipeline_mode = #tpu.pipeline_mode<synchronous>, transform_indices = @transform_10, window_bounds = array<i64: 1, 32>}, {transform_indices = @transform_11, window_bounds = array<i64: 1, 8, 32>}]} {
    %c0_i32 = arith.constant 0 : i32
    %0 = arith.cmpi eq, %arg1, %c0_i32 : i32
    %1 = arith.extui %0 : i1 to i32
    %c0_i32_0 = arith.constant 0 : i32
    %2 = arith.cmpi ne, %1, %c0_i32_0 : i32
    scf.if %2 {
      %c0_25 = arith.constant 0 : index
      %c0_26 = arith.constant 0 : index
      %c0_27 = arith.constant 0 : index
      %36 = vector.load %arg3[%c0_25, %c0_26, %c0_27] : memref<1x16x32xf32, #tpu.memory_space<vmem>>, vector<1x16x32xf32>
      %37 = vector.shape_cast %36 : vector<1x16x32xf32> to vector<16x32xf32>
      %c0_28 = arith.constant 0 : index
      %c0_29 = arith.constant 0 : index
      %c0_30 = arith.constant 0 : index
      %38 = vector.load %arg4[%c0_28, %c0_29, %c0_30] : memref<1x16x32xf32, #tpu.memory_space<vmem>>, vector<1x16x32xf32>
      %39 = vector.shape_cast %38 : vector<1x16x32xf32> to vector<16x32xf32>
      %c0_31 = arith.constant 0 : index
      %c0_32 = arith.constant 0 : index
      %40 = vector.load %arg7[%c0_31, %c0_32] : memref<32x32xf32, #tpu.memory_space<vmem>>, vector<32x32xf32>
      %cst_33 = arith.constant dense<0.000000e+00> : vector<16x32xf32>
      %41 = tpu.matmul %37, %40, %cst_33 {dimension_numbers = #tpu.dot_dimension_numbers<[1], [0], [0], [1], [0, 0, 1, 1], [], []>} : vector<16x32xf32>, vector<32x32xf32>, vector<16x32xf32> -> vector<16x32xf32>
      %c0_34 = arith.constant 0 : index
      %c0_35 = arith.constant 0 : index
      %42 = vector.load %arg8[%c0_34, %c0_35] : memref<1x32xf32, #tpu.memory_space<vmem>>, vector<1x32xf32>
      %43 = vector.broadcast %42 : vector<1x32xf32> to vector<16x32xf32>
      %44 = arith.addf %41, %43 : vector<16x32xf32>
      %c0_36 = arith.constant 0 : index
      %c0_37 = arith.constant 0 : index
      %45 = vector.load %arg9[%c0_36, %c0_37] : memref<32x32xf32, #tpu.memory_space<vmem>>, vector<32x32xf32>
      %cst_38 = arith.constant dense<0.000000e+00> : vector<16x32xf32>
      %46 = tpu.matmul %39, %45, %cst_38 {dimension_numbers = #tpu.dot_dimension_numbers<[1], [0], [0], [1], [0, 0, 1, 1], [], []>} : vector<16x32xf32>, vector<32x32xf32>, vector<16x32xf32> -> vector<16x32xf32>
      %c0_39 = arith.constant 0 : index
      %c0_40 = arith.constant 0 : index
      %47 = vector.load %arg10[%c0_39, %c0_40] : memref<1x32xf32, #tpu.memory_space<vmem>>, vector<1x32xf32>
      %48 = vector.broadcast %47 : vector<1x32xf32> to vector<16x32xf32>
      %49 = arith.addf %46, %48 : vector<16x32xf32>
      %50 = vector.shape_cast %44 : vector<16x32xf32> to vector<16x4x8xf32>
      %51 = tpu.transpose %50, [1, 0, 2] : vector<16x4x8xf32> -> vector<4x16x8xf32>
      %c0_41 = arith.constant 0 : index
      %c0_42 = arith.constant 0 : index
      %c0_43 = arith.constant 0 : index
      %52 = vector.load %arg14[%c0_41, %c0_42, %c0_43] : memref<4x16x8xf32, #tpu.memory_space<vmem>>, vector<4x16x8xf32>
      tpu.vector_store %arg14[%c0_41, %c0_42, %c0_43], %51 {strides = array<i32>} : memref<4x16x8xf32, #tpu.memory_space<vmem>>, vector<4x16x8xf32>,
      %53 = vector.shape_cast %49 : vector<16x32xf32> to vector<16x4x8xf32>
      %54 = tpu.transpose %53, [1, 0, 2] : vector<16x4x8xf32> -> vector<4x16x8xf32>
      %c0_44 = arith.constant 0 : index
      %c0_45 = arith.constant 0 : index
      %c0_46 = arith.constant 0 : index
      %55 = vector.load %arg15[%c0_44, %c0_45, %c0_46] : memref<4x16x8xf32, #tpu.memory_space<vmem>>, vector<4x16x8xf32>
      tpu.vector_store %arg15[%c0_44, %c0_45, %c0_46], %54 {strides = array<i32>} : memref<4x16x8xf32, #tpu.memory_space<vmem>>, vector<4x16x8xf32>,
    } else {
    }
    %c0 = arith.constant 0 : index
    %c0_1 = arith.constant 0 : index
    %c0_2 = arith.constant 0 : index
    %3 = vector.load %arg2[%c0, %c0_1, %c0_2] : memref<1x8x32xf32, #tpu.memory_space<vmem>>, vector<1x8x32xf32>
    %4 = vector.shape_cast %3 : vector<1x8x32xf32> to vector<8x32xf32>
    %c0_3 = arith.constant 0 : index
    %c0_4 = arith.constant 0 : index
    %5 = vector.load %arg5[%c0_3, %c0_4] : memref<32x32xf32, #tpu.memory_space<vmem>>, vector<32x32xf32>
    %cst = arith.constant dense<0.000000e+00> : vector<8x32xf32>
    %6 = tpu.matmul %4, %5, %cst {dimension_numbers = #tpu.dot_dimension_numbers<[1], [0], [0], [1], [0, 0, 1, 1], [], []>} : vector<8x32xf32>, vector<32x32xf32>, vector<8x32xf32> -> vector<8x32xf32>
    %c0_5 = arith.constant 0 : index
    %c0_6 = arith.constant 0 : index
    %7 = vector.load %arg6[%c0_5, %c0_6] : memref<1x32xf32, #tpu.memory_space<vmem>>, vector<1x32xf32>
    %8 = vector.broadcast %7 : vector<1x32xf32> to vector<8x32xf32>
    %9 = arith.addf %6, %8 : vector<8x32xf32>
    %10 = vector.shape_cast %9 : vector<8x32xf32> to vector<8x4x8xf32>
    %11 = tpu.transpose %10, [1, 0, 2] : vector<8x4x8xf32> -> vector<4x8x8xf32>
    %c0_7 = arith.constant 0 : index
    %c0_8 = arith.constant 0 : index
    %c0_9 = arith.constant 0 : index
    %12 = vector.load %arg14[%c0_7, %c0_8, %c0_9] : memref<4x16x8xf32, #tpu.memory_space<vmem>>, vector<4x16x8xf32>
    %c0_10 = arith.constant 0 : index
    %c0_11 = arith.constant 0 : index
    %c0_12 = arith.constant 0 : index
    %13 = vector.load %arg15[%c0_10, %c0_11, %c0_12] : memref<4x16x8xf32, #tpu.memory_space<vmem>>, vector<4x16x8xf32>
    %cst_13 = arith.constant dense<0.000000e+00> : vector<4x8x16xf32>
    %14 = tpu.matmul %11, %12, %cst_13 {dimension_numbers = #tpu.dot_dimension_numbers<[2], [2], [1], [1], [0, 0, 0, 1, 1, 1], [0], [0]>} : vector<4x8x8xf32>, vector<4x16x8xf32>, vector<4x8x16xf32> -> vector<4x8x16xf32>
    %cst_14 = arith.constant dense<0xFF800000> : vector<4x8xf32>
    %15 = vector.multi_reduction <maximumf>, %14, %cst_14 [2] : vector<4x8x16xf32> to vector<4x8xf32>
    %16 = vector.shape_cast %15 : vector<4x8xf32> to vector<4x8x1xf32>
    %17 = vector.broadcast %16 : vector<4x8x1xf32> to vector<4x8x16xf32>
    %18 = arith.subf %14, %17 : vector<4x8x16xf32>
    %19 = math.exp %18 : vector<4x8x16xf32>
    %cst_15 = arith.constant dense<0.000000e+00> : vector<4x8xf32>
    %20 = vector.multi_reduction <add>, %19, %cst_15 [2] : vector<4x8x16xf32> to vector<4x8xf32>
    %21 = vector.shape_cast %20 : vector<4x8xf32> to vector<4x8x1xf32>
    %cst_16 = arith.constant dense<0.000000e+00> : vector<4x8x8xf32>
    %22 = tpu.matmul %19, %13, %cst_16 {dimension_numbers = #tpu.dot_dimension_numbers<[2], [1], [1], [2], [0, 0, 0, 1, 1, 2], [0], [0]>} : vector<4x8x16xf32>, vector<4x16x8xf32>, vector<4x8x8xf32> -> vector<4x8x8xf32>
    %23 = tpu.reciprocal %21 {approx = true} : vector<4x8x1xf32> -> vector<4x8x1xf32>
    %24 = vector.broadcast %23 : vector<4x8x1xf32> to vector<4x8x8xf32>
    %25 = arith.mulf %22, %24 : vector<4x8x8xf32>
    %26 = tpu.transpose %25, [1, 0, 2] : vector<4x8x8xf32> -> vector<8x4x8xf32>
    %27 = vector.shape_cast %26 : vector<8x4x8xf32> to vector<8x32xf32>
    %c0_17 = arith.constant 0 : index
    %c0_18 = arith.constant 0 : index
    %28 = vector.load %arg11[%c0_17, %c0_18] : memref<32x32xf32, #tpu.memory_space<vmem>>, vector<32x32xf32>
    %cst_19 = arith.constant dense<0.000000e+00> : vector<8x32xf32>
    %29 = tpu.matmul %27, %28, %cst_19 {dimension_numbers = #tpu.dot_dimension_numbers<[1], [0], [0], [1], [0, 0, 1, 1], [], []>} : vector<8x32xf32>, vector<32x32xf32>, vector<8x32xf32> -> vector<8x32xf32>
    %c0_20 = arith.constant 0 : index
    %c0_21 = arith.constant 0 : index
    %30 = vector.load %arg12[%c0_20, %c0_21] : memref<1x32xf32, #tpu.memory_space<vmem>>, vector<1x32xf32>
    %31 = vector.broadcast %30 : vector<1x32xf32> to vector<8x32xf32>
    %32 = arith.addf %29, %31 : vector<8x32xf32>
    %c0_22 = arith.constant 0 : index
    %c0_23 = arith.constant 0 : index
    %c0_24 = arith.constant 0 : index
    %33 = vector.load %arg13[%c0_22, %c0_23, %c0_24] : memref<1x8x32xf32, #tpu.memory_space<vmem>>, vector<1x8x32xf32>
    %34 = vector.shape_cast %33 : vector<1x8x32xf32> to vector<8x32xf32>
    %35 = vector.shape_cast %32 : vector<8x32xf32> to vector<1x8x32xf32>
    tpu.vector_store %arg13[%c0_22, %c0_23, %c0_24], %35 {strides = array<i32>} : memref<1x8x32xf32, #tpu.memory_space<vmem>>, vector<1x8x32xf32>,
    return
  }
  func.func @transform_0(%arg0: i32, %arg1: i32) -> (i32, i32, i32) {
    %c0_i32 = arith.constant 0 : i32
    %c0_i32_0 = arith.constant 0 : i32
    return %arg0, %arg1, %c0_i32 : i32, i32, i32
  }
  func.func @transform_1(%arg0: i32, %arg1: i32) -> (i32, i32, i32) {
    %c0_i32 = arith.constant 0 : i32
    %c0_i32_0 = arith.constant 0 : i32
    %c0_i32_1 = arith.constant 0 : i32
    return %arg0, %c0_i32, %c0_i32_0 : i32, i32, i32
  }
  func.func @transform_2(%arg0: i32, %arg1: i32) -> (i32, i32, i32) {
    %c0_i32 = arith.constant 0 : i32
    %c0_i32_0 = arith.constant 0 : i32
    %c0_i32_1 = arith.constant 0 : i32
    return %arg0, %c0_i32, %c0_i32_0 : i32, i32, i32
  }
  func.func @transform_3(%arg0: i32, %arg1: i32) -> (i32, i32) {
    %c0_i32 = arith.constant 0 : i32
    %c0_i32_0 = arith.constant 0 : i32
    %c0_i32_1 = arith.constant 0 : i32
    return %c0_i32, %c0_i32_0 : i32, i32
  }
  func.func @transform_4(%arg0: i32, %arg1: i32) -> (i32, i32) {
    %c0_i32 = arith.constant 0 : i32
    %c0_i32_0 = arith.constant 0 : i32
    %c0_i32_1 = arith.constant 0 : i32
    return %c0_i32, %c0_i32_0 : i32, i32
  }
  func.func @transform_5(%arg0: i32, %arg1: i32) -> (i32, i32) {
    %c0_i32 = arith.constant 0 : i32
    %c0_i32_0 = arith.constant 0 : i32
    %c0_i32_1 = arith.constant 0 : i32
    return %c0_i32, %c0_i32_0 : i32, i32
  }
  func.func @transform_6(%arg0: i32, %arg1: i32) -> (i32, i32) {
    %c0_i32 = arith.constant 0 : i32
    %c0_i32_0 = arith.constant 0 : i32
    %c0_i32_1 = arith.constant 0 : i32
    return %c0_i32, %c0_i32_0 : i32, i32
  }
  func.func @transform_7(%arg0: i32, %arg1: i32) -> (i32, i32) {
    %c0_i32 = arith.constant 0 : i32
    %c0_i32_0 = arith.constant 0 : i32
    %c0_i32_1 = arith.constant 0 : i32
    return %c0_i32, %c0_i32_0 : i32, i32
  }
  func.func @transform_8(%arg0: i32, %arg1: i32) -> (i32, i32) {
    %c0_i32 = arith.constant 0 : i32
    %c0_i32_0 = arith.constant 0 : i32
    %c0_i32_1 = arith.constant 0 : i32
    return %c0_i32, %c0_i32_0 : i32, i32
  }
  func.func @transform_9(%arg0: i32, %arg1: i32) -> (i32, i32) {
    %c0_i32 = arith.constant 0 : i32
    %c0_i32_0 = arith.constant 0 : i32
    %c0_i32_1 = arith.constant 0 : i32
    return %c0_i32, %c0_i32_0 : i32, i32
  }
  func.func @transform_10(%arg0: i32, %arg1: i32) -> (i32, i32) {
    %c0_i32 = arith.constant 0 : i32
    %c0_i32_0 = arith.constant 0 : i32
    %c0_i32_1 = arith.constant 0 : i32
    return %c0_i32, %c0_i32_0 : i32, i32
  }
  func.func @transform_11(%arg0: i32, %arg1: i32) -> (i32, i32, i32) {
    %c0_i32 = arith.constant 0 : i32
    %c0_i32_0 = arith.constant 0 : i32
    return %arg0, %arg1, %c0_i32 : i32, i32, i32
  }
}

module attributes {stable_mosaic.version = 11 : i64} {
  func.func @_attention_kernel(%arg0: i32, %arg1: i32, %arg2: memref<1x8x32xf32, #tpu.memory_space<vmem>>, %arg3: memref<1x16x32xf32, #tpu.memory_space<vmem>>, %arg4: memref<1x16x32xf32, #tpu.memory_space<vmem>>, %arg5: memref<32x32xf32, #tpu.memory_space<vmem>>, %arg6: memref<1x32xf32, #tpu.memory_space<vmem>>, %arg7: memref<32x32xf32, #tpu.memory_space<vmem>>, %arg8: memref<1x32xf32, #tpu.memory_space<vmem>>, %arg9: memref<32x32xf32, #tpu.memory_space<vmem>>, %arg10: memref<1x32xf32, #tpu.memory_space<vmem>>, %arg11: memref<32x32xf32, #tpu.memory_space<vmem>>, %arg12: memref<1x32xf32, #tpu.memory_space<vmem>>, %arg13: memref<1x8x32xf32, #tpu.memory_space<vmem>>, %arg14: memref<4x16x8xf32, #tpu.memory_space<vmem>>, %arg15: memref<4x16x8xf32, #tpu.memory_space<vmem>>) attributes {dimension_semantics = [#tpu.dimension_semantics<parallel>, #tpu.dimension_semantics<arbitrary>], iteration_bounds = array<i64: 2, 1>, scalar_prefetch = 0 : i64, scratch_operands = 2 : i64, tpu.core_type = #tpu.core_type<tc>, window_params = [{transform_indices = @transform_0, window_bounds = array<i64: 1, 8, 32>}, {transform_indices = @transform_1, window_bounds = array<i64: 1, 16, 32>}, {transform_indices = @transform_2, window_bounds = array<i64: 1, 16, 32>}, {pipeline_mode = #tpu.pipeline_mode<synchronous>, transform_indices = @transform_3, window_bounds = array<i64: 32, 32>}, {pipeline_mode = #tpu.pipeline_mode<synchronous>, transform_indices = @transform_4, window_bounds = array<i64: 1, 32>}, {pipeline_mode = #tpu.pipeline_mode<synchronous>, transform_indices = @transform_5, window_bounds = array<i64: 32, 32>}, {pipeline_mode = #tpu.pipeline_mode<synchronous>, transform_indices = @transform_6, window_bounds = array<i64: 1, 32>}, {pipeline_mode = #tpu.pipeline_mode<synchronous>, transform_indices = @transform_7, window_bounds = array<i64: 32, 32>}, {pipeline_mode = #tpu.pipeline_mode<synchronous>, transform_indices = @transform_8, window_bounds = array<i64: 1, 32>}, {pipeline_mode = #tpu.pipeline_mode<synchronous>, transform_indices = @transform_9, window_bounds = array<i64: 32, 32>}, {pipeline_mode = #tpu.pipeline_mode<synchronous>, transform_indices = @transform_10, window_bounds = array<i64: 1, 32>}, {transform_indices = @transform_11, window_bounds = array<i64: 1, 8, 32>}]} {
    %c0_i32 = arith.constant 0 : i32
    %0 = arith.cmpi eq, %arg1, %c0_i32 : i32
    %1 = arith.extui %0 : i1 to i32
    %c0_i32_0 = arith.constant 0 : i32
    %2 = arith.cmpi ne, %1, %c0_i32_0 : i32
    scf.if %2 {
      %c0_25 = arith.constant 0 : index
      %c0_26 = arith.constant 0 : index
      %c0_27 = arith.constant 0 : index
      %36 = vector.load %arg3[%c0_25, %c0_26, %c0_27] : memref<1x16x32xf32, #tpu.memory_space<vmem>>, vector<1x16x32xf32>
      %37 = vector.shape_cast %36 : vector<1x16x32xf32> to vector<16x32xf32>
      %c0_28 = arith.constant 0 : index
      %c0_29 = arith.constant 0 : index
      %c0_30 = arith.constant 0 : index
      %38 = vector.load %arg4[%c0_28, %c0_29, %c0_30] : memref<1x16x32xf32, #tpu.memory_space<vmem>>, vector<1x16x32xf32>
      %39 = vector.shape_cast %38 : vector<1x16x32xf32> to vector<16x32xf32>
      %c0_31 = arith.constant 0 : index
      %c0_32 = arith.constant 0 : index
      %40 = vector.load %arg7[%c0_31, %c0_32] : memref<32x32xf32, #tpu.memory_space<vmem>>, vector<32x32xf32>
      %cst_33 = arith.constant dense<0.000000e+00> : vector<16x32xf32>
      %41 = tpu.matmul %37, %40, %cst_33 {dimension_numbers = #tpu.dot_dimension_numbers<[1], [0], [0], [1], [0, 0, 1, 1], [], []>} : vector<16x32xf32>, vector<32x32xf32>, vector<16x32xf32> -> vector<16x32xf32>
      %c0_34 = arith.constant 0 : index
      %c0_35 = arith.constant 0 : index
      %42 = vector.load %arg8[%c0_34, %c0_35] : memref<1x32xf32, #tpu.memory_space<vmem>>, vector<1x32xf32>
      %43 = vector.broadcast %42 : vector<1x32xf32> to vector<16x32xf32>
      %44 = arith.addf %41, %43 : vector<16x32xf32>
      %c0_36 = arith.constant 0 : index
      %c0_37 = arith.constant 0 : index
      %45 = vector.load %arg9[%c0_36, %c0_37] : memref<32x32xf32, #tpu.memory_space<vmem>>, vector<32x32xf32>
      %cst_38 = arith.constant dense<0.000000e+00> : vector<16x32xf32>
      %46 = tpu.matmul %39, %45, %cst_38 {dimension_numbers = #tpu.dot_dimension_numbers<[1], [0], [0], [1], [0, 0, 1, 1], [], []>} : vector<16x32xf32>, vector<32x32xf32>, vector<16x32xf32> -> vector<16x32xf32>
      %c0_39 = arith.constant 0 : index
      %c0_40 = arith.constant 0 : index
      %47 = vector.load %arg10[%c0_39, %c0_40] : memref<1x32xf32, #tpu.memory_space<vmem>>, vector<1x32xf32>
      %48 = vector.broadcast %47 : vector<1x32xf32> to vector<16x32xf32>
      %49 = arith.addf %46, %48 : vector<16x32xf32>
      %50 = vector.shape_cast %44 : vector<16x32xf32> to vector<16x4x8xf32>
      %51 = tpu.transpose %50, [1, 0, 2] : vector<16x4x8xf32> -> vector<4x16x8xf32>
      %c0_41 = arith.constant 0 : index
      %c0_42 = arith.constant 0 : index
      %c0_43 = arith.constant 0 : index
      %52 = vector.load %arg14[%c0_41, %c0_42, %c0_43] : memref<4x16x8xf32, #tpu.memory_space<vmem>>, vector<4x16x8xf32>
      tpu.vector_store %arg14[%c0_41, %c0_42, %c0_43], %51 {strides = array<i32>} : memref<4x16x8xf32, #tpu.memory_space<vmem>>, vector<4x16x8xf32>,
      %53 = vector.shape_cast %49 : vector<16x32xf32> to vector<16x4x8xf32>
      %54 = tpu.transpose %53, [1, 0, 2] : vector<16x4x8xf32> -> vector<4x16x8xf32>
      %c0_44 = arith.constant 0 : index
      %c0_45 = arith.constant 0 : index
      %c0_46 = arith.constant 0 : index
      %55 = vector.load %arg15[%c0_44, %c0_45, %c0_46] : memref<4x16x8xf32, #tpu.memory_space<vmem>>, vector<4x16x8xf32>
      tpu.vector_store %arg15[%c0_44, %c0_45, %c0_46], %54 {strides = array<i32>} : memref<4x16x8xf32, #tpu.memory_space<vmem>>, vector<4x16x8xf32>,
    } else {
    }
    %c0 = arith.constant 0 : index
    %c0_1 = arith.constant 0 : index
    %c0_2 = arith.constant 0 : index
    %3 = vector.load %arg2[%c0, %c0_1, %c0_2] : memref<1x8x32xf32, #tpu.memory_space<vmem>>, vector<1x8x32xf32>
    %4 = vector.shape_cast %3 : vector<1x8x32xf32> to vector<8x32xf32>
    %c0_3 = arith.constant 0 : index
    %c0_4 = arith.constant 0 : index
    %5 = vector.load %arg5[%c0_3, %c0_4] : memref<32x32xf32, #tpu.memory_space<vmem>>, vector<32x32xf32>
    %cst = arith.constant dense<0.000000e+00> : vector<8x32xf32>
    %6 = tpu.matmul %4, %5, %cst {dimension_numbers = #tpu.dot_dimension_numbers<[1], [0], [0], [1], [0, 0, 1, 1], [], []>} : vector<8x32xf32>, vector<32x32xf32>, vector<8x32xf32> -> vector<8x32xf32>
    %c0_5 = arith.constant 0 : index
    %c0_6 = arith.constant 0 : index
    %7 = vector.load %arg6[%c0_5, %c0_6] : memref<1x32xf32, #tpu.memory_space<vmem>>, vector<1x32xf32>
    %8 = vector.broadcast %7 : vector<1x32xf32> to vector<8x32xf32>
    %9 = arith.addf %6, %8 : vector<8x32xf32>
    %10 = vector.shape_cast %9 : vector<8x32xf32> to vector<8x4x8xf32>
    %11 = tpu.transpose %10, [1, 0, 2] : vector<8x4x8xf32> -> vector<4x8x8xf32>
    %c0_7 = arith.constant 0 : index
    %c0_8 = arith.constant 0 : index
    %c0_9 = arith.constant 0 : index
    %12 = vector.load %arg14[%c0_7, %c0_8, %c0_9] : memref<4x16x8xf32, #tpu.memory_space<vmem>>, vector<4x16x8xf32>
    %c0_10 = arith.constant 0 : index
    %c0_11 = arith.constant 0 : index
    %c0_12 = arith.constant 0 : index
    %13 = vector.load %arg15[%c0_10, %c0_11, %c0_12] : memref<4x16x8xf32, #tpu.memory_space<vmem>>, vector<4x16x8xf32>
    %cst_13 = arith.constant dense<0.000000e+00> : vector<4x8x16xf32>
    %14 = tpu.matmul %11, %12, %cst_13 {dimension_numbers = #tpu.dot_dimension_numbers<[2], [2], [1], [1], [0, 0, 0, 1, 1, 1], [0], [0]>} : vector<4x8x8xf32>, vector<4x16x8xf32>, vector<4x8x16xf32> -> vector<4x8x16xf32>
    %cst_14 = arith.constant dense<0xFF800000> : vector<4x8xf32>
    %15 = vector.multi_reduction <maximumf>, %14, %cst_14 [2] : vector<4x8x16xf32> to vector<4x8xf32>
    %16 = vector.shape_cast %15 : vector<4x8xf32> to vector<4x8x1xf32>
    %17 = vector.broadcast %16 : vector<4x8x1xf32> to vector<4x8x16xf32>
    %18 = arith.subf %14, %17 : vector<4x8x16xf32>
    %19 = math.exp %18 : vector<4x8x16xf32>
    %cst_15 = arith.constant dense<0.000000e+00> : vector<4x8xf32>
    %20 = vector.multi_reduction <add>, %19, %cst_15 [2] : vector<4x8x16xf32> to vector<4x8xf32>
    %21 = vector.shape_cast %20 : vector<4x8xf32> to vector<4x8x1xf32>
    %cst_16 = arith.constant dense<0.000000e+00> : vector<4x8x8xf32>
    %22 = tpu.matmul %19, %13, %cst_16 {dimension_numbers = #tpu.dot_dimension_numbers<[2], [1], [1], [2], [0, 0, 0, 1, 1, 2], [0], [0]>} : vector<4x8x16xf32>, vector<4x16x8xf32>, vector<4x8x8xf32> -> vector<4x8x8xf32>
    %23 = tpu.reciprocal %21 {approx = true} : vector<4x8x1xf32> -> vector<4x8x1xf32>
    %24 = vector.broadcast %23 : vector<4x8x1xf32> to vector<4x8x8xf32>
    %25 = arith.mulf %22, %24 : vector<4x8x8xf32>
    %26 = tpu.transpose %25, [1, 0, 2] : vector<4x8x8xf32> -> vector<8x4x8xf32>
    %27 = vector.shape_cast %26 : vector<8x4x8xf32> to vector<8x32xf32>
    %c0_17 = arith.constant 0 : index
    %c0_18 = arith.constant 0 : index
    %28 = vector.load %arg11[%c0_17, %c0_18] : memref<32x32xf32, #tpu.memory_space<vmem>>, vector<32x32xf32>
    %cst_19 = arith.constant dense<0.000000e+00> : vector<8x32xf32>
    %29 = tpu.matmul %27, %28, %cst_19 {dimension_numbers = #tpu.dot_dimension_numbers<[1], [0], [0], [1], [0, 0, 1, 1], [], []>} : vector<8x32xf32>, vector<32x32xf32>, vector<8x32xf32> -> vector<8x32xf32>
    %c0_20 = arith.constant 0 : index
    %c0_21 = arith.constant 0 : index
    %30 = vector.load %arg12[%c0_20, %c0_21] : memref<1x32xf32, #tpu.memory_space<vmem>>, vector<1x32xf32>
    %31 = vector.broadcast %30 : vector<1x32xf32> to vector<8x32xf32>
    %32 = arith.addf %29, %31 : vector<8x32xf32>
    %c0_22 = arith.constant 0 : index
    %c0_23 = arith.constant 0 : index
    %c0_24 = arith.constant 0 : index
    %33 = vector.load %arg13[%c0_22, %c0_23, %c0_24] : memref<1x8x32xf32, #tpu.memory_space<vmem>>, vector<1x8x32xf32>
    %34 = vector.shape_cast %33 : vector<1x8x32xf32> to vector<8x32xf32>
    %35 = vector.shape_cast %32 : vector<8x32xf32> to vector<1x8x32xf32>
    tpu.vector_store %arg13[%c0_22, %c0_23, %c0_24], %35 {strides = array<i32>} : memref<1x8x32xf32, #tpu.memory_space<vmem>>, vector<1x8x32xf32>,
    return
  }
  func.func @transform_0(%arg0: i32, %arg1: i32) -> (i32, i32, i32) {
    %c0_i32 = arith.constant 0 : i32
    %c0_i32_0 = arith.constant 0 : i32
    return %arg0, %arg1, %c0_i32 : i32, i32, i32
  }
  func.func @transform_1(%arg0: i32, %arg1: i32) -> (i32, i32, i32) {
    %c0_i32 = arith.constant 0 : i32
    %c0_i32_0 = arith.constant 0 : i32
    %c0_i32_1 = arith.constant 0 : i32
    return %arg0, %c0_i32, %c0_i32_0 : i32, i32, i32
  }
  func.func @transform_2(%arg0: i32, %arg1: i32) -> (i32, i32, i32) {
    %c0_i32 = arith.constant 0 : i32
    %c0_i32_0 = arith.constant 0 : i32
    %c0_i32_1 = arith.constant 0 : i32
    return %arg0, %c0_i32, %c0_i32_0 : i32, i32, i32
  }
  func.func @transform_3(%arg0: i32, %arg1: i32) -> (i32, i32) {
    %c0_i32 = arith.constant 0 : i32
    %c0_i32_0 = arith.constant 0 : i32
    %c0_i32_1 = arith.constant 0 : i32
    return %c0_i32, %c0_i32_0 : i32, i32
  }
  func.func @transform_4(%arg0: i32, %arg1: i32) -> (i32, i32) {
    %c0_i32 = arith.constant 0 : i32
    %c0_i32_0 = arith.constant 0 : i32
    %c0_i32_1 = arith.constant 0 : i32
    return %c0_i32, %c0_i32_0 : i32, i32
  }
  func.func @transform_5(%arg0: i32, %arg1: i32) -> (i32, i32) {
    %c0_i32 = arith.constant 0 : i32
    %c0_i32_0 = arith.constant 0 : i32
    %c0_i32_1 = arith.constant 0 : i32
    return %c0_i32, %c0_i32_0 : i32, i32
  }
  func.func @transform_6(%arg0: i32, %arg1: i32) -> (i32, i32) {
    %c0_i32 = arith.constant 0 : i32
    %c0_i32_0 = arith.constant 0 : i32
    %c0_i32_1 = arith.constant 0 : i32
    return %c0_i32, %c0_i32_0 : i32, i32
  }
  func.func @transform_7(%arg0: i32, %arg1: i32) -> (i32, i32) {
    %c0_i32 = arith.constant 0 : i32
    %c0_i32_0 = arith.constant 0 : i32
    %c0_i32_1 = arith.constant 0 : i32
    return %c0_i32, %c0_i32_0 : i32, i32
  }
  func.func @transform_8(%arg0: i32, %arg1: i32) -> (i32, i32) {
    %c0_i32 = arith.constant 0 : i32
    %c0_i32_0 = arith.constant 0 : i32
    %c0_i32_1 = arith.constant 0 : i32
    return %c0_i32, %c0_i32_0 : i32, i32
  }
  func.func @transform_9(%arg0: i32, %arg1: i32) -> (i32, i32) {
    %c0_i32 = arith.constant 0 : i32
    %c0_i32_0 = arith.constant 0 : i32
    %c0_i32_1 = arith.constant 0 : i32
    return %c0_i32, %c0_i32_0 : i32, i32
  }
  func.func @transform_10(%arg0: i32, %arg1: i32) -> (i32, i32) {
    %c0_i32 = arith.constant 0 : i32
    %c0_i32_0 = arith.constant 0 : i32
    %c0_i32_1 = arith.constant 0 : i32
    return %c0_i32, %c0_i32_0 : i32, i32
  }
  func.func @transform_11(%arg0: i32, %arg1: i32) -> (i32, i32, i32) {
    %c0_i32 = arith.constant 0 : i32
    %c0_i32_0 = arith.constant 0 : i32
    return %arg0, %arg1, %c0_i32 : i32, i32, i32
  }
}

</mosaic_0001>

<llo_original>
// kernel: tpu_custom_call.1
$region0: #{tpu_custom_call.1}
  #allocation0 [shape = 'u32[]', space=smem, size = 0x4, offset = 0x4, fixed_abs, tag = 'smem constant byte address 0x4 - core index']
  #allocation1 [shape = 'u32[144,128]{1,0:T(1,128)}', space=vmem, size = 0x12000, scoped, tag = 'internal scratch']
  #allocation2 [shape = 'f32[4,16,8]{2,1,0:T(8,128)}', space=vmem, size = 0x8000, scoped, tag = 'scratch operand']
  #allocation3 [shape = 'f32[4,16,8]{2,1,0:T(8,128)}', space=vmem, size = 0x8000, scoped, tag = 'scratch operand']
  %s0 = inlined_call_operand.hbm [shape: f32[2,8,32], index: 0, kind: input, shape index: {}]
  %s1 = inlined_call_operand.hbm [shape: f32[2,16,32], index: 1, kind: input, shape index: {}]
  %s2 = inlined_call_operand.hbm [shape: f32[2,16,32], index: 2, kind: input, shape index: {}]
  %s3 = inlined_call_operand.hbm [shape: f32[32,32], index: 3, kind: input, shape index: {}]
  %s4 = inlined_call_operand.vmem [shape: f32[1,32], index: 4, kind: input, shape index: {}]
  %s5 = inlined_call_operand.hbm [shape: f32[32,32], index: 5, kind: input, shape index: {}]
  %s6 = inlined_call_operand.vmem [shape: f32[1,32], index: 6, kind: input, shape index: {}]
  %s7 = inlined_call_operand.hbm [shape: f32[32,32], index: 7, kind: input, shape index: {}]
  %s8 = inlined_call_operand.vmem [shape: f32[1,32], index: 8, kind: input, shape index: {}]
  %s9 = inlined_call_operand.hbm [shape: f32[32,32], index: 9, kind: input, shape index: {}]
  %s10 = inlined_call_operand.vmem [shape: f32[1,32], index: 10, kind: input, shape index: {}]
  %s11 = inlined_call_operand.hbm [shape: f32[2,8,32], index: 11, kind: output, shape index: {}]
  %s12 = sld [smem:[#allocation0]]
  $region109: #{tpu_custom_call.1} parent=0
    _
  %s14 = ssub.s32 1, %s12
  %s15 = scalar_select 0, %s14, %s12
  $region1: #{tpu_custom_call.1} parent=0
    #allocation4 [shape = 'u8[8192]{0}', space=vmem, size = 0x2000, scoped, tag = 'input window, operand 0']
    #allocation5 [shape = 's32[2]{0}', space=sflag, size = 0x8, scoped, tag = 'scoped memory for tpu_custom_call.1']
    #allocation6 [shape = 's32[2]{0}', space=sflag, size = 0x8, scoped, tag = 'scoped memory for tpu_custom_call.1']
    #allocation7 [shape = 'u8[8192]{0}', space=vmem, size = 0x2000, scoped, tag = 'input window, operand 1, single buffered']
    #allocation8 [shape = 's32[1]{0}', space=sflag, size = 0x4, scoped, tag = 'scoped memory for tpu_custom_call.1']
    #allocation9 [shape = 'u8[8192]{0}', space=vmem, size = 0x2000, scoped, tag = 'input window, operand 2, single buffered']
    #allocation10 [shape = 'u8[16384]{0}', space=vmem, size = 0x4000, scoped, tag = 'input window, operand 3, single buffered']
    #allocation11 [shape = 's32[1]{0}', space=sflag, size = 0x4, scoped, tag = 'scoped memory for tpu_custom_call.1']
    #allocation12 [shape = 'u8[16384]{0}', space=vmem, size = 0x4000, scoped, tag = 'input window, operand 5, single buffered']
    #allocation13 [shape = 'u8[16384]{0}', space=vmem, size = 0x4000, scoped, tag = 'input window, operand 7, single buffered']
    #allocation14 [shape = 's32[1]{0}', space=sflag, size = 0x4, scoped, tag = 'scoped memory for tpu_custom_call.1']
    #allocation15 [shape = 'u8[16384]{0}', space=vmem, size = 0x4000, scoped, tag = 'input window, operand 9, single buffered']
    #allocation16 [shape = 'u8[8192]{0}', space=vmem, size = 0x2000, scoped, tag = 'output window, operand 0']
    %16 = vsyncpa [#allocation5], 0
    %s17 = scalar_lea.sflag [#allocation5], 1
    %18 = vsyncpa %s17, 0
    %19 = vsyncpa [#allocation8], 0
    %20 = vsyncpa [#allocation11], 0
    %21 = vsyncpa [#allocation14], 0
    %22 = vsyncpa [#allocation6], 0
    %s23 = scalar_lea.sflag [#allocation6], 1
    %24 = vsyncpa %s23, 0
    loop: start=0, step=1, limit=4
    $region2: #{tpu_custom_call.1} parent=1 // loop_pre_header
      _
    $region3: #{tpu_custom_call.1} parent=1 // loop_header
      %s26 = sphi 0, %s30
      %p27 = scmp.ge.s32.totalorder %s26, 4
      %s33 = sphi 0, %s45
      %s34 = sphi 0, %s41
      %s35 = sphi 0, %s33
      %s36 = sphi 0, %s34
      %s37 = sphi 0, %s35
      %s38 = sphi 0, %s36
      %s50 = sphi 0, %s52
      %s53 = sphi 0, %s50
      %s54 = sphi 0, %s53
      %s70 = sphi 0, %s54
      %s76 = sphi 0, %s78
      %s79 = sphi 0, %s76
      %s80 = sphi 0, %s79
      %s96 = sphi 0, %s80
      %s102 = sphi 0, %s104
      %s105 = sphi 0, %s102
      %s106 = sphi 0, %s105
      %s122 = sphi 0, %s106
      %s126 = sphi 0, %s126
      %s128 = sphi 0, %s126
      %s129 = sphi 0, %s128
      %s143 = sphi 0, %s129
      %s147 = sphi 0, %s147
      %s149 = sphi 0, %s147
      %s150 = sphi 0, %s149
      %s164 = sphi 0, %s150
      %s168 = sphi 0, %s168
      %s170 = sphi 0, %s168
      %s171 = sphi 0, %s170
      %s185 = sphi 0, %s171
      %s189 = sphi 0, %s189
      %s191 = sphi 0, %s189
      %s192 = sphi 0, %s191
      %s206 = sphi 0, %s192
      %s210 = sphi 0, %s210
      %s212 = sphi 0, %s210
      %s213 = sphi 0, %s212
      %s227 = sphi 0, %s213
      %s231 = sphi 0, %s231
      %s233 = sphi 0, %s231
      %s234 = sphi 0, %s233
      %s248 = sphi 0, %s234
      %s252 = sphi 0, %s252
      %s254 = sphi 0, %s252
      %s255 = sphi 0, %s254
      %s269 = sphi 0, %s255
      %s273 = sphi 0, %s273
      %s275 = sphi 0, %s273
      %s276 = sphi 0, %s275
      %s290 = sphi 0, %s276
      %s298 = sphi 0, %s300
      %s301 = sphi 0, %s298
      %s302 = sphi 0, %s301
      %s318 = sphi 0, %s302
    $region4: #{tpu_custom_call.1} parent=1 // loop_header_branch
      %29 = sbr.rel (%p27) target = $region8
    $region5: #{tpu_custom_call.1} parent=1 // loop_body
      %s31 = ssub.s32 %s26, 1
      %s32 = ssub.s32 %s26, 2
      %s39 = sadd.s32 1, %s34
      %p40 = scmp.ge.s32.totalorder %s39, 1
      %s41 = scalar_select %p40, 0, %s39
      %s42 = sadd.s32 1, %s33
      %s43 = scalar_select %p40, %s42, %s33
      %p44 = scmp.ge.s32.totalorder %s43, 2
      %s45 = scalar_select %p44, 0, %s43
      %s46 = ssub.s32 %s33, %s45
      %s47 = ssub.s32 %s34, %s41
      %s48 = sor.u32 %s46, %s47
      %p49 = scmp.eq.s32.totalorder %s48, 0
      %s51 = sadd.s32 %s50, 1
      %s52 = scalar_select %p49, %s50, %s51
      %p55 = pneg %p49
      %p56 = scmp.eq.s32.totalorder %s26, 1
      %p57 = por %p55, %p56
      %p58 = scmp.ne.s32.totalorder %s50, %s53
      %p59 = scmp.eq.s32.totalorder %s26, 0
      %p60 = por %p58, %p59
      %p61 = scmp.ne.s32.totalorder %s50, %s53
      %p62 = scmp.eq.s32.totalorder %s31, 1
      %p63 = por %p61, %p62
      %p64 = scmp.ne.s32.totalorder %s53, %s54
      %p65 = scmp.eq.s32.totalorder %s31, 0
      %p66 = por %p64, %p65
      %p67 = scmp.ne.s32.totalorder %s53, %s54
      %p68 = scmp.eq.s32.totalorder %s32, 1
      %p69 = por %p67, %p68
      %p71 = scmp.ne.s32.totalorder %s54, %s70
      %p72 = scmp.eq.s32.totalorder %s32, 0
      %p73 = por %p71, %p72
      %s74 = ssub.s32 %s33, %s45
      %p75 = scmp.eq.s32.totalorder %s74, 0
      %s77 = sadd.s32 %s76, 1
      %s78 = scalar_select %p75, %s76, %s77
      %p81 = pneg %p75
      %p82 = scmp.eq.s32.totalorder %s26, 1
      %p83 = por %p81, %p82
      %p84 = scmp.ne.s32.totalorder %s76, %s79
      %p85 = scmp.eq.s32.totalorder %s26, 0
      %p86 = por %p84, %p85
      %p87 = scmp.ne.s32.totalorder %s76, %s79
      %p88 = scmp.eq.s32.totalorder %s31, 1
      %p89 = por %p87, %p88
      %p90 = scmp.ne.s32.totalorder %s79, %s80
      %p91 = scmp.eq.s32.totalorder %s31, 0
      %p92 = por %p90, %p91
      %p93 = scmp.ne.s32.totalorder %s79, %s80
      %p94 = scmp.eq.s32.totalorder %s32, 1
      %p95 = por %p93, %p94
      %p97 = scmp.ne.s32.totalorder %s80, %s96
      %p98 = scmp.eq.s32.totalorder %s32, 0
      %p99 = por %p97, %p98
      %s100 = ssub.s32 %s33, %s45
      %p101 = scmp.eq.s32.totalorder %s100, 0
      %s103 = sadd.s32 %s102, 1
      %s104 = scalar_select %p101, %s102, %s103
      %p107 = pneg %p101
      %p108 = scmp.eq.s32.totalorder %s26, 1
      %p109 = por %p107, %p108
      %p110 = scmp.ne.s32.totalorder %s102, %s105
      %p111 = scmp.eq.s32.totalorder %s26, 0
      %p112 = por %p110, %p111
      %p113 = scmp.ne.s32.totalorder %s102, %s105
      %p114 = scmp.eq.s32.totalorder %s31, 1
      %p115 = por %p113, %p114
      %p116 = scmp.ne.s32.totalorder %s105, %s106
      %p117 = scmp.eq.s32.totalorder %s31, 0
      %p118 = por %p116, %p117
      %p119 = scmp.ne.s32.totalorder %s105, %s106
      %p120 = scmp.eq.s32.totalorder %s32, 1
      %p121 = por %p119, %p120
      %p123 = scmp.ne.s32.totalorder %s106, %s122
      %p124 = scmp.eq.s32.totalorder %s32, 0
      %p125 = por %p123, %p124
      %s127 = sadd.s32 %s126, 1
      %p130 = scmp.eq.s32.totalorder %s26, 1
      %p131 = scmp.ne.s32.totalorder %s126, %s128
      %p132 = scmp.eq.s32.totalorder %s26, 0
      %p133 = por %p131, %p132
      %p134 = scmp.ne.s32.totalorder %s126, %s128
      %p135 = scmp.eq.s32.totalorder %s31, 1
      %p136 = por %p134, %p135
      %p137 = scmp.ne.s32.totalorder %s128, %s129
      %p138 = scmp.eq.s32.totalorder %s31, 0
      %p139 = por %p137, %p138
      %p140 = scmp.ne.s32.totalorder %s128, %s129
      %p141 = scmp.eq.s32.totalorder %s32, 1
      %p142 = por %p140, %p141
      %p144 = scmp.ne.s32.totalorder %s129, %s143
      %p145 = scmp.eq.s32.totalorder %s32, 0
      %p146 = por %p144, %p145
      %s148 = sadd.s32 %s147, 1
      %p151 = scmp.eq.s32.totalorder %s26, 1
      %p152 = scmp.ne.s32.totalorder %s147, %s149
      %p153 = scmp.eq.s32.totalorder %s26, 0
      %p154 = por %p152, %p153
      %p155 = scmp.ne.s32.totalorder %s147, %s149
      %p156 = scmp.eq.s32.totalorder %s31, 1
      %p157 = por %p155, %p156
      %p158 = scmp.ne.s32.totalorder %s149, %s150
      %p159 = scmp.eq.s32.totalorder %s31, 0
      %p160 = por %p158, %p159
      %p161 = scmp.ne.s32.totalorder %s149, %s150
      %p162 = scmp.eq.s32.totalorder %s32, 1
      %p163 = por %p161, %p162
      %p165 = scmp.ne.s32.totalorder %s150, %s164
      %p166 = scmp.eq.s32.totalorder %s32, 0
      %p167 = por %p165, %p166
      %s169 = sadd.s32 %s168, 1
      %p172 = scmp.eq.s32.totalorder %s26, 1
      %p173 = scmp.ne.s32.totalorder %s168, %s170
      %p174 = scmp.eq.s32.totalorder %s26, 0
      %p175 = por %p173, %p174
      %p176 = scmp.ne.s32.totalorder %s168, %s170
      %p177 = scmp.eq.s32.totalorder %s31, 1
      %p178 = por %p176, %p177
      %p179 = scmp.ne.s32.totalorder %s170, %s171
      %p180 = scmp.eq.s32.totalorder %s31, 0
      %p181 = por %p179, %p180
      %p182 = scmp.ne.s32.totalorder %s170, %s171
      %p183 = scmp.eq.s32.totalorder %s32, 1
      %p184 = por %p182, %p183
      %p186 = scmp.ne.s32.totalorder %s171, %s185
      %p187 = scmp.eq.s32.totalorder %s32, 0
      %p188 = por %p186, %p187
      %s190 = sadd.s32 %s189, 1
      %p193 = scmp.eq.s32.totalorder %s26, 1
      %p194 = scmp.ne.s32.totalorder %s189, %s191
      %p195 = scmp.eq.s32.totalorder %s26, 0
      %p196 = por %p194, %p195
      %p197 = scmp.ne.s32.totalorder %s189, %s191
      %p198 = scmp.eq.s32.totalorder %s31, 1
      %p199 = por %p197, %p198
      %p200 = scmp.ne.s32.totalorder %s191, %s192
      %p201 = scmp.eq.s32.totalorder %s31, 0
      %p202 = por %p200, %p201
      %p203 = scmp.ne.s32.totalorder %s191, %s192
      %p204 = scmp.eq.s32.totalorder %s32, 1
      %p205 = por %p203, %p204
      %p207 = scmp.ne.s32.totalorder %s192, %s206
      %p208 = scmp.eq.s32.totalorder %s32, 0
      %p209 = por %p207, %p208
      %s211 = sadd.s32 %s210, 1
      %p214 = scmp.eq.s32.totalorder %s26, 1
      %p215 = scmp.ne.s32.totalorder %s210, %s212
      %p216 = scmp.eq.s32.totalorder %s26, 0
      %p217 = por %p215, %p216
      %p218 = scmp.ne.s32.totalorder %s210, %s212
      %p219 = scmp.eq.s32.totalorder %s31, 1
      %p220 = por %p218, %p219
      %p221 = scmp.ne.s32.totalorder %s212, %s213
      %p222 = scmp.eq.s32.totalorder %s31, 0
      %p223 = por %p221, %p222
      %p224 = scmp.ne.s32.totalorder %s212, %s213
      %p225 = scmp.eq.s32.totalorder %s32, 1
      %p226 = por %p224, %p225
      %p228 = scmp.ne.s32.totalorder %s213, %s227
      %p229 = scmp.eq.s32.totalorder %s32, 0
      %p230 = por %p228, %p229
      %s232 = sadd.s32 %s231, 1
      %p235 = scmp.eq.s32.totalorder %s26, 1
      %p236 = scmp.ne.s32.totalorder %s231, %s233
      %p237 = scmp.eq.s32.totalorder %s26, 0
      %p238 = por %p236, %p237
      %p239 = scmp.ne.s32.totalorder %s231, %s233
      %p240 = scmp.eq.s32.totalorder %s31, 1
      %p241 = por %p239, %p240
      %p242 = scmp.ne.s32.totalorder %s233, %s234
      %p243 = scmp.eq.s32.totalorder %s31, 0
      %p244 = por %p242, %p243
      %p245 = scmp.ne.s32.totalorder %s233, %s234
      %p246 = scmp.eq.s32.totalorder %s32, 1
      %p247 = por %p245, %p246
      %p249 = scmp.ne.s32.totalorder %s234, %s248
      %p250 = scmp.eq.s32.totalorder %s32, 0
      %p251 = por %p249, %p250
      %s253 = sadd.s32 %s252, 1
      %p256 = scmp.eq.s32.totalorder %s26, 1
      %p257 = scmp.ne.s32.totalorder %s252, %s254
      %p258 = scmp.eq.s32.totalorder %s26, 0
      %p259 = por %p257, %p258
      %p260 = scmp.ne.s32.totalorder %s252, %s254
      %p261 = scmp.eq.s32.totalorder %s31, 1
      %p262 = por %p260, %p261
      %p263 = scmp.ne.s32.totalorder %s254, %s255
      %p264 = scmp.eq.s32.totalorder %s31, 0
      %p265 = por %p263, %p264
      %p266 = scmp.ne.s32.totalorder %s254, %s255
      %p267 = scmp.eq.s32.totalorder %s32, 1
      %p268 = por %p266, %p267
      %p270 = scmp.ne.s32.totalorder %s255, %s269
      %p271 = scmp.eq.s32.totalorder %s32, 0
      %p272 = por %p270, %p271
      %s274 = sadd.s32 %s273, 1
      %p277 = scmp.eq.s32.totalorder %s26, 1
      %p278 = scmp.ne.s32.totalorder %s273, %s275
      %p279 = scmp.eq.s32.totalorder %s26, 0
      %p280 = por %p278, %p279
      %p281 = scmp.ne.s32.totalorder %s273, %s275
      %p282 = scmp.eq.s32.totalorder %s31, 1
      %p283 = por %p281, %p282
      %p284 = scmp.ne.s32.totalorder %s275, %s276
      %p285 = scmp.eq.s32.totalorder %s31, 0
      %p286 = por %p284, %p285
      %p287 = scmp.ne.s32.totalorder %s275, %s276
      %p288 = scmp.eq.s32.totalorder %s32, 1
      %p289 = por %p287, %p288
      %p291 = scmp.ne.s32.totalorder %s276, %s290
      %p292 = scmp.eq.s32.totalorder %s32, 0
      %p293 = por %p291, %p292
      %s294 = ssub.s32 %s33, %s45
      %s295 = ssub.s32 %s34, %s41
      %s296 = sor.u32 %s294, %s295
      %p297 = scmp.eq.s32.totalorder %s296, 0
      %s299 = sadd.s32 %s298, 1
      %s300 = scalar_select %p297, %s298, %s299
      %p303 = pneg %p297
      %p304 = scmp.eq.s32.totalorder %s26, 1
      %p305 = por %p303, %p304
      %p306 = scmp.ne.s32.totalorder %s298, %s301
      %p307 = scmp.eq.s32.totalorder %s26, 0
      %p308 = por %p306, %p307
      %p309 = scmp.ne.s32.totalorder %s298, %s301
      %p310 = scmp.eq.s32.totalorder %s31, 1
      %p311 = por %p309, %p310
      %p312 = scmp.ne.s32.totalorder %s301, %s302
      %p313 = scmp.eq.s32.totalorder %s31, 0
      %p314 = por %p312, %p313
      %p315 = scmp.ne.s32.totalorder %s301, %s302
      %p316 = scmp.eq.s32.totalorder %s32, 1
      %p317 = por %p315, %p316
      %p319 = scmp.ne.s32.totalorder %s302, %s318
      %p320 = scmp.eq.s32.totalorder %s32, 0
      %p321 = por %p319, %p320
      %p322 = scmp.le.s32.totalorder 1, %s26
      %p323 = scmp.lt.s32.totalorder %s26, 3
      %p324 = pnand %p322, %p323
      %p325 = pneg %p324
      // Predicated region
      $region9: #{tpu_custom_call.1} parent=5 // pred_check
        _
      $region10: #{tpu_custom_call.1} parent=5 // pred_check_branch
        %327 = sbr.rel (%p324) target = $region12
      $region11: #{tpu_custom_call.1} parent=5 // pred_region
        %s328 = ssub.s32 %s26, 1
        // Predicated region
        $region13: #{tpu_custom_call.1} parent=11 // pred_check
          %p329 = pneg %p92
        $region14: #{tpu_custom_call.1} parent=11 // pred_check_branch
          %331 = sbr.rel (%p329) target = $region16
        $region15: #{tpu_custom_call.1} parent=11 // pred_region
          %s333 = ssub.s32 256, 256
          %334 = vsyncadd [#allocation8], %s333
          %s335 = smul.addr %s35, 2
          %s336 = smul.addr %s335, 128
          %s337 = scalar_lea.hbm %s1, %s336
          %s338 = sshll.u32 [#allocation7], 4
          %s339 = int_to_ptr.vmem [resolvable:$true] %s338
          %344 = dma.hbm_to_vmem [thread:$0]  %s337, 256, %s339, [#allocation8], 128, 128, 8
        $region16: #{tpu_custom_call.1} parent=11 // pred_fallthru
          _
        // Predicated region
        $region17: #{tpu_custom_call.1} parent=11 // pred_check
          %p345 = pneg %p118
        $region18: #{tpu_custom_call.1} parent=11 // pred_check_branch
          %347 = sbr.rel (%p345) target = $region20
        $region19: #{tpu_custom_call.1} parent=11 // pred_region
          %s349 = ssub.s32 256, 256
          %350 = vsyncadd [#allocation8], %s349
          %s351 = smul.addr %s35, 2
          %s352 = smul.addr %s351, 128
          %s353 = scalar_lea.hbm %s2, %s352
          %s354 = sshll.u32 [#allocation9], 4
          %s355 = int_to_ptr.vmem [resolvable:$true] %s354
          %360 = dma.hbm_to_vmem [thread:$0]  %s353, 256, %s355, [#allocation8], 128, 128, 8
        $region20: #{tpu_custom_call.1} parent=11 // pred_fallthru
          _
        // Predicated region
        $region21: #{tpu_custom_call.1} parent=11 // pred_check
          %p361 = pneg %p139
        $region22: #{tpu_custom_call.1} parent=11 // pred_check_branch
          %363 = sbr.rel (%p361) target = $region24
        $region23: #{tpu_custom_call.1} parent=11 // pred_region
          %s365 = ssub.s32 512, 512
          %366 = vsyncadd [#allocation11], %s365
          %s367 = sshll.u32 [#allocation10], 4
          %s368 = int_to_ptr.vmem [resolvable:$true] %s367
          %373 = dma.hbm_to_vmem [thread:$0]  %s3, 512, %s368, [#allocation11], 128, 128, 8
        $region24: #{tpu_custom_call.1} parent=11 // pred_fallthru
          _
        // Predicated region
        $region25: #{tpu_custom_call.1} parent=11 // pred_check
          %p374 = pneg %p160
        $region26: #{tpu_custom_call.1} parent=11 // pred_check_branch
          %376 = sbr.rel (%p374) target = $region28
        $region27: #{tpu_custom_call.1} parent=11 // pred_region
          _
        $region28: #{tpu_custom_call.1} parent=11 // pred_fallthru
          _
        // Predicated region
        $region29: #{tpu_custom_call.1} parent=11 // pred_check
          %p377 = pneg %p181
        $region30: #{tpu_custom_call.1} parent=11 // pred_check_branch
          %379 = sbr.rel (%p377) target = $region32
        $region31: #{tpu_custom_call.1} parent=11 // pred_region
          %s381 = ssub.s32 512, 512
          %382 = vsyncadd [#allocation11], %s381
          %s383 = sshll.u32 [#allocation12], 4
          %s384 = int_to_ptr.vmem [resolvable:$true] %s383
          %389 = dma.hbm_to_vmem [thread:$0]  %s5, 512, %s384, [#allocation11], 128, 128, 8
        $region32: #{tpu_custom_call.1} parent=11 // pred_fallthru
          _
        // Predicated region
        $region33: #{tpu_custom_call.1} parent=11 // pred_check
          %p390 = pneg %p202
        $region34: #{tpu_custom_call.1} parent=11 // pred_check_branch
          %392 = sbr.rel (%p390) target = $region36
        $region35: #{tpu_custom_call.1} parent=11 // pred_region
          _
        $region36: #{tpu_custom_call.1} parent=11 // pred_fallthru
          _
        // Predicated region
        $region37: #{tpu_custom_call.1} parent=11 // pred_check
          %p393 = pneg %p223
        $region38: #{tpu_custom_call.1} parent=11 // pred_check_branch
          %395 = sbr.rel (%p393) target = $region40
        $region39: #{tpu_custom_call.1} parent=11 // pred_region
          %s397 = ssub.s32 512, 512
          %398 = vsyncadd [#allocation14], %s397
          %s399 = sshll.u32 [#allocation13], 4
          %s400 = int_to_ptr.vmem [resolvable:$true] %s399
          %405 = dma.hbm_to_vmem [thread:$0]  %s7, 512, %s400, [#allocation14], 128, 128, 8
        $region40: #{tpu_custom_call.1} parent=11 // pred_fallthru
          _
        // Predicated region
        $region41: #{tpu_custom_call.1} parent=11 // pred_check
          %p406 = pneg %p244
        $region42: #{tpu_custom_call.1} parent=11 // pred_check_branch
          %408 = sbr.rel (%p406) target = $region44
        $region43: #{tpu_custom_call.1} parent=11 // pred_region
          _
        $region44: #{tpu_custom_call.1} parent=11 // pred_fallthru
          _
        // Predicated region
        $region45: #{tpu_custom_call.1} parent=11 // pred_check
          %p409 = pneg %p265
        $region46: #{tpu_custom_call.1} parent=11 // pred_check_branch
          %411 = sbr.rel (%p409) target = $region48
        $region47: #{tpu_custom_call.1} parent=11 // pred_region
          %s413 = ssub.s32 512, 512
          %414 = vsyncadd [#allocation14], %s413
          %s415 = sshll.u32 [#allocation15], 4
          %s416 = int_to_ptr.vmem [resolvable:$true] %s415
          %421 = dma.hbm_to_vmem [thread:$0]  %s9, 512, %s416, [#allocation14], 128, 128, 8
        $region48: #{tpu_custom_call.1} parent=11 // pred_fallthru
          _
        // Predicated region
        $region49: #{tpu_custom_call.1} parent=11 // pred_check
          %p422 = pneg %p286
        $region50: #{tpu_custom_call.1} parent=11 // pred_check_branch
          %424 = sbr.rel (%p422) target = $region52
        $region51: #{tpu_custom_call.1} parent=11 // pred_region
          _
        $region52: #{tpu_custom_call.1} parent=11 // pred_fallthru
          _
      $region12: #{tpu_custom_call.1} parent=5 // pred_fallthru
        _
      %p425 = scmp.lt.s32.totalorder %s26, 2
      // Predicated region
      $region53: #{tpu_custom_call.1} parent=5 // pred_check
        %p426 = pneg %p425
      $region54: #{tpu_custom_call.1} parent=5 // pred_check_branch
        %428 = sbr.rel (%p426) target = $region56
      $region55: #{tpu_custom_call.1} parent=5 // pred_region
        // Predicated region
        $region57: #{tpu_custom_call.1} parent=55 // pred_check
          %p429 = pneg %p60
        $region58: #{tpu_custom_call.1} parent=55 // pred_check_branch
          %431 = sbr.rel (%p429) target = $region60
        $region59: #{tpu_custom_call.1} parent=55 // pred_region
          %s432 = sand.u32 %s50, 1
          %s433 = scalar_lea.sflag [#allocation5], %s432
          %s434 = sand.u32 %s50, 1
          %s435 = smul.addr %s434, 8
          %s436 = scalar_lea.vmem [#allocation4], %s435
          %s438 = ssub.s32 128, 128
          %439 = vsyncadd %s433, %s438
          %s440 = sadd.s32 %s34, %s33
          %s441 = smul.addr %s440, 128
          %s442 = scalar_lea.hbm %s0, %s441
          %s444 = sshll.u32 %s436, 4
          %s445 = int_to_ptr.vmem [resolvable:$true] %s444
          %447 = dma.hbm_to_vmem [thread:$0]  %s442, 128, %s445, %s433
        $region60: #{tpu_custom_call.1} parent=55 // pred_fallthru
          _
      $region56: #{tpu_custom_call.1} parent=5 // pred_fallthru
        _
      %p448 = scmp.le.s32.totalorder 1, %s26
      %p449 = scmp.lt.s32.totalorder %s26, 3
      %p450 = pnand %p448, %p449
      %p451 = pneg %p450
      // Predicated region
      $region61: #{tpu_custom_call.1} parent=5 // pred_check
        _
      $region62: #{tpu_custom_call.1} parent=5 // pred_check_branch
        %453 = sbr.rel (%p450) target = $region64
      $region63: #{tpu_custom_call.1} parent=5 // pred_region
        %s454 = ssub.s32 %s26, 1
        %s455 = sand.u32 %s53, 1
        %s456 = scalar_lea.sflag [#allocation5], %s455
        %s457 = sand.u32 %s53, 1
        %s458 = smul.addr %s457, 8
        %s459 = scalar_lea.vmem [#allocation4], %s458
        // Predicated region
        $region65: #{tpu_custom_call.1} parent=63 // pred_check
          %p460 = pneg %p66
        $region66: #{tpu_custom_call.1} parent=63 // pred_check_branch
          %462 = sbr.rel (%p460) target = $region68
        $region67: #{tpu_custom_call.1} parent=63 // pred_region
          %463 = dma.done %s456, 128
        $region68: #{tpu_custom_call.1} parent=63 // pred_fallthru
          _
        // Predicated region
        $region69: #{tpu_custom_call.1} parent=63 // pred_check
          %p464 = pneg %p92
        $region70: #{tpu_custom_call.1} parent=63 // pred_check_branch
          %466 = sbr.rel (%p464) target = $region72
        $region71: #{tpu_custom_call.1} parent=63 // pred_region
          %467 = dma.done [#allocation8], 256
        $region72: #{tpu_custom_call.1} parent=63 // pred_fallthru
          _
        // Predicated region
        $region73: #{tpu_custom_call.1} parent=63 // pred_check
          %p468 = pneg %p118
        $region74: #{tpu_custom_call.1} parent=63 // pred_check_branch
          %470 = sbr.rel (%p468) target = $region76
        $region75: #{tpu_custom_call.1} parent=63 // pred_region
          %471 = dma.done [#allocation8], 256
        $region76: #{tpu_custom_call.1} parent=63 // pred_fallthru
          _
        // Predicated region
        $region77: #{tpu_custom_call.1} parent=63 // pred_check
          %p472 = pneg %p139
        $region78: #{tpu_custom_call.1} parent=63 // pred_check_branch
          %474 = sbr.rel (%p472) target = $region80
        $region79: #{tpu_custom_call.1} parent=63 // pred_region
          %475 = dma.done [#allocation11], 512
        $region80: #{tpu_custom_call.1} parent=63 // pred_fallthru
          _
        // Predicated region
        $region81: #{tpu_custom_call.1} parent=63 // pred_check
          %p476 = pneg %p181
        $region82: #{tpu_custom_call.1} parent=63 // pred_check_branch
          %478 = sbr.rel (%p476) target = $region84
        $region83: #{tpu_custom_call.1} parent=63 // pred_region
          %479 = dma.done [#allocation11], 512
        $region84: #{tpu_custom_call.1} parent=63 // pred_fallthru
          _
        // Predicated region
        $region85: #{tpu_custom_call.1} parent=63 // pred_check
          %p480 = pneg %p223
        $region86: #{tpu_custom_call.1} parent=63 // pred_check_branch
          %482 = sbr.rel (%p480) target = $region88
        $region87: #{tpu_custom_call.1} parent=63 // pred_region
          %483 = dma.done [#allocation14], 512
        $region88: #{tpu_custom_call.1} parent=63 // pred_fallthru
          _
        // Predicated region
        $region89: #{tpu_custom_call.1} parent=63 // pred_check
          %p484 = pneg %p265
        $region90: #{tpu_custom_call.1} parent=63 // pred_check_branch
          %486 = sbr.rel (%p484) target = $region92
        $region91: #{tpu_custom_call.1} parent=63 // pred_region
          %487 = dma.done [#allocation14], 512
        $region92: #{tpu_custom_call.1} parent=63 // pred_fallthru
          _
        %s488 = sand.u32 %s53, 1
        %s489 = scalar_lea.sflag [#allocation5], %s488
        %s490 = sand.u32 %s53, 1
        %s491 = smul.addr %s490, 8
        %s492 = scalar_lea.vmem [#allocation4], %s491
        %p493 = pneg %p66
        %p494 = pneg %p63
        %p495 = pneg %p92
        %p496 = pneg %p89
        %p497 = pneg %p118
        %p498 = pneg %p115
        %p499 = pneg %p139
        %p500 = pneg %p136
        %p501 = pneg %p160
        %p502 = pneg %p157
        %p503 = pneg %p181
        %p504 = pneg %p178
        %p505 = pneg %p202
        %p506 = pneg %p199
        %p507 = pneg %p223
        %p508 = pneg %p220
        %p509 = pneg %p244
        %p510 = pneg %p241
        %p511 = pneg %p265
        %p512 = pneg %p262
        %p513 = pneg %p286
        %p514 = pneg %p283
        %p515 = pneg %p314
        %p516 = pneg %p311
        %s517 = sand.u32 %s301, 1
        %s518 = scalar_lea.sflag [#allocation6], %s517
        %s519 = sand.u32 %s301, 1
        %s520 = smul.addr %s519, 8
        %s521 = scalar_lea.vmem [#allocation16], %s520
        %p522 = scmp.eq.s32.totalorder %s36, 0
        // Predicated region
        $region93: #{tpu_custom_call.1} parent=63 // pred_check
          %p523 = pneg %p522
        $region94: #{tpu_custom_call.1} parent=63 // pred_check_branch
          %525 = sbr.rel (%p523) target = $region96
        $region95: #{tpu_custom_call.1} parent=63 // pred_region
          %v526 = vld [vmem:[#allocation7] sm:$0xff]
          %v527 = vld [vmem:[#allocation7 + $0x8] sm:$0xff]
          %v528 = vld [vmem:[#allocation9] sm:$0xff]
          %v529 = vld [vmem:[#allocation9 + $0x8] sm:$0xff]
          %v530 = vld [vmem:[#allocation12] sm:$0xff]
          %v531 = vld [vmem:[#allocation12 + $0x8] sm:$0xff]
          %v532 = vld [vmem:[#allocation12 + $0x10] sm:$0xff]
          %v533 = vld [vmem:[#allocation12 + $0x18] sm:$0xff]
          %v534 = vld [vmem:[%s6] sm:$0x1]
          %v536 = vlaneseq
          %v537 = vshrl.u32 %v536, 7
          %v538 = vsub.s32 0, %v537
          %v539 = vrot.slane %v534, %v538
          %vm541 = vcmask 261120
          %v543 = vsel %vm541, %v526, 0
          %v546 = vsel %vm541, %v527, 0
          %548 = vmatprep.subr.mxu0 0.0
          %549 = vmatpush1.msra.mxu0 0.0
          %550 = vmatprep.subr.mxu0 0.0
          %551 = vmatpush1.msra.mxu0 0.0
          %552 = vmatprep.subr.mxu0 0.0
          %553 = vmatpush1.msra.mxu0 0.0
          %554 = vmatprep.subr.mxu0 0.0
          %555 = vmatpush1.msra.mxu0 0.0
          %556 = vmatprep.subr.mxu0 0.0
          %557 = vmatpush1.msra.mxu0 0.0
          %558 = vmatprep.subr.mxu0 0.0
          %559 = vmatpush1.msra.mxu0 0.0
          %560 = vmatprep.subr.mxu0 0.0
          %561 = vmatpush1.msra.mxu0 0.0
          %562 = vmatprep.subr.mxu0 0.0
          %563 = vmatpush1.msra.mxu0 0.0
          %564 = vmatprep.subr.mxu0 0.0
          %565 = vmatpush1.msra.mxu0 0.0
          %566 = vmatprep.subr.mxu0 0.0
          %567 = vmatpush1.msra.mxu0 0.0
          %568 = vmatprep.subr.mxu0 0.0
          %569 = vmatpush1.msra.mxu0 0.0
          %570 = vmatprep.subr.mxu0 0.0
          %571 = vmatpush1.msra.mxu0 0.0
          %572 = vmatprep.subr.mxu0 0.0
          %573 = vmatpush1.msra.mxu0 %v533
          %574 = vmatprep.subr.mxu0 0.0
          %575 = vmatpush1.msra.mxu0 %v532
          %576 = vmatprep.subr.mxu0 0.0
          %577 = vmatpush1.msra.mxu0 %v531
          %578 = vmatprep.subr.mxu0 0.0
          %579 = vmatpush1.msra.mxu0 %v530
          %580 = vmatprep.subr.mxu0 0.0
          %581 = vmatpush2.msra.mxu0 0.0
          %582 = vmatprep.subr.mxu0 0.0
          %583 = vmatpush2.msra.mxu0 0.0
          %584 = vmatprep.subr.mxu0 0.0
          %585 = vmatpush2.msra.mxu0 0.0
          %586 = vmatprep.subr.mxu0 0.0
          %587 = vmatpush2.msra.mxu0 0.0
          %588 = vmatprep.subr.mxu0 0.0
          %589 = vmatpush2.msra.mxu0 0.0
          %590 = vmatprep.subr.mxu0 0.0
          %591 = vmatpush2.msra.mxu0 0.0
          %592 = vmatprep.subr.mxu0 0.0
          %593 = vmatpush2.msra.mxu0 0.0
          %594 = vmatprep.subr.mxu0 0.0
          %595 = vmatpush2.msra.mxu0 0.0
          %596 = vmatprep.subr.mxu0 0.0
          %597 = vmatpush2.msra.mxu0 0.0
          %598 = vmatprep.subr.mxu0 0.0
          %599 = vmatpush2.msra.mxu0 0.0
          %600 = vmatprep.subr.mxu0 0.0
          %601 = vmatpush2.msra.mxu0 0.0
          %602 = vmatprep.subr.mxu0 0.0
          %603 = vmatpush2.msra.mxu0 0.0
          %604 = vmatprep.subr.mxu0 0.0
          %605 = vmatpush2.msra.mxu0 0.0
          %606 = vmatprep.subr.mxu0 0.0
          %607 = vmatpush2.msra.mxu0 0.0
          %608 = vmatprep.subr.mxu0 0.0
          %609 = vmatpush2.msra.mxu0 0.0
          %610 = vmatprep.subr.mxu0 0.0
          %611 = vmatpush2.msra.mxu0 0.0
          %612 = vmatprep.mubr.f32.mxu0 0.0
          %613 = vmatmul.mubr.f32.gmra.mxu0 %v543
          %v614 = vpop.f32.mrf.mxu0
          %v615 = vadd.f32 %v539, %v614
          %v616 = vpop.f32.mrf.mxu0
          %617 = vmatprep.mubr.f32.mxu0 0.0
          %618 = vmatmul.mubr.f32.gmra.mxu0 %v546
          %v619 = vpop.f32.mrf.mxu0
          %v620 = vadd.f32 %v539, %v619
          %v621 = vpop.f32.mrf.mxu0
          %622 = vdwg.mxu0
          %v623 = vld [vmem:[#allocation13] sm:$0xff]
          %v624 = vld [vmem:[#allocation13 + $0x8] sm:$0xff]
          %v625 = vld [vmem:[#allocation13 + $0x10] sm:$0xff]
          %v626 = vld [vmem:[#allocation13 + $0x18] sm:$0xff]
          %v627 = vld [vmem:[%s8] sm:$0x1]
          %v629 = vlaneseq
          %v630 = vshrl.u32 %v629, 7
          %v631 = vsub.s32 0, %v630
          %v632 = vrot.slane %v627, %v631
          %v635 = vsel %vm541, %v528, 0
          %v638 = vsel %vm541, %v529, 0
          %640 = vmatprep.subr.mxu0 0.0
          %641 = vmatpush1.msra.mxu0 0.0
          %642 = vmatprep.subr.mxu0 0.0
          %643 = vmatpush1.msra.mxu0 0.0
          %644 = vmatprep.subr.mxu0 0.0
          %645 = vmatpush1.msra.mxu0 0.0
          %646 = vmatprep.subr.mxu0 0.0
          %647 = vmatpush1.msra.mxu0 0.0
          %648 = vmatprep.subr.mxu0 0.0
          %649 = vmatpush1.msra.mxu0 0.0
          %650 = vmatprep.subr.mxu0 0.0
          %651 = vmatpush1.msra.mxu0 0.0
          %652 = vmatprep.subr.mxu0 0.0
          %653 = vmatpush1.msra.mxu0 0.0
          %654 = vmatprep.subr.mxu0 0.0
          %655 = vmatpush1.msra.mxu0 0.0
          %656 = vmatprep.subr.mxu0 0.0
          %657 = vmatpush1.msra.mxu0 0.0
          %658 = vmatprep.subr.mxu0 0.0
          %659 = vmatpush1.msra.mxu0 0.0
          %660 = vmatprep.subr.mxu0 0.0
          %661 = vmatpush1.msra.mxu0 0.0
          %662 = vmatprep.subr.mxu0 0.0
          %663 = vmatpush1.msra.mxu0 0.0
          %664 = vmatprep.subr.mxu0 0.0
          %665 = vmatpush1.msra.mxu0 %v626
          %666 = vmatprep.subr.mxu0 0.0
          %667 = vmatpush1.msra.mxu0 %v625
          %668 = vmatprep.subr.mxu0 0.0
          %669 = vmatpush1.msra.mxu0 %v624
          %670 = vmatprep.subr.mxu0 0.0
          %671 = vmatpush1.msra.mxu0 %v623
          %672 = vmatprep.subr.mxu0 0.0
          %673 = vmatpush2.msra.mxu0 0.0
          %674 = vmatprep.subr.mxu0 0.0
          %675 = vmatpush2.msra.mxu0 0.0
          %676 = vmatprep.subr.mxu0 0.0
          %677 = vmatpush2.msra.mxu0 0.0
          %678 = vmatprep.subr.mxu0 0.0
          %679 = vmatpush2.msra.mxu0 0.0
          %680 = vmatprep.subr.mxu0 0.0
          %681 = vmatpush2.msra.mxu0 0.0
          %682 = vmatprep.subr.mxu0 0.0
          %683 = vmatpush2.msra.mxu0 0.0
          %684 = vmatprep.subr.mxu0 0.0
          %685 = vmatpush2.msra.mxu0 0.0
          %686 = vmatprep.subr.mxu0 0.0
          %687 = vmatpush2.msra.mxu0 0.0
          %688 = vmatprep.subr.mxu0 0.0
          %689 = vmatpush2.msra.mxu0 0.0
          %690 = vmatprep.subr.mxu0 0.0
          %691 = vmatpush2.msra.mxu0 0.0
          %692 = vmatprep.subr.mxu0 0.0
          %693 = vmatpush2.msra.mxu0 0.0
          %694 = vmatprep.subr.mxu0 0.0
          %695 = vmatpush2.msra.mxu0 0.0
          %696 = vmatprep.subr.mxu0 0.0
          %697 = vmatpush2.msra.mxu0 0.0
          %698 = vmatprep.subr.mxu0 0.0
          %699 = vmatpush2.msra.mxu0 0.0
          %700 = vmatprep.subr.mxu0 0.0
          %701 = vmatpush2.msra.mxu0 0.0
          %702 = vmatprep.subr.mxu0 0.0
          %703 = vmatpush2.msra.mxu0 0.0
          %704 = vmatprep.mubr.f32.mxu0 0.0
          %705 = vmatmul.mubr.f32.gmra.mxu0 %v635
          %v706 = vpop.f32.mrf.mxu0
          %v707 = vadd.f32 %v632, %v706
          %v708 = vpop.f32.mrf.mxu0
          %709 = vmatprep.mubr.f32.mxu0 0.0
          %710 = vmatmul.mubr.f32.gmra.mxu0 %v638
          %v711 = vpop.f32.mrf.mxu0
          %v712 = vadd.f32 %v632, %v711
          %v713 = vpop.f32.mrf.mxu0
          %714 = vdwg.mxu0
          %717 = vrot.lane.b32.xlu0 %v615, 120
          %v718 = vpop.permute.xlu0 %717
          %719 = vrot.lane.b32.xlu0 %v620, 120
          %v720 = vpop.permute.xlu0 %719
          %723 = vrot.lane.b32.xlu0 %v615, 112
          %v724 = vpop.permute.xlu0 %723
          %725 = vrot.lane.b32.xlu0 %v620, 112
          %v726 = vpop.permute.xlu0 %725
          %729 = vrot.lane.b32.xlu0 %v615, 104
          %v730 = vpop.permute.xlu0 %729
          %731 = vrot.lane.b32.xlu0 %v620, 104
          %v732 = vpop.permute.xlu0 %731
          %v735 = vcombine.low %v615, %v724
          %v736 = vcombine.high %v615, %v724
          %v738 = vunpack.c.l.s4 1983009808
          %v739 = vunpack.c.0.s8 %v738
          %v740 = vlaneseq
          %v741 = vshrl.u32 %v740, 7
          %v742 = vsub.s32 %v739, %v741
          %v743 = vrot.slane %v735, %v742
          %v745 = vunpack.c.l.s4 1983009808
          %v746 = vunpack.c.0.s8 %v745
          %v747 = vlaneseq
          %v748 = vshrl.u32 %v747, 7
          %v749 = vsub.s32 %v746, %v748
          %v750 = vrot.slane %v736, %v749
          %v751 = vcombine.low %v718, %v730
          %v752 = vcombine.high %v718, %v730
          %v754 = vunpack.c.l.s4 1983009808
          %v755 = vunpack.c.0.s8 %v754
          %v756 = vlaneseq
          %v757 = vshrl.u32 %v756, 7
          %v758 = vsub.s32 %v755, %v757
          %v759 = vrot.slane %v751, %v758
          %v761 = vunpack.c.l.s4 1983009808
          %v762 = vunpack.c.0.s8 %v761
          %v763 = vlaneseq
          %v764 = vshrl.u32 %v763, 7
          %v765 = vsub.s32 %v762, %v764
          %v766 = vrot.slane %v752, %v765
          %v767 = vcombine.low %v743, %v759
          %v768 = vcombine.high %v743, %v759
          %v770 = vunpack.c.l.s4 1934713408
          %v771 = vunpack.c.0.s8 %v770
          %v772 = vlaneseq
          %v773 = vshrl.u32 %v772, 7
          %v774 = vsub.s32 %v771, %v773
          %v775 = vrot.slane %v767, %v774
          %v777 = vunpack.c.l.s4 1934713408
          %v778 = vunpack.c.0.s8 %v777
          %v779 = vlaneseq
          %v780 = vshrl.u32 %v779, 7
          %v781 = vsub.s32 %v778, %v780
          %v782 = vrot.slane %v768, %v781
          %v783 = vcombine.low %v750, %v766
          %v784 = vcombine.high %v750, %v766
          %v786 = vunpack.c.l.s4 1934713408
          %v787 = vunpack.c.0.s8 %v786
          %v788 = vlaneseq
          %v789 = vshrl.u32 %v788, 7
          %v790 = vsub.s32 %v787, %v789
          %v791 = vrot.slane %v783, %v790
          %v793 = vunpack.c.l.s4 1934713408
          %v794 = vunpack.c.0.s8 %v793
          %v795 = vlaneseq
          %v796 = vshrl.u32 %v795, 7
          %v797 = vsub.s32 %v794, %v796
          %v798 = vrot.slane %v784, %v797
          %v799 = vcombine.high %v775, 0.0
          %v800 = vcombine.high %v782, 0.0
          %v801 = vcombine.high %v791, 0.0
          %v802 = vcombine.high %v798, 0.0
          %v803 = vcombine.low %v620, %v726
          %v804 = vcombine.high %v620, %v726
          %v806 = vunpack.c.l.s4 1983009808
          %v807 = vunpack.c.0.s8 %v806
          %v808 = vlaneseq
          %v809 = vshrl.u32 %v808, 7
          %v810 = vsub.s32 %v807, %v809
          %v811 = vrot.slane %v803, %v810
          %v813 = vunpack.c.l.s4 1983009808
          %v814 = vunpack.c.0.s8 %v813
          %v815 = vlaneseq
          %v816 = vshrl.u32 %v815, 7
          %v817 = vsub.s32 %v814, %v816
          %v818 = vrot.slane %v804, %v817
          %v819 = vcombine.low %v720, %v732
          %v820 = vcombine.high %v720, %v732
          %v822 = vunpack.c.l.s4 1983009808
          %v823 = vunpack.c.0.s8 %v822
          %v824 = vlaneseq
          %v825 = vshrl.u32 %v824, 7
          %v826 = vsub.s32 %v823, %v825
          %v827 = vrot.slane %v819, %v826
          %v829 = vunpack.c.l.s4 1983009808
          %v830 = vunpack.c.0.s8 %v829
          %v831 = vlaneseq
          %v832 = vshrl.u32 %v831, 7
          %v833 = vsub.s32 %v830, %v832
          %v834 = vrot.slane %v820, %v833
          %v835 = vcombine.low %v811, %v827
          %v836 = vcombine.high %v811, %v827
          %v838 = vunpack.c.l.s4 1934713408
          %v839 = vunpack.c.0.s8 %v838
          %v840 = vlaneseq
          %v841 = vshrl.u32 %v840, 7
          %v842 = vsub.s32 %v839, %v841
          %v843 = vrot.slane %v835, %v842
          %v845 = vunpack.c.l.s4 1934713408
          %v846 = vunpack.c.0.s8 %v845
          %v847 = vlaneseq
          %v848 = vshrl.u32 %v847, 7
          %v849 = vsub.s32 %v846, %v848
          %v850 = vrot.slane %v836, %v849
          %v851 = vcombine.low %v818, %v834
          %v852 = vcombine.high %v818, %v834
          %v854 = vunpack.c.l.s4 1934713408
          %v855 = vunpack.c.0.s8 %v854
          %v856 = vlaneseq
          %v857 = vshrl.u32 %v856, 7
          %v858 = vsub.s32 %v855, %v857
          %v859 = vrot.slane %v851, %v858
          %v861 = vunpack.c.l.s4 1934713408
          %v862 = vunpack.c.0.s8 %v861
          %v863 = vlaneseq
          %v864 = vshrl.u32 %v863, 7
          %v865 = vsub.s32 %v862, %v864
          %v866 = vrot.slane %v852, %v865
          %v867 = vcombine.high %v843, 0.0
          %v868 = vcombine.high %v850, 0.0
          %v869 = vcombine.high %v859, 0.0
          %v870 = vcombine.high %v866, 0.0
          %v871 = vcombine.low %v775, %v782
          %v873 = vunpack.c.l.s4 1983009808
          %v874 = vunpack.c.0.s8 %v873
          %v875 = vlaneseq
          %v876 = vshrl.u32 %v875, 7
          %v877 = vsub.s32 %v874, %v876
          %v878 = vrot.slane %v871, %v877
          %v879 = vcombine.low %v799, %v800
          %v881 = vunpack.c.l.s4 1983009808
          %v882 = vunpack.c.0.s8 %v881
          %v883 = vlaneseq
          %v884 = vshrl.u32 %v883, 7
          %v885 = vsub.s32 %v882, %v884
          %v886 = vrot.slane %v879, %v885
          %v887 = vcombine.low %v791, %v798
          %v889 = vunpack.c.l.s4 1983009808
          %v890 = vunpack.c.0.s8 %v889
          %v891 = vlaneseq
          %v892 = vshrl.u32 %v891, 7
          %v893 = vsub.s32 %v890, %v892
          %v894 = vrot.slane %v887, %v893
          %v895 = vcombine.low %v801, %v802
          %v897 = vunpack.c.l.s4 1983009808
          %v898 = vunpack.c.0.s8 %v897
          %v899 = vlaneseq
          %v900 = vshrl.u32 %v899, 7
          %v901 = vsub.s32 %v898, %v900
          %v902 = vrot.slane %v895, %v901
          %v903 = vcombine.low %v878, %v886
          %v904 = vcombine.high %v878, %v886
          %v906 = vunpack.c.l.s4 1934713408
          %v907 = vunpack.c.0.s8 %v906
          %v908 = vlaneseq
          %v909 = vshrl.u32 %v908, 7
          %v910 = vsub.s32 %v907, %v909
          %v911 = vrot.slane %v903, %v910
          %v913 = vunpack.c.l.s4 1934713408
          %v914 = vunpack.c.0.s8 %v913
          %v915 = vlaneseq
          %v916 = vshrl.u32 %v915, 7
          %v917 = vsub.s32 %v914, %v916
          %v918 = vrot.slane %v904, %v917
          %v919 = vcombine.low %v894, %v902
          %v920 = vcombine.high %v894, %v902
          %v922 = vunpack.c.l.s4 1934713408
          %v923 = vunpack.c.0.s8 %v922
          %v924 = vlaneseq
          %v925 = vshrl.u32 %v924, 7
          %v926 = vsub.s32 %v923, %v925
          %v927 = vrot.slane %v919, %v926
          %v929 = vunpack.c.l.s4 1934713408
          %v930 = vunpack.c.0.s8 %v929
          %v931 = vlaneseq
          %v932 = vshrl.u32 %v931, 7
          %v933 = vsub.s32 %v930, %v932
          %v934 = vrot.slane %v920, %v933
          %v935 = vcombine.low %v911, %v927
          %v936 = vcombine.high %v911, %v927
          %v937 = vcombine.low %v918, %v934
          %v938 = vcombine.high %v918, %v934
          %v939 = vcombine.low %v843, %v850
          %v941 = vunpack.c.l.s4 1983009808
          %v942 = vunpack.c.0.s8 %v941
          %v943 = vlaneseq
          %v944 = vshrl.u32 %v943, 7
          %v945 = vsub.s32 %v942, %v944
          %v946 = vrot.slane %v939, %v945
          %v947 = vcombine.low %v867, %v868
          %v949 = vunpack.c.l.s4 1983009808
          %v950 = vunpack.c.0.s8 %v949
          %v951 = vlaneseq
          %v952 = vshrl.u32 %v951, 7
          %v953 = vsub.s32 %v950, %v952
          %v954 = vrot.slane %v947, %v953
          %v955 = vcombine.low %v859, %v866
          %v957 = vunpack.c.l.s4 1983009808
          %v958 = vunpack.c.0.s8 %v957
          %v959 = vlaneseq
          %v960 = vshrl.u32 %v959, 7
          %v961 = vsub.s32 %v958, %v960
          %v962 = vrot.slane %v955, %v961
          %v963 = vcombine.low %v869, %v870
          %v965 = vunpack.c.l.s4 1983009808
          %v966 = vunpack.c.0.s8 %v965
          %v967 = vlaneseq
          %v968 = vshrl.u32 %v967, 7
          %v969 = vsub.s32 %v966, %v968
          %v970 = vrot.slane %v963, %v969
          %v971 = vcombine.low %v946, %v954
          %v972 = vcombine.high %v946, %v954
          %v974 = vunpack.c.l.s4 1934713408
          %v975 = vunpack.c.0.s8 %v974
          %v976 = vlaneseq
          %v977 = vshrl.u32 %v976, 7
          %v978 = vsub.s32 %v975, %v977
          %v979 = vrot.slane %v971, %v978
          %v981 = vunpack.c.l.s4 1934713408
          %v982 = vunpack.c.0.s8 %v981
          %v983 = vlaneseq
          %v984 = vshrl.u32 %v983, 7
          %v985 = vsub.s32 %v982, %v984
          %v986 = vrot.slane %v972, %v985
          %v987 = vcombine.low %v962, %v970
          %v988 = vcombine.high %v962, %v970
          %v990 = vunpack.c.l.s4 1934713408
          %v991 = vunpack.c.0.s8 %v990
          %v992 = vlaneseq
          %v993 = vshrl.u32 %v992, 7
          %v994 = vsub.s32 %v991, %v993
          %v995 = vrot.slane %v987, %v994
          %v997 = vunpack.c.l.s4 1934713408
          %v998 = vunpack.c.0.s8 %v997
          %v999 = vlaneseq
          %v1000 = vshrl.u32 %v999, 7
          %v1001 = vsub.s32 %v998, %v1000
          %v1002 = vrot.slane %v988, %v1001
          %v1003 = vcombine.low %v979, %v995
          %v1004 = vcombine.high %v979, %v995
          %v1005 = vcombine.low %v986, %v1002
          %v1006 = vcombine.high %v986, %v1002
          %vm1007 = vcmask 64512
          %1008 = vst.msk [vmem:[#allocation2] sm:$0xff] %vm1007, %v935
          %1009 = vst.msk [vmem:[#allocation2 + $0x8] sm:$0xff] %vm1007, %v1003
          %1010 = vst.msk [vmem:[#allocation2 + $0x10] sm:$0xff] %vm1007, %v936
          %1011 = vst.msk [vmem:[#allocation2 + $0x18] sm:$0xff] %vm1007, %v1004
          %1012 = vst.msk [vmem:[#allocation2 + $0x20] sm:$0xff] %vm1007, %v937
          %1013 = vst.msk [vmem:[#allocation2 + $0x28] sm:$0xff] %vm1007, %v1005
          %1014 = vst.msk [vmem:[#allocation2 + $0x30] sm:$0xff] %vm1007, %v938
          %1015 = vst.msk [vmem:[#allocation2 + $0x38] sm:$0xff] %vm1007, %v1006
          %1018 = vrot.lane.b32.xlu0 %v707, 120
          %v1019 = vpop.permute.xlu0 %1018
          %1020 = vrot.lane.b32.xlu0 %v712, 120
          %v1021 = vpop.permute.xlu0 %1020
          %1024 = vrot.lane.b32.xlu0 %v707, 112
          %v1025 = vpop.permute.xlu0 %1024
          %1026 = vrot.lane.b32.xlu0 %v712, 112
          %v1027 = vpop.permute.xlu0 %1026
          %1030 = vrot.lane.b32.xlu0 %v707, 104
          %v1031 = vpop.permute.xlu0 %1030
          %1032 = vrot.lane.b32.xlu0 %v712, 104
          %v1033 = vpop.permute.xlu0 %1032
          %v1036 = vcombine.low %v707, %v1025
          %v1037 = vcombine.high %v707, %v1025
          %v1039 = vunpack.c.l.s4 1983009808
          %v1040 = vunpack.c.0.s8 %v1039
          %v1041 = vlaneseq
          %v1042 = vshrl.u32 %v1041, 7
          %v1043 = vsub.s32 %v1040, %v1042
          %v1044 = vrot.slane %v1036, %v1043
          %v1046 = vunpack.c.l.s4 1983009808
          %v1047 = vunpack.c.0.s8 %v1046
          %v1048 = vlaneseq
          %v1049 = vshrl.u32 %v1048, 7
          %v1050 = vsub.s32 %v1047, %v1049
          %v1051 = vrot.slane %v1037, %v1050
          %v1052 = vcombine.low %v1019, %v1031
          %v1053 = vcombine.high %v1019, %v1031
          %v1055 = vunpack.c.l.s4 1983009808
          %v1056 = vunpack.c.0.s8 %v1055
          %v1057 = vlaneseq
          %v1058 = vshrl.u32 %v1057, 7
          %v1059 = vsub.s32 %v1056, %v1058
          %v1060 = vrot.slane %v1052, %v1059
          %v1062 = vunpack.c.l.s4 1983009808
          %v1063 = vunpack.c.0.s8 %v1062
          %v1064 = vlaneseq
          %v1065 = vshrl.u32 %v1064, 7
          %v1066 = vsub.s32 %v1063, %v1065
          %v1067 = vrot.slane %v1053, %v1066
          %v1068 = vcombine.low %v1044, %v1060
          %v1069 = vcombine.high %v1044, %v1060
          %v1071 = vunpack.c.l.s4 1934713408
          %v1072 = vunpack.c.0.s8 %v1071
          %v1073 = vlaneseq
          %v1074 = vshrl.u32 %v1073, 7
          %v1075 = vsub.s32 %v1072, %v1074
          %v1076 = vrot.slane %v1068, %v1075
          %v1078 = vunpack.c.l.s4 1934713408
          %v1079 = vunpack.c.0.s8 %v1078
          %v1080 = vlaneseq
          %v1081 = vshrl.u32 %v1080, 7
          %v1082 = vsub.s32 %v1079, %v1081
          %v1083 = vrot.slane %v1069, %v1082
          %v1084 = vcombine.low %v1051, %v1067
          %v1085 = vcombine.high %v1051, %v1067
          %v1087 = vunpack.c.l.s4 1934713408
          %v1088 = vunpack.c.0.s8 %v1087
          %v1089 = vlaneseq
          %v1090 = vshrl.u32 %v1089, 7
          %v1091 = vsub.s32 %v1088, %v1090
          %v1092 = vrot.slane %v1084, %v1091
          %v1094 = vunpack.c.l.s4 1934713408
          %v1095 = vunpack.c.0.s8 %v1094
          %v1096 = vlaneseq
          %v1097 = vshrl.u32 %v1096, 7
          %v1098 = vsub.s32 %v1095, %v1097
          %v1099 = vrot.slane %v1085, %v1098
          %v1100 = vcombine.high %v1076, 0.0
          %v1101 = vcombine.high %v1083, 0.0
          %v1102 = vcombine.high %v1092, 0.0
          %v1103 = vcombine.high %v1099, 0.0
          %v1104 = vcombine.low %v712, %v1027
          %v1105 = vcombine.high %v712, %v1027
          %v1107 = vunpack.c.l.s4 1983009808
          %v1108 = vunpack.c.0.s8 %v1107
          %v1109 = vlaneseq
          %v1110 = vshrl.u32 %v1109, 7
          %v1111 = vsub.s32 %v1108, %v1110
          %v1112 = vrot.slane %v1104, %v1111
          %v1114 = vunpack.c.l.s4 1983009808
          %v1115 = vunpack.c.0.s8 %v1114
          %v1116 = vlaneseq
          %v1117 = vshrl.u32 %v1116, 7
          %v1118 = vsub.s32 %v1115, %v1117
          %v1119 = vrot.slane %v1105, %v1118
          %v1120 = vcombine.low %v1021, %v1033
          %v1121 = vcombine.high %v1021, %v1033
          %v1123 = vunpack.c.l.s4 1983009808
          %v1124 = vunpack.c.0.s8 %v1123
          %v1125 = vlaneseq
          %v1126 = vshrl.u32 %v1125, 7
          %v1127 = vsub.s32 %v1124, %v1126
          %v1128 = vrot.slane %v1120, %v1127
          %v1130 = vunpack.c.l.s4 1983009808
          %v1131 = vunpack.c.0.s8 %v1130
          %v1132 = vlaneseq
          %v1133 = vshrl.u32 %v1132, 7
          %v1134 = vsub.s32 %v1131, %v1133
          %v1135 = vrot.slane %v1121, %v1134
          %v1136 = vcombine.low %v1112, %v1128
          %v1137 = vcombine.high %v1112, %v1128
          %v1139 = vunpack.c.l.s4 1934713408
          %v1140 = vunpack.c.0.s8 %v1139
          %v1141 = vlaneseq
          %v1142 = vshrl.u32 %v1141, 7
          %v1143 = vsub.s32 %v1140, %v1142
          %v1144 = vrot.slane %v1136, %v1143
          %v1146 = vunpack.c.l.s4 1934713408
          %v1147 = vunpack.c.0.s8 %v1146
          %v1148 = vlaneseq
          %v1149 = vshrl.u32 %v1148, 7
          %v1150 = vsub.s32 %v1147, %v1149
          %v1151 = vrot.slane %v1137, %v1150
          %v1152 = vcombine.low %v1119, %v1135
          %v1153 = vcombine.high %v1119, %v1135
          %v1155 = vunpack.c.l.s4 1934713408
          %v1156 = vunpack.c.0.s8 %v1155
          %v1157 = vlaneseq
          %v1158 = vshrl.u32 %v1157, 7
          %v1159 = vsub.s32 %v1156, %v1158
          %v1160 = vrot.slane %v1152, %v1159
          %v1162 = vunpack.c.l.s4 1934713408
          %v1163 = vunpack.c.0.s8 %v1162
          %v1164 = vlaneseq
          %v1165 = vshrl.u32 %v1164, 7
          %v1166 = vsub.s32 %v1163, %v1165
          %v1167 = vrot.slane %v1153, %v1166
          %v1168 = vcombine.high %v1144, 0.0
          %v1169 = vcombine.high %v1151, 0.0
          %v1170 = vcombine.high %v1160, 0.0
          %v1171 = vcombine.high %v1167, 0.0
          %v1172 = vcombine.low %v1076, %v1083
          %v1174 = vunpack.c.l.s4 1983009808
          %v1175 = vunpack.c.0.s8 %v1174
          %v1176 = vlaneseq
          %v1177 = vshrl.u32 %v1176, 7
          %v1178 = vsub.s32 %v1175, %v1177
          %v1179 = vrot.slane %v1172, %v1178
          %v1180 = vcombine.low %v1100, %v1101
          %v1182 = vunpack.c.l.s4 1983009808
          %v1183 = vunpack.c.0.s8 %v1182
          %v1184 = vlaneseq
          %v1185 = vshrl.u32 %v1184, 7
          %v1186 = vsub.s32 %v1183, %v1185
          %v1187 = vrot.slane %v1180, %v1186
          %v1188 = vcombine.low %v1092, %v1099
          %v1190 = vunpack.c.l.s4 1983009808
          %v1191 = vunpack.c.0.s8 %v1190
          %v1192 = vlaneseq
          %v1193 = vshrl.u32 %v1192, 7
          %v1194 = vsub.s32 %v1191, %v1193
          %v1195 = vrot.slane %v1188, %v1194
          %v1196 = vcombine.low %v1102, %v1103
          %v1198 = vunpack.c.l.s4 1983009808
          %v1199 = vunpack.c.0.s8 %v1198
          %v1200 = vlaneseq
          %v1201 = vshrl.u32 %v1200, 7
          %v1202 = vsub.s32 %v1199, %v1201
          %v1203 = vrot.slane %v1196, %v1202
          %v1204 = vcombine.low %v1179, %v1187
          %v1205 = vcombine.high %v1179, %v1187
          %v1207 = vunpack.c.l.s4 1934713408
          %v1208 = vunpack.c.0.s8 %v1207
          %v1209 = vlaneseq
          %v1210 = vshrl.u32 %v1209, 7
          %v1211 = vsub.s32 %v1208, %v1210
          %v1212 = vrot.slane %v1204, %v1211
          %v1214 = vunpack.c.l.s4 1934713408
          %v1215 = vunpack.c.0.s8 %v1214
          %v1216 = vlaneseq
          %v1217 = vshrl.u32 %v1216, 7
          %v1218 = vsub.s32 %v1215, %v1217
          %v1219 = vrot.slane %v1205, %v1218
          %v1220 = vcombine.low %v1195, %v1203
          %v1221 = vcombine.high %v1195, %v1203
          %v1223 = vunpack.c.l.s4 1934713408
          %v1224 = vunpack.c.0.s8 %v1223
          %v1225 = vlaneseq
          %v1226 = vshrl.u32 %v1225, 7
          %v1227 = vsub.s32 %v1224, %v1226
          %v1228 = vrot.slane %v1220, %v1227
          %v1230 = vunpack.c.l.s4 1934713408
          %v1231 = vunpack.c.0.s8 %v1230
          %v1232 = vlaneseq
          %v1233 = vshrl.u32 %v1232, 7
          %v1234 = vsub.s32 %v1231, %v1233
          %v1235 = vrot.slane %v1221, %v1234
          %v1236 = vcombine.low %v1212, %v1228
          %v1237 = vcombine.high %v1212, %v1228
          %v1238 = vcombine.low %v1219, %v1235
          %v1239 = vcombine.high %v1219, %v1235
          %v1240 = vcombine.low %v1144, %v1151
          %v1242 = vunpack.c.l.s4 1983009808
          %v1243 = vunpack.c.0.s8 %v1242
          %v1244 = vlaneseq
          %v1245 = vshrl.u32 %v1244, 7
          %v1246 = vsub.s32 %v1243, %v1245
          %v1247 = vrot.slane %v1240, %v1246
          %v1248 = vcombine.low %v1168, %v1169
          %v1250 = vunpack.c.l.s4 1983009808
          %v1251 = vunpack.c.0.s8 %v1250
          %v1252 = vlaneseq
          %v1253 = vshrl.u32 %v1252, 7
          %v1254 = vsub.s32 %v1251, %v1253
          %v1255 = vrot.slane %v1248, %v1254
          %v1256 = vcombine.low %v1160, %v1167
          %v1258 = vunpack.c.l.s4 1983009808
          %v1259 = vunpack.c.0.s8 %v1258
          %v1260 = vlaneseq
          %v1261 = vshrl.u32 %v1260, 7
          %v1262 = vsub.s32 %v1259, %v1261
          %v1263 = vrot.slane %v1256, %v1262
          %v1264 = vcombine.low %v1170, %v1171
          %v1266 = vunpack.c.l.s4 1983009808
          %v1267 = vunpack.c.0.s8 %v1266
          %v1268 = vlaneseq
          %v1269 = vshrl.u32 %v1268, 7
          %v1270 = vsub.s32 %v1267, %v1269
          %v1271 = vrot.slane %v1264, %v1270
          %v1272 = vcombine.low %v1247, %v1255
          %v1273 = vcombine.high %v1247, %v1255
          %v1275 = vunpack.c.l.s4 1934713408
          %v1276 = vunpack.c.0.s8 %v1275
          %v1277 = vlaneseq
          %v1278 = vshrl.u32 %v1277, 7
          %v1279 = vsub.s32 %v1276, %v1278
          %v1280 = vrot.slane %v1272, %v1279
          %v1282 = vunpack.c.l.s4 1934713408
          %v1283 = vunpack.c.0.s8 %v1282
          %v1284 = vlaneseq
          %v1285 = vshrl.u32 %v1284, 7
          %v1286 = vsub.s32 %v1283, %v1285
          %v1287 = vrot.slane %v1273, %v1286
          %v1288 = vcombine.low %v1263, %v1271
          %v1289 = vcombine.high %v1263, %v1271
          %v1291 = vunpack.c.l.s4 1934713408
          %v1292 = vunpack.c.0.s8 %v1291
          %v1293 = vlaneseq
          %v1294 = vshrl.u32 %v1293, 7
          %v1295 = vsub.s32 %v1292, %v1294
          %v1296 = vrot.slane %v1288, %v1295
          %v1298 = vunpack.c.l.s4 1934713408
          %v1299 = vunpack.c.0.s8 %v1298
          %v1300 = vlaneseq
          %v1301 = vshrl.u32 %v1300, 7
          %v1302 = vsub.s32 %v1299, %v1301
          %v1303 = vrot.slane %v1289, %v1302
          %v1304 = vcombine.low %v1280, %v1296
          %v1305 = vcombine.high %v1280, %v1296
          %v1306 = vcombine.low %v1287, %v1303
          %v1307 = vcombine.high %v1287, %v1303
          %1308 = vst.msk [vmem:[#allocation3] sm:$0xff] %vm1007, %v1236
          %1309 = vst.msk [vmem:[#allocation3 + $0x8] sm:$0xff] %vm1007, %v1304
          %1310 = vst.msk [vmem:[#allocation3 + $0x10] sm:$0xff] %vm1007, %v1237
          %1311 = vst.msk [vmem:[#allocation3 + $0x18] sm:$0xff] %vm1007, %v1305
          %1312 = vst.msk [vmem:[#allocation3 + $0x20] sm:$0xff] %vm1007, %v1238
          %1313 = vst.msk [vmem:[#allocation3 + $0x28] sm:$0xff] %vm1007, %v1306
          %1314 = vst.msk [vmem:[#allocation3 + $0x30] sm:$0xff] %vm1007, %v1239
          %1315 = vst.msk [vmem:[#allocation3 + $0x38] sm:$0xff] %vm1007, %v1307
        $region96: #{tpu_custom_call.1} parent=63 // pred_fallthru
          _
        %v1316 = vld [vmem:[%s459] sm:$0xff]
        %v1317 = vld [vmem:[#allocation10] sm:$0xff]
        %v1318 = vld [vmem:[#allocation10 + $0x8] sm:$0xff]
        %v1319 = vld [vmem:[#allocation10 + $0x10] sm:$0xff]
        %v1320 = vld [vmem:[#allocation10 + $0x18] sm:$0xff]
        %v1321 = vld [vmem:[%s4] sm:$0x1]
        %v1323 = vlaneseq
        %v1324 = vshrl.u32 %v1323, 7
        %v1325 = vsub.s32 0, %v1324
        %v1326 = vrot.slane %v1321, %v1325
        %vm1328 = vcmask 261120
        %v1330 = vsel %vm1328, %v1316, 0
        %1332 = vmatprep.subr.mxu0 0.0
        %1333 = vmatpush1.msra.mxu0 0.0
        %1334 = vmatprep.subr.mxu0 0.0
        %1335 = vmatpush1.msra.mxu0 0.0
        %1336 = vmatprep.subr.mxu0 0.0
        %1337 = vmatpush1.msra.mxu0 0.0
        %1338 = vmatprep.subr.mxu0 0.0
        %1339 = vmatpush1.msra.mxu0 0.0
        %1340 = vmatprep.subr.mxu0 0.0
        %1341 = vmatpush1.msra.mxu0 0.0
        %1342 = vmatprep.subr.mxu0 0.0
        %1343 = vmatpush1.msra.mxu0 0.0
        %1344 = vmatprep.subr.mxu0 0.0
        %1345 = vmatpush1.msra.mxu0 0.0
        %1346 = vmatprep.subr.mxu0 0.0
        %1347 = vmatpush1.msra.mxu0 0.0
        %1348 = vmatprep.subr.mxu0 0.0
        %1349 = vmatpush1.msra.mxu0 0.0
        %1350 = vmatprep.subr.mxu0 0.0
        %1351 = vmatpush1.msra.mxu0 0.0
        %1352 = vmatprep.subr.mxu0 0.0
        %1353 = vmatpush1.msra.mxu0 0.0
        %1354 = vmatprep.subr.mxu0 0.0
        %1355 = vmatpush1.msra.mxu0 0.0
        %1356 = vmatprep.subr.mxu0 0.0
        %1357 = vmatpush1.msra.mxu0 %v1320
        %1358 = vmatprep.subr.mxu0 0.0
        %1359 = vmatpush1.msra.mxu0 %v1319
        %1360 = vmatprep.subr.mxu0 0.0
        %1361 = vmatpush1.msra.mxu0 %v1318
        %1362 = vmatprep.subr.mxu0 0.0
        %1363 = vmatpush1.msra.mxu0 %v1317
        %1364 = vmatprep.subr.mxu0 0.0
        %1365 = vmatpush2.msra.mxu0 0.0
        %1366 = vmatprep.subr.mxu0 0.0
        %1367 = vmatpush2.msra.mxu0 0.0
        %1368 = vmatprep.subr.mxu0 0.0
        %1369 = vmatpush2.msra.mxu0 0.0
        %1370 = vmatprep.subr.mxu0 0.0
        %1371 = vmatpush2.msra.mxu0 0.0
        %1372 = vmatprep.subr.mxu0 0.0
        %1373 = vmatpush2.msra.mxu0 0.0
        %1374 = vmatprep.subr.mxu0 0.0
        %1375 = vmatpush2.msra.mxu0 0.0
        %1376 = vmatprep.subr.mxu0 0.0
        %1377 = vmatpush2.msra.mxu0 0.0
        %1378 = vmatprep.subr.mxu0 0.0
        %1379 = vmatpush2.msra.mxu0 0.0
        %1380 = vmatprep.subr.mxu0 0.0
        %1381 = vmatpush2.msra.mxu0 0.0
        %1382 = vmatprep.subr.mxu0 0.0
        %1383 = vmatpush2.msra.mxu0 0.0
        %1384 = vmatprep.subr.mxu0 0.0
        %1385 = vmatpush2.msra.mxu0 0.0
        %1386 = vmatprep.subr.mxu0 0.0
        %1387 = vmatpush2.msra.mxu0 0.0
        %1388 = vmatprep.subr.mxu0 0.0
        %1389 = vmatpush2.msra.mxu0 0.0
        %1390 = vmatprep.subr.mxu0 0.0
        %1391 = vmatpush2.msra.mxu0 0.0
        %1392 = vmatprep.subr.mxu0 0.0
        %1393 = vmatpush2.msra.mxu0 0.0
        %1394 = vmatprep.subr.mxu0 0.0
        %1395 = vmatpush2.msra.mxu0 0.0
        %1396 = vmatprep.mubr.f32.mxu0 0.0
        %1397 = vmatmul.mubr.f32.gmra.mxu0 %v1330
        %v1398 = vpop.f32.mrf.mxu0
        %v1399 = vadd.f32 %v1326, %v1398
        %v1400 = vpop.f32.mrf.mxu0
        %1401 = vdwg.mxu0
        %1403 = vrot.lane.b32.xlu0 %v1399, 120
        %v1404 = vpop.permute.xlu0 %1403
        %1406 = vrot.lane.b32.xlu0 %v1399, 112
        %v1407 = vpop.permute.xlu0 %1406
        %1409 = vrot.lane.b32.xlu0 %v1399, 104
        %v1410 = vpop.permute.xlu0 %1409
        %v1412 = vcombine.low %v1399, %v1407
        %v1413 = vcombine.high %v1399, %v1407
        %v1415 = vunpack.c.l.s4 1983009808
        %v1416 = vunpack.c.0.s8 %v1415
        %v1417 = vlaneseq
        %v1418 = vshrl.u32 %v1417, 7
        %v1419 = vsub.s32 %v1416, %v1418
        %v1420 = vrot.slane %v1412, %v1419
        %v1422 = vunpack.c.l.s4 1983009808
        %v1423 = vunpack.c.0.s8 %v1422
        %v1424 = vlaneseq
        %v1425 = vshrl.u32 %v1424, 7
        %v1426 = vsub.s32 %v1423, %v1425
        %v1427 = vrot.slane %v1413, %v1426
        %v1428 = vcombine.low %v1404, %v1410
        %v1429 = vcombine.high %v1404, %v1410
        %v1431 = vunpack.c.l.s4 1983009808
        %v1432 = vunpack.c.0.s8 %v1431
        %v1433 = vlaneseq
        %v1434 = vshrl.u32 %v1433, 7
        %v1435 = vsub.s32 %v1432, %v1434
        %v1436 = vrot.slane %v1428, %v1435
        %v1438 = vunpack.c.l.s4 1983009808
        %v1439 = vunpack.c.0.s8 %v1438
        %v1440 = vlaneseq
        %v1441 = vshrl.u32 %v1440, 7
        %v1442 = vsub.s32 %v1439, %v1441
        %v1443 = vrot.slane %v1429, %v1442
        %v1444 = vcombine.low %v1420, %v1436
        %v1445 = vcombine.high %v1420, %v1436
        %v1447 = vunpack.c.l.s4 1934713408
        %v1448 = vunpack.c.0.s8 %v1447
        %v1449 = vlaneseq
        %v1450 = vshrl.u32 %v1449, 7
        %v1451 = vsub.s32 %v1448, %v1450
        %v1452 = vrot.slane %v1444, %v1451
        %v1454 = vunpack.c.l.s4 1934713408
        %v1455 = vunpack.c.0.s8 %v1454
        %v1456 = vlaneseq
        %v1457 = vshrl.u32 %v1456, 7
        %v1458 = vsub.s32 %v1455, %v1457
        %v1459 = vrot.slane %v1445, %v1458
        %v1460 = vcombine.low %v1427, %v1443
        %v1461 = vcombine.high %v1427, %v1443
        %v1463 = vunpack.c.l.s4 1934713408
        %v1464 = vunpack.c.0.s8 %v1463
        %v1465 = vlaneseq
        %v1466 = vshrl.u32 %v1465, 7
        %v1467 = vsub.s32 %v1464, %v1466
        %v1468 = vrot.slane %v1460, %v1467
        %v1470 = vunpack.c.l.s4 1934713408
        %v1471 = vunpack.c.0.s8 %v1470
        %v1472 = vlaneseq
        %v1473 = vshrl.u32 %v1472, 7
        %v1474 = vsub.s32 %v1471, %v1473
        %v1475 = vrot.slane %v1461, %v1474
        %v1476 = vcombine.high %v1452, 0.0
        %v1477 = vcombine.high %v1459, 0.0
        %v1478 = vcombine.high %v1468, 0.0
        %v1479 = vcombine.high %v1475, 0.0
        %v1480 = vcombine.low %v1452, %v1459
        %v1482 = vunpack.c.l.s4 1983009808
        %v1483 = vunpack.c.0.s8 %v1482
        %v1484 = vlaneseq
        %v1485 = vshrl.u32 %v1484, 7
        %v1486 = vsub.s32 %v1483, %v1485
        %v1487 = vrot.slane %v1480, %v1486
        %v1488 = vcombine.low %v1476, %v1477
        %v1490 = vunpack.c.l.s4 1983009808
        %v1491 = vunpack.c.0.s8 %v1490
        %v1492 = vlaneseq
        %v1493 = vshrl.u32 %v1492, 7
        %v1494 = vsub.s32 %v1491, %v1493
        %v1495 = vrot.slane %v1488, %v1494
        %v1496 = vcombine.low %v1468, %v1475
        %v1498 = vunpack.c.l.s4 1983009808
        %v1499 = vunpack.c.0.s8 %v1498
        %v1500 = vlaneseq
        %v1501 = vshrl.u32 %v1500, 7
        %v1502 = vsub.s32 %v1499, %v1501
        %v1503 = vrot.slane %v1496, %v1502
        %v1504 = vcombine.low %v1478, %v1479
        %v1506 = vunpack.c.l.s4 1983009808
        %v1507 = vunpack.c.0.s8 %v1506
        %v1508 = vlaneseq
        %v1509 = vshrl.u32 %v1508, 7
        %v1510 = vsub.s32 %v1507, %v1509
        %v1511 = vrot.slane %v1504, %v1510
        %v1512 = vcombine.low %v1487, %v1495
        %v1513 = vcombine.high %v1487, %v1495
        %v1515 = vunpack.c.l.s4 1934713408
        %v1516 = vunpack.c.0.s8 %v1515
        %v1517 = vlaneseq
        %v1518 = vshrl.u32 %v1517, 7
        %v1519 = vsub.s32 %v1516, %v1518
        %v1520 = vrot.slane %v1512, %v1519
        %v1522 = vunpack.c.l.s4 1934713408
        %v1523 = vunpack.c.0.s8 %v1522
        %v1524 = vlaneseq
        %v1525 = vshrl.u32 %v1524, 7
        %v1526 = vsub.s32 %v1523, %v1525
        %v1527 = vrot.slane %v1513, %v1526
        %v1528 = vcombine.low %v1503, %v1511
        %v1529 = vcombine.high %v1503, %v1511
        %v1531 = vunpack.c.l.s4 1934713408
        %v1532 = vunpack.c.0.s8 %v1531
        %v1533 = vlaneseq
        %v1534 = vshrl.u32 %v1533, 7
        %v1535 = vsub.s32 %v1532, %v1534
        %v1536 = vrot.slane %v1528, %v1535
        %v1538 = vunpack.c.l.s4 1934713408
        %v1539 = vunpack.c.0.s8 %v1538
        %v1540 = vlaneseq
        %v1541 = vshrl.u32 %v1540, 7
        %v1542 = vsub.s32 %v1539, %v1541
        %v1543 = vrot.slane %v1529, %v1542
        %v1544 = vcombine.low %v1520, %v1536
        %v1545 = vcombine.high %v1520, %v1536
        %v1546 = vcombine.low %v1527, %v1543
        %v1547 = vcombine.high %v1527, %v1543
        %v1548 = vld [vmem:[#allocation2] sm:$0xff]
        %v1549 = vld [vmem:[#allocation2 + $0x8] sm:$0xff]
        %v1550 = vld [vmem:[#allocation2 + $0x10] sm:$0xff]
        %v1551 = vld [vmem:[#allocation2 + $0x18] sm:$0xff]
        %v1552 = vld [vmem:[#allocation2 + $0x20] sm:$0xff]
        %v1553 = vld [vmem:[#allocation2 + $0x28] sm:$0xff]
        %v1554 = vld [vmem:[#allocation2 + $0x30] sm:$0xff]
        %v1555 = vld [vmem:[#allocation2 + $0x38] sm:$0xff]
        %v1556 = vld [vmem:[#allocation3] sm:$0xff]
        %v1557 = vld [vmem:[#allocation3 + $0x8] sm:$0xff]
        %v1558 = vld [vmem:[#allocation3 + $0x10] sm:$0xff]
        %v1559 = vld [vmem:[#allocation3 + $0x18] sm:$0xff]
        %v1560 = vld [vmem:[#allocation3 + $0x20] sm:$0xff]
        %v1561 = vld [vmem:[#allocation3 + $0x28] sm:$0xff]
        %v1562 = vld [vmem:[#allocation3 + $0x30] sm:$0xff]
        %v1563 = vld [vmem:[#allocation3 + $0x38] sm:$0xff]
        %vm1564 = vcmask 64512
        %v1566 = vsel %vm1564, %v1544, 0
        %v1569 = vsel %vm1564, %v1548, 0
        %v1572 = vsel %vm1564, %v1549, 0
        %1574 = vmatprep.subr.mxu0 0.0
        %1575 = vmatpush1.xpose.msra.mxu0 0.0
        %1576 = vmatprep.subr.mxu0 0.0
        %1577 = vmatpush1.xpose.msra.mxu0 0.0
        %1578 = vmatprep.subr.mxu0 0.0
        %1579 = vmatpush1.xpose.msra.mxu0 0.0
        %1580 = vmatprep.subr.mxu0 0.0
        %1581 = vmatpush1.xpose.msra.mxu0 0.0
        %1582 = vmatprep.subr.mxu0 0.0
        %1583 = vmatpush1.xpose.msra.mxu0 0.0
        %1584 = vmatprep.subr.mxu0 0.0
        %1585 = vmatpush1.xpose.msra.mxu0 0.0
        %1586 = vmatprep.subr.mxu0 0.0
        %1587 = vmatpush1.xpose.msra.mxu0 0.0
        %1588 = vmatprep.subr.mxu0 0.0
        %1589 = vmatpush1.xpose.msra.mxu0 0.0
        %1590 = vmatprep.subr.mxu0 0.0
        %1591 = vmatpush1.xpose.msra.mxu0 0.0
        %1592 = vmatprep.subr.mxu0 0.0
        %1593 = vmatpush1.xpose.msra.mxu0 0.0
        %1594 = vmatprep.subr.mxu0 0.0
        %1595 = vmatpush1.xpose.msra.mxu0 0.0
        %1596 = vmatprep.subr.mxu0 0.0
        %1597 = vmatpush1.xpose.msra.mxu0 0.0
        %1598 = vmatprep.subr.mxu0 0.0
        %1599 = vmatpush1.xpose.msra.mxu0 0.0
        %1600 = vmatprep.subr.mxu0 0.0
        %1601 = vmatpush1.xpose.msra.mxu0 0.0
        %1602 = vmatprep.subr.mxu0 0.0
        %1603 = vmatpush1.xpose.msra.mxu0 %v1572
        %1604 = vmatprep.subr.mxu0 0.0
        %1605 = vmatpush1.xpose.msra.mxu0 %v1569
        %1606 = vmatprep.subr.mxu0 0.0
        %1607 = vmatpush2.xpose.msra.mxu0 0.0
        %1608 = vmatprep.subr.mxu0 0.0
        %1609 = vmatpush2.xpose.msra.mxu0 0.0
        %1610 = vmatprep.subr.mxu0 0.0
        %1611 = vmatpush2.xpose.msra.mxu0 0.0
        %1612 = vmatprep.subr.mxu0 0.0
        %1613 = vmatpush2.xpose.msra.mxu0 0.0
        %1614 = vmatprep.subr.mxu0 0.0
        %1615 = vmatpush2.xpose.msra.mxu0 0.0
        %1616 = vmatprep.subr.mxu0 0.0
        %1617 = vmatpush2.xpose.msra.mxu0 0.0
        %1618 = vmatprep.subr.mxu0 0.0
        %1619 = vmatpush2.xpose.msra.mxu0 0.0
        %1620 = vmatprep.subr.mxu0 0.0
        %1621 = vmatpush2.xpose.msra.mxu0 0.0
        %1622 = vmatprep.subr.mxu0 0.0
        %1623 = vmatpush2.xpose.msra.mxu0 0.0
        %1624 = vmatprep.subr.mxu0 0.0
        %1625 = vmatpush2.xpose.msra.mxu0 0.0
        %1626 = vmatprep.subr.mxu0 0.0
        %1627 = vmatpush2.xpose.msra.mxu0 0.0
        %1628 = vmatprep.subr.mxu0 0.0
        %1629 = vmatpush2.xpose.msra.mxu0 0.0
        %1630 = vmatprep.subr.mxu0 0.0
        %1631 = vmatpush2.xpose.msra.mxu0 0.0
        %1632 = vmatprep.subr.mxu0 0.0
        %1633 = vmatpush2.xpose.msra.mxu0 0.0
        %1634 = vmatprep.subr.mxu0 0.0
        %1635 = vmatpush2.xpose.msra.mxu0 0.0
        %1636 = vmatprep.subr.mxu0 0.0
        %1637 = vmatpush2.xpose.msra.mxu0 0.0
        %1638 = vmatprep.mubr.f32.mxu0 0.0
        %1639 = vmatmul.mubr.f32.gmra.mxu0 %v1566
        %v1640 = vpop.f32.mrf.mxu0
        %v1641 = vadd.f32 0.0, %v1640
        %v1642 = vpop.f32.mrf.mxu0
        %1643 = vdwg.mxu0
        %v1645 = vsel %vm1564, %v1545, 0
        %v1648 = vsel %vm1564, %v1550, 0
        %v1651 = vsel %vm1564, %v1551, 0
        %1653 = vmatprep.subr.mxu0 0.0
        %1654 = vmatpush1.xpose.msra.mxu0 0.0
        %1655 = vmatprep.subr.mxu0 0.0
        %1656 = vmatpush1.xpose.msra.mxu0 0.0
        %1657 = vmatprep.subr.mxu0 0.0
        %1658 = vmatpush1.xpose.msra.mxu0 0.0
        %1659 = vmatprep.subr.mxu0 0.0
        %1660 = vmatpush1.xpose.msra.mxu0 0.0
        %1661 = vmatprep.subr.mxu0 0.0
        %1662 = vmatpush1.xpose.msra.mxu0 0.0
        %1663 = vmatprep.subr.mxu0 0.0
        %1664 = vmatpush1.xpose.msra.mxu0 0.0
        %1665 = vmatprep.subr.mxu0 0.0
        %1666 = vmatpush1.xpose.msra.mxu0 0.0
        %1667 = vmatprep.subr.mxu0 0.0
        %1668 = vmatpush1.xpose.msra.mxu0 0.0
        %1669 = vmatprep.subr.mxu0 0.0
        %1670 = vmatpush1.xpose.msra.mxu0 0.0
        %1671 = vmatprep.subr.mxu0 0.0
        %1672 = vmatpush1.xpose.msra.mxu0 0.0
        %1673 = vmatprep.subr.mxu0 0.0
        %1674 = vmatpush1.xpose.msra.mxu0 0.0
        %1675 = vmatprep.subr.mxu0 0.0
        %1676 = vmatpush1.xpose.msra.mxu0 0.0
        %1677 = vmatprep.subr.mxu0 0.0
        %1678 = vmatpush1.xpose.msra.mxu0 0.0
        %1679 = vmatprep.subr.mxu0 0.0
        %1680 = vmatpush1.xpose.msra.mxu0 0.0
        %1681 = vmatprep.subr.mxu0 0.0
        %1682 = vmatpush1.xpose.msra.mxu0 %v1651
        %1683 = vmatprep.subr.mxu0 0.0
        %1684 = vmatpush1.xpose.msra.mxu0 %v1648
        %1685 = vmatprep.subr.mxu0 0.0
        %1686 = vmatpush2.xpose.msra.mxu0 0.0
        %1687 = vmatprep.subr.mxu0 0.0
        %1688 = vmatpush2.xpose.msra.mxu0 0.0
        %1689 = vmatprep.subr.mxu0 0.0
        %1690 = vmatpush2.xpose.msra.mxu0 0.0
        %1691 = vmatprep.subr.mxu0 0.0
        %1692 = vmatpush2.xpose.msra.mxu0 0.0
        %1693 = vmatprep.subr.mxu0 0.0
        %1694 = vmatpush2.xpose.msra.mxu0 0.0
        %1695 = vmatprep.subr.mxu0 0.0
        %1696 = vmatpush2.xpose.msra.mxu0 0.0
        %1697 = vmatprep.subr.mxu0 0.0
        %1698 = vmatpush2.xpose.msra.mxu0 0.0
        %1699 = vmatprep.subr.mxu0 0.0
        %1700 = vmatpush2.xpose.msra.mxu0 0.0
        %1701 = vmatprep.subr.mxu0 0.0
        %1702 = vmatpush2.xpose.msra.mxu0 0.0
        %1703 = vmatprep.subr.mxu0 0.0
        %1704 = vmatpush2.xpose.msra.mxu0 0.0
        %1705 = vmatprep.subr.mxu0 0.0
        %1706 = vmatpush2.xpose.msra.mxu0 0.0
        %1707 = vmatprep.subr.mxu0 0.0
        %1708 = vmatpush2.xpose.msra.mxu0 0.0
        %1709 = vmatprep.subr.mxu0 0.0
        %1710 = vmatpush2.xpose.msra.mxu0 0.0
        %1711 = vmatprep.subr.mxu0 0.0
        %1712 = vmatpush2.xpose.msra.mxu0 0.0
        %1713 = vmatprep.subr.mxu0 0.0
        %1714 = vmatpush2.xpose.msra.mxu0 0.0
        %1715 = vmatprep.subr.mxu0 0.0
        %1716 = vmatpush2.xpose.msra.mxu0 0.0
        %1717 = vmatprep.mubr.f32.mxu0 0.0
        %1718 = vmatmul.mubr.f32.gmra.mxu0 %v1645
        %v1719 = vpop.f32.mrf.mxu0
        %v1720 = vadd.f32 0.0, %v1719
        %v1721 = vpop.f32.mrf.mxu0
        %1722 = vdwg.mxu0
        %v1724 = vsel %vm1564, %v1546, 0
        %v1727 = vsel %vm1564, %v1552, 0
        %v1730 = vsel %vm1564, %v1553, 0
        %1732 = vmatprep.subr.mxu0 0.0
        %1733 = vmatpush1.xpose.msra.mxu0 0.0
        %1734 = vmatprep.subr.mxu0 0.0
        %1735 = vmatpush1.xpose.msra.mxu0 0.0
        %1736 = vmatprep.subr.mxu0 0.0
        %1737 = vmatpush1.xpose.msra.mxu0 0.0
        %1738 = vmatprep.subr.mxu0 0.0
        %1739 = vmatpush1.xpose.msra.mxu0 0.0
        %1740 = vmatprep.subr.mxu0 0.0
        %1741 = vmatpush1.xpose.msra.mxu0 0.0
        %1742 = vmatprep.subr.mxu0 0.0
        %1743 = vmatpush1.xpose.msra.mxu0 0.0
        %1744 = vmatprep.subr.mxu0 0.0
        %1745 = vmatpush1.xpose.msra.mxu0 0.0
        %1746 = vmatprep.subr.mxu0 0.0
        %1747 = vmatpush1.xpose.msra.mxu0 0.0
        %1748 = vmatprep.subr.mxu0 0.0
        %1749 = vmatpush1.xpose.msra.mxu0 0.0
        %1750 = vmatprep.subr.mxu0 0.0
        %1751 = vmatpush1.xpose.msra.mxu0 0.0
        %1752 = vmatprep.subr.mxu0 0.0
        %1753 = vmatpush1.xpose.msra.mxu0 0.0
        %1754 = vmatprep.subr.mxu0 0.0
        %1755 = vmatpush1.xpose.msra.mxu0 0.0
        %1756 = vmatprep.subr.mxu0 0.0
        %1757 = vmatpush1.xpose.msra.mxu0 0.0
        %1758 = vmatprep.subr.mxu0 0.0
        %1759 = vmatpush1.xpose.msra.mxu0 0.0
        %1760 = vmatprep.subr.mxu0 0.0
        %1761 = vmatpush1.xpose.msra.mxu0 %v1730
        %1762 = vmatprep.subr.mxu0 0.0
        %1763 = vmatpush1.xpose.msra.mxu0 %v1727
        %1764 = vmatprep.subr.mxu0 0.0
        %1765 = vmatpush2.xpose.msra.mxu0 0.0
        %1766 = vmatprep.subr.mxu0 0.0
        %1767 = vmatpush2.xpose.msra.mxu0 0.0
        %1768 = vmatprep.subr.mxu0 0.0
        %1769 = vmatpush2.xpose.msra.mxu0 0.0
        %1770 = vmatprep.subr.mxu0 0.0
        %1771 = vmatpush2.xpose.msra.mxu0 0.0
        %1772 = vmatprep.subr.mxu0 0.0
        %1773 = vmatpush2.xpose.msra.mxu0 0.0
        %1774 = vmatprep.subr.mxu0 0.0
        %1775 = vmatpush2.xpose.msra.mxu0 0.0
        %1776 = vmatprep.subr.mxu0 0.0
        %1777 = vmatpush2.xpose.msra.mxu0 0.0
        %1778 = vmatprep.subr.mxu0 0.0
        %1779 = vmatpush2.xpose.msra.mxu0 0.0
        %1780 = vmatprep.subr.mxu0 0.0
        %1781 = vmatpush2.xpose.msra.mxu0 0.0
        %1782 = vmatprep.subr.mxu0 0.0
        %1783 = vmatpush2.xpose.msra.mxu0 0.0
        %1784 = vmatprep.subr.mxu0 0.0
        %1785 = vmatpush2.xpose.msra.mxu0 0.0
        %1786 = vmatprep.subr.mxu0 0.0
        %1787 = vmatpush2.xpose.msra.mxu0 0.0
        %1788 = vmatprep.subr.mxu0 0.0
        %1789 = vmatpush2.xpose.msra.mxu0 0.0
        %1790 = vmatprep.subr.mxu0 0.0
        %1791 = vmatpush2.xpose.msra.mxu0 0.0
        %1792 = vmatprep.subr.mxu0 0.0
        %1793 = vmatpush2.xpose.msra.mxu0 0.0
        %1794 = vmatprep.subr.mxu0 0.0
        %1795 = vmatpush2.xpose.msra.mxu0 0.0
        %1796 = vmatprep.mubr.f32.mxu0 0.0
        %1797 = vmatmul.mubr.f32.gmra.mxu0 %v1724
        %v1798 = vpop.f32.mrf.mxu0
        %v1799 = vadd.f32 0.0, %v1798
        %v1800 = vpop.f32.mrf.mxu0
        %1801 = vdwg.mxu0
        %v1803 = vsel %vm1564, %v1547, 0
        %v1806 = vsel %vm1564, %v1554, 0
        %v1809 = vsel %vm1564, %v1555, 0
        %1811 = vmatprep.subr.mxu0 0.0
        %1812 = vmatpush1.xpose.msra.mxu0 0.0
        %1813 = vmatprep.subr.mxu0 0.0
        %1814 = vmatpush1.xpose.msra.mxu0 0.0
        %1815 = vmatprep.subr.mxu0 0.0
        %1816 = vmatpush1.xpose.msra.mxu0 0.0
        %1817 = vmatprep.subr.mxu0 0.0
        %1818 = vmatpush1.xpose.msra.mxu0 0.0
        %1819 = vmatprep.subr.mxu0 0.0
        %1820 = vmatpush1.xpose.msra.mxu0 0.0
        %1821 = vmatprep.subr.mxu0 0.0
        %1822 = vmatpush1.xpose.msra.mxu0 0.0
        %1823 = vmatprep.subr.mxu0 0.0
        %1824 = vmatpush1.xpose.msra.mxu0 0.0
        %1825 = vmatprep.subr.mxu0 0.0
        %1826 = vmatpush1.xpose.msra.mxu0 0.0
        %1827 = vmatprep.subr.mxu0 0.0
        %1828 = vmatpush1.xpose.msra.mxu0 0.0
        %1829 = vmatprep.subr.mxu0 0.0
        %1830 = vmatpush1.xpose.msra.mxu0 0.0
        %1831 = vmatprep.subr.mxu0 0.0
        %1832 = vmatpush1.xpose.msra.mxu0 0.0
        %1833 = vmatprep.subr.mxu0 0.0
        %1834 = vmatpush1.xpose.msra.mxu0 0.0
        %1835 = vmatprep.subr.mxu0 0.0
        %1836 = vmatpush1.xpose.msra.mxu0 0.0
        %1837 = vmatprep.subr.mxu0 0.0
        %1838 = vmatpush1.xpose.msra.mxu0 0.0
        %1839 = vmatprep.subr.mxu0 0.0
        %1840 = vmatpush1.xpose.msra.mxu0 %v1809
        %1841 = vmatprep.subr.mxu0 0.0
        %1842 = vmatpush1.xpose.msra.mxu0 %v1806
        %1843 = vmatprep.subr.mxu0 0.0
        %1844 = vmatpush2.xpose.msra.mxu0 0.0
        %1845 = vmatprep.subr.mxu0 0.0
        %1846 = vmatpush2.xpose.msra.mxu0 0.0
        %1847 = vmatprep.subr.mxu0 0.0
        %1848 = vmatpush2.xpose.msra.mxu0 0.0
        %1849 = vmatprep.subr.mxu0 0.0
        %1850 = vmatpush2.xpose.msra.mxu0 0.0
        %1851 = vmatprep.subr.mxu0 0.0
        %1852 = vmatpush2.xpose.msra.mxu0 0.0
        %1853 = vmatprep.subr.mxu0 0.0
        %1854 = vmatpush2.xpose.msra.mxu0 0.0
        %1855 = vmatprep.subr.mxu0 0.0
        %1856 = vmatpush2.xpose.msra.mxu0 0.0
        %1857 = vmatprep.subr.mxu0 0.0
        %1858 = vmatpush2.xpose.msra.mxu0 0.0
        %1859 = vmatprep.subr.mxu0 0.0
        %1860 = vmatpush2.xpose.msra.mxu0 0.0
        %1861 = vmatprep.subr.mxu0 0.0
        %1862 = vmatpush2.xpose.msra.mxu0 0.0
        %1863 = vmatprep.subr.mxu0 0.0
        %1864 = vmatpush2.xpose.msra.mxu0 0.0
        %1865 = vmatprep.subr.mxu0 0.0
        %1866 = vmatpush2.xpose.msra.mxu0 0.0
        %1867 = vmatprep.subr.mxu0 0.0
        %1868 = vmatpush2.xpose.msra.mxu0 0.0
        %1869 = vmatprep.subr.mxu0 0.0
        %1870 = vmatpush2.xpose.msra.mxu0 0.0
        %1871 = vmatprep.subr.mxu0 0.0
        %1872 = vmatpush2.xpose.msra.mxu0 0.0
        %1873 = vmatprep.subr.mxu0 0.0
        %1874 = vmatpush2.xpose.msra.mxu0 0.0
        %1875 = vmatprep.mubr.f32.mxu0 0.0
        %1876 = vmatmul.mubr.f32.gmra.mxu0 %v1803
        %v1877 = vpop.f32.mrf.mxu0
        %v1878 = vadd.f32 0.0, %v1877
        %v1879 = vpop.f32.mrf.mxu0
        %1880 = vdwg.mxu0
        %vm1881 = vcmask 130048
        %v1882 = vsel %vm1881, %v1641, -inf
        %1883 = vmax.xlane.f32.xlu0 %v1882
        %v1884 = vpop.xlane.xlu0 %1883
        %v1885 = vsel %vm1881, %v1720, -inf
        %1886 = vmax.xlane.f32.xlu0 %v1885
        %v1887 = vpop.xlane.xlu0 %1886
        %v1888 = vsel %vm1881, %v1799, -inf
        %1889 = vmax.xlane.f32.xlu0 %v1888
        %v1890 = vpop.xlane.xlu0 %1889
        %v1891 = vsel %vm1881, %v1878, -inf
        %1892 = vmax.xlane.f32.xlu0 %v1891
        %v1893 = vpop.xlane.xlu0 %1892
        %v1894 = vsub.f32 %v1641, %v1884
        %v1895 = vsub.f32 %v1720, %v1887
        %v1896 = vsub.f32 %v1799, %v1890
        %v1897 = vsub.f32 %v1878, %v1893
        %v1898 = vmul.f32 %v1894, 1.442695
        %v1899 = vpow.pop %v1898
        %v1900 = vmul.f32 %v1895, 1.442695
        %v1901 = vpow.pop %v1900
        %v1902 = vmul.f32 %v1896, 1.442695
        %v1903 = vpow.pop %v1902
        %v1904 = vmul.f32 %v1897, 1.442695
        %v1905 = vpow.pop %v1904
        %v1906 = vsel %vm1881, %v1899, 0.0
        %1907 = vadd.xlane.f32.xlu0 %v1906
        %v1908 = vpop.xlane.xlu0 %1907
        %v1909 = vsel %vm1881, %v1901, 0.0
        %1910 = vadd.xlane.f32.xlu0 %v1909
        %v1911 = vpop.xlane.xlu0 %1910
        %v1912 = vsel %vm1881, %v1903, 0.0
        %1913 = vadd.xlane.f32.xlu0 %v1912
        %v1914 = vpop.xlane.xlu0 %1913
        %v1915 = vsel %vm1881, %v1905, 0.0
        %1916 = vadd.xlane.f32.xlu0 %v1915
        %v1917 = vpop.xlane.xlu0 %1916
        %v1919 = vsel %vm1881, %v1899, 0
        %1921 = vmatprep.subr.mxu0 0.0
        %1922 = vmatpush1.msra.mxu0 0.0
        %1923 = vmatprep.subr.mxu0 0.0
        %1924 = vmatpush1.msra.mxu0 0.0
        %1925 = vmatprep.subr.mxu0 0.0
        %1926 = vmatpush1.msra.mxu0 0.0
        %1927 = vmatprep.subr.mxu0 0.0
        %1928 = vmatpush1.msra.mxu0 0.0
        %1929 = vmatprep.subr.mxu0 0.0
        %1930 = vmatpush1.msra.mxu0 0.0
        %1931 = vmatprep.subr.mxu0 0.0
        %1932 = vmatpush1.msra.mxu0 0.0
        %1933 = vmatprep.subr.mxu0 0.0
        %1934 = vmatpush1.msra.mxu0 0.0
        %1935 = vmatprep.subr.mxu0 0.0
        %1936 = vmatpush1.msra.mxu0 0.0
        %1937 = vmatprep.subr.mxu0 0.0
        %1938 = vmatpush1.msra.mxu0 0.0
        %1939 = vmatprep.subr.mxu0 0.0
        %1940 = vmatpush1.msra.mxu0 0.0
        %1941 = vmatprep.subr.mxu0 0.0
        %1942 = vmatpush1.msra.mxu0 0.0
        %1943 = vmatprep.subr.mxu0 0.0
        %1944 = vmatpush1.msra.mxu0 0.0
        %1945 = vmatprep.subr.mxu0 0.0
        %1946 = vmatpush1.msra.mxu0 0.0
        %1947 = vmatprep.subr.mxu0 0.0
        %1948 = vmatpush1.msra.mxu0 0.0
        %1949 = vmatprep.subr.mxu0 0.0
        %1950 = vmatpush1.msra.mxu0 %v1557
        %1951 = vmatprep.subr.mxu0 0.0
        %1952 = vmatpush1.msra.mxu0 %v1556
        %1953 = vmatprep.subr.mxu0 0.0
        %1954 = vmatpush2.msra.mxu0 0.0
        %1955 = vmatprep.subr.mxu0 0.0
        %1956 = vmatpush2.msra.mxu0 0.0
        %1957 = vmatprep.subr.mxu0 0.0
        %1958 = vmatpush2.msra.mxu0 0.0
        %1959 = vmatprep.subr.mxu0 0.0
        %1960 = vmatpush2.msra.mxu0 0.0
        %1961 = vmatprep.subr.mxu0 0.0
        %1962 = vmatpush2.msra.mxu0 0.0
        %1963 = vmatprep.subr.mxu0 0.0
        %1964 = vmatpush2.msra.mxu0 0.0
        %1965 = vmatprep.subr.mxu0 0.0
        %1966 = vmatpush2.msra.mxu0 0.0
        %1967 = vmatprep.subr.mxu0 0.0
        %1968 = vmatpush2.msra.mxu0 0.0
        %1969 = vmatprep.subr.mxu0 0.0
        %1970 = vmatpush2.msra.mxu0 0.0
        %1971 = vmatprep.subr.mxu0 0.0
        %1972 = vmatpush2.msra.mxu0 0.0
        %1973 = vmatprep.subr.mxu0 0.0
        %1974 = vmatpush2.msra.mxu0 0.0
        %1975 = vmatprep.subr.mxu0 0.0
        %1976 = vmatpush2.msra.mxu0 0.0
        %1977 = vmatprep.subr.mxu0 0.0
        %1978 = vmatpush2.msra.mxu0 0.0
        %1979 = vmatprep.subr.mxu0 0.0
        %1980 = vmatpush2.msra.mxu0 0.0
        %1981 = vmatprep.subr.mxu0 0.0
        %1982 = vmatpush2.msra.mxu0 0.0
        %1983 = vmatprep.subr.mxu0 0.0
        %1984 = vmatpush2.msra.mxu0 0.0
        %1985 = vmatprep.mubr.f32.mxu0 0.0
        %1986 = vmatmul.mubr.f32.gmra.mxu0 %v1919
        %v1987 = vpop.f32.mrf.mxu0
        %v1988 = vadd.f32 0.0, %v1987
        %v1989 = vpop.f32.mrf.mxu0
        %1990 = vdwg.mxu0
        %v1992 = vsel %vm1881, %v1901, 0
        %1994 = vmatprep.subr.mxu0 0.0
        %1995 = vmatpush1.msra.mxu0 0.0
        %1996 = vmatprep.subr.mxu0 0.0
        %1997 = vmatpush1.msra.mxu0 0.0
        %1998 = vmatprep.subr.mxu0 0.0
        %1999 = vmatpush1.msra.mxu0 0.0
        %2000 = vmatprep.subr.mxu0 0.0
        %2001 = vmatpush1.msra.mxu0 0.0
        %2002 = vmatprep.subr.mxu0 0.0
        %2003 = vmatpush1.msra.mxu0 0.0
        %2004 = vmatprep.subr.mxu0 0.0
        %2005 = vmatpush1.msra.mxu0 0.0
        %2006 = vmatprep.subr.mxu0 0.0
        %2007 = vmatpush1.msra.mxu0 0.0
        %2008 = vmatprep.subr.mxu0 0.0
        %2009 = vmatpush1.msra.mxu0 0.0
        %2010 = vmatprep.subr.mxu0 0.0
        %2011 = vmatpush1.msra.mxu0 0.0
        %2012 = vmatprep.subr.mxu0 0.0
        %2013 = vmatpush1.msra.mxu0 0.0
        %2014 = vmatprep.subr.mxu0 0.0
        %2015 = vmatpush1.msra.mxu0 0.0
        %2016 = vmatprep.subr.mxu0 0.0
        %2017 = vmatpush1.msra.mxu0 0.0
        %2018 = vmatprep.subr.mxu0 0.0
        %2019 = vmatpush1.msra.mxu0 0.0
        %2020 = vmatprep.subr.mxu0 0.0
        %2021 = vmatpush1.msra.mxu0 0.0
        %2022 = vmatprep.subr.mxu0 0.0
        %2023 = vmatpush1.msra.mxu0 %v1559
        %2024 = vmatprep.subr.mxu0 0.0
        %2025 = vmatpush1.msra.mxu0 %v1558
        %2026 = vmatprep.subr.mxu0 0.0
        %2027 = vmatpush2.msra.mxu0 0.0
        %2028 = vmatprep.subr.mxu0 0.0
        %2029 = vmatpush2.msra.mxu0 0.0
        %2030 = vmatprep.subr.mxu0 0.0
        %2031 = vmatpush2.msra.mxu0 0.0
        %2032 = vmatprep.subr.mxu0 0.0
        %2033 = vmatpush2.msra.mxu0 0.0
        %2034 = vmatprep.subr.mxu0 0.0
        %2035 = vmatpush2.msra.mxu0 0.0
        %2036 = vmatprep.subr.mxu0 0.0
        %2037 = vmatpush2.msra.mxu0 0.0
        %2038 = vmatprep.subr.mxu0 0.0
        %2039 = vmatpush2.msra.mxu0 0.0
        %2040 = vmatprep.subr.mxu0 0.0
        %2041 = vmatpush2.msra.mxu0 0.0
        %2042 = vmatprep.subr.mxu0 0.0
        %2043 = vmatpush2.msra.mxu0 0.0
        %2044 = vmatprep.subr.mxu0 0.0
        %2045 = vmatpush2.msra.mxu0 0.0
        %2046 = vmatprep.subr.mxu0 0.0
        %2047 = vmatpush2.msra.mxu0 0.0
        %2048 = vmatprep.subr.mxu0 0.0
        %2049 = vmatpush2.msra.mxu0 0.0
        %2050 = vmatprep.subr.mxu0 0.0
        %2051 = vmatpush2.msra.mxu0 0.0
        %2052 = vmatprep.subr.mxu0 0.0
        %2053 = vmatpush2.msra.mxu0 0.0
        %2054 = vmatprep.subr.mxu0 0.0
        %2055 = vmatpush2.msra.mxu0 0.0
        %2056 = vmatprep.subr.mxu0 0.0
        %2057 = vmatpush2.msra.mxu0 0.0
        %2058 = vmatprep.mubr.f32.mxu0 0.0
        %2059 = vmatmul.mubr.f32.gmra.mxu0 %v1992
        %v2060 = vpop.f32.mrf.mxu0
        %v2061 = vadd.f32 0.0, %v2060
        %v2062 = vpop.f32.mrf.mxu0
        %2063 = vdwg.mxu0
        %v2065 = vsel %vm1881, %v1903, 0
        %2067 = vmatprep.subr.mxu0 0.0
        %2068 = vmatpush1.msra.mxu0 0.0
        %2069 = vmatprep.subr.mxu0 0.0
        %2070 = vmatpush1.msra.mxu0 0.0
        %2071 = vmatprep.subr.mxu0 0.0
        %2072 = vmatpush1.msra.mxu0 0.0
        %2073 = vmatprep.subr.mxu0 0.0
        %2074 = vmatpush1.msra.mxu0 0.0
        %2075 = vmatprep.subr.mxu0 0.0
        %2076 = vmatpush1.msra.mxu0 0.0
        %2077 = vmatprep.subr.mxu0 0.0
        %2078 = vmatpush1.msra.mxu0 0.0
        %2079 = vmatprep.subr.mxu0 0.0
        %2080 = vmatpush1.msra.mxu0 0.0
        %2081 = vmatprep.subr.mxu0 0.0
        %2082 = vmatpush1.msra.mxu0 0.0
        %2083 = vmatprep.subr.mxu0 0.0
        %2084 = vmatpush1.msra.mxu0 0.0
        %2085 = vmatprep.subr.mxu0 0.0
        %2086 = vmatpush1.msra.mxu0 0.0
        %2087 = vmatprep.subr.mxu0 0.0
        %2088 = vmatpush1.msra.mxu0 0.0
        %2089 = vmatprep.subr.mxu0 0.0
        %2090 = vmatpush1.msra.mxu0 0.0
        %2091 = vmatprep.subr.mxu0 0.0
        %2092 = vmatpush1.msra.mxu0 0.0
        %2093 = vmatprep.subr.mxu0 0.0
        %2094 = vmatpush1.msra.mxu0 0.0
        %2095 = vmatprep.subr.mxu0 0.0
        %2096 = vmatpush1.msra.mxu0 %v1561
        %2097 = vmatprep.subr.mxu0 0.0
        %2098 = vmatpush1.msra.mxu0 %v1560
        %2099 = vmatprep.subr.mxu0 0.0
        %2100 = vmatpush2.msra.mxu0 0.0
        %2101 = vmatprep.subr.mxu0 0.0
        %2102 = vmatpush2.msra.mxu0 0.0
        %2103 = vmatprep.subr.mxu0 0.0
        %2104 = vmatpush2.msra.mxu0 0.0
        %2105 = vmatprep.subr.mxu0 0.0
        %2106 = vmatpush2.msra.mxu0 0.0
        %2107 = vmatprep.subr.mxu0 0.0
        %2108 = vmatpush2.msra.mxu0 0.0
        %2109 = vmatprep.subr.mxu0 0.0
        %2110 = vmatpush2.msra.mxu0 0.0
        %2111 = vmatprep.subr.mxu0 0.0
        %2112 = vmatpush2.msra.mxu0 0.0
        %2113 = vmatprep.subr.mxu0 0.0
        %2114 = vmatpush2.msra.mxu0 0.0
        %2115 = vmatprep.subr.mxu0 0.0
        %2116 = vmatpush2.msra.mxu0 0.0
        %2117 = vmatprep.subr.mxu0 0.0
        %2118 = vmatpush2.msra.mxu0 0.0
        %2119 = vmatprep.subr.mxu0 0.0
        %2120 = vmatpush2.msra.mxu0 0.0
        %2121 = vmatprep.subr.mxu0 0.0
        %2122 = vmatpush2.msra.mxu0 0.0
        %2123 = vmatprep.subr.mxu0 0.0
        %2124 = vmatpush2.msra.mxu0 0.0
        %2125 = vmatprep.subr.mxu0 0.0
        %2126 = vmatpush2.msra.mxu0 0.0
        %2127 = vmatprep.subr.mxu0 0.0
        %2128 = vmatpush2.msra.mxu0 0.0
        %2129 = vmatprep.subr.mxu0 0.0
        %2130 = vmatpush2.msra.mxu0 0.0
        %2131 = vmatprep.mubr.f32.mxu0 0.0
        %2132 = vmatmul.mubr.f32.gmra.mxu0 %v2065
        %v2133 = vpop.f32.mrf.mxu0
        %v2134 = vadd.f32 0.0, %v2133
        %v2135 = vpop.f32.mrf.mxu0
        %2136 = vdwg.mxu0
        %v2138 = vsel %vm1881, %v1905, 0
        %2140 = vmatprep.subr.mxu0 0.0
        %2141 = vmatpush1.msra.mxu0 0.0
        %2142 = vmatprep.subr.mxu0 0.0
        %2143 = vmatpush1.msra.mxu0 0.0
        %2144 = vmatprep.subr.mxu0 0.0
        %2145 = vmatpush1.msra.mxu0 0.0
        %2146 = vmatprep.subr.mxu0 0.0
        %2147 = vmatpush1.msra.mxu0 0.0
        %2148 = vmatprep.subr.mxu0 0.0
        %2149 = vmatpush1.msra.mxu0 0.0
        %2150 = vmatprep.subr.mxu0 0.0
        %2151 = vmatpush1.msra.mxu0 0.0
        %2152 = vmatprep.subr.mxu0 0.0
        %2153 = vmatpush1.msra.mxu0 0.0
        %2154 = vmatprep.subr.mxu0 0.0
        %2155 = vmatpush1.msra.mxu0 0.0
        %2156 = vmatprep.subr.mxu0 0.0
        %2157 = vmatpush1.msra.mxu0 0.0
        %2158 = vmatprep.subr.mxu0 0.0
        %2159 = vmatpush1.msra.mxu0 0.0
        %2160 = vmatprep.subr.mxu0 0.0
        %2161 = vmatpush1.msra.mxu0 0.0
        %2162 = vmatprep.subr.mxu0 0.0
        %2163 = vmatpush1.msra.mxu0 0.0
        %2164 = vmatprep.subr.mxu0 0.0
        %2165 = vmatpush1.msra.mxu0 0.0
        %2166 = vmatprep.subr.mxu0 0.0
        %2167 = vmatpush1.msra.mxu0 0.0
        %2168 = vmatprep.subr.mxu0 0.0
        %2169 = vmatpush1.msra.mxu0 %v1563
        %2170 = vmatprep.subr.mxu0 0.0
        %2171 = vmatpush1.msra.mxu0 %v1562
        %2172 = vmatprep.subr.mxu0 0.0
        %2173 = vmatpush2.msra.mxu0 0.0
        %2174 = vmatprep.subr.mxu0 0.0
        %2175 = vmatpush2.msra.mxu0 0.0
        %2176 = vmatprep.subr.mxu0 0.0
        %2177 = vmatpush2.msra.mxu0 0.0
        %2178 = vmatprep.subr.mxu0 0.0
        %2179 = vmatpush2.msra.mxu0 0.0
        %2180 = vmatprep.subr.mxu0 0.0
        %2181 = vmatpush2.msra.mxu0 0.0
        %2182 = vmatprep.subr.mxu0 0.0
        %2183 = vmatpush2.msra.mxu0 0.0
        %2184 = vmatprep.subr.mxu0 0.0
        %2185 = vmatpush2.msra.mxu0 0.0
        %2186 = vmatprep.subr.mxu0 0.0
        %2187 = vmatpush2.msra.mxu0 0.0
        %2188 = vmatprep.subr.mxu0 0.0
        %2189 = vmatpush2.msra.mxu0 0.0
        %2190 = vmatprep.subr.mxu0 0.0
        %2191 = vmatpush2.msra.mxu0 0.0
        %2192 = vmatprep.subr.mxu0 0.0
        %2193 = vmatpush2.msra.mxu0 0.0
        %2194 = vmatprep.subr.mxu0 0.0
        %2195 = vmatpush2.msra.mxu0 0.0
        %2196 = vmatprep.subr.mxu0 0.0
        %2197 = vmatpush2.msra.mxu0 0.0
        %2198 = vmatprep.subr.mxu0 0.0
        %2199 = vmatpush2.msra.mxu0 0.0
        %2200 = vmatprep.subr.mxu0 0.0
        %2201 = vmatpush2.msra.mxu0 0.0
        %2202 = vmatprep.subr.mxu0 0.0
        %2203 = vmatpush2.msra.mxu0 0.0
        %2204 = vmatprep.mubr.f32.mxu0 0.0
        %2205 = vmatmul.mubr.f32.gmra.mxu0 %v2138
        %v2206 = vpop.f32.mrf.mxu0
        %v2207 = vadd.f32 0.0, %v2206
        %v2208 = vpop.f32.mrf.mxu0
        %2209 = vdwg.mxu0
        %v2210 = vrcp.pop %v1908
        %v2211 = vrcp.pop %v1911
        %v2212 = vrcp.pop %v1914
        %v2213 = vrcp.pop %v1917
        %v2214 = vmul.f32 %v1988, %v2210
        %v2215 = vmul.f32 %v2061, %v2211
        %v2216 = vmul.f32 %v2134, %v2212
        %v2217 = vmul.f32 %v2207, %v2213
        %v2218 = vcombine.low %v2214, %v2216
        %v2219 = vcombine.high %v2214, %v2216
        %v2221 = vunpack.c.l.s4 1983009808
        %v2222 = vunpack.c.0.s8 %v2221
        %v2223 = vlaneseq
        %v2224 = vshrl.u32 %v2223, 7
        %v2225 = vsub.s32 %v2222, %v2224
        %v2226 = vrot.slane %v2218, %v2225
        %v2228 = vunpack.c.l.s4 1983009808
        %v2229 = vunpack.c.0.s8 %v2228
        %v2230 = vlaneseq
        %v2231 = vshrl.u32 %v2230, 7
        %v2232 = vsub.s32 %v2229, %v2231
        %v2233 = vrot.slane %v2219, %v2232
        %v2234 = vcombine.low %v2215, %v2217
        %v2235 = vcombine.high %v2215, %v2217
        %v2237 = vunpack.c.l.s4 1983009808
        %v2238 = vunpack.c.0.s8 %v2237
        %v2239 = vlaneseq
        %v2240 = vshrl.u32 %v2239, 7
        %v2241 = vsub.s32 %v2238, %v2240
        %v2242 = vrot.slane %v2234, %v2241
        %v2244 = vunpack.c.l.s4 1983009808
        %v2245 = vunpack.c.0.s8 %v2244
        %v2246 = vlaneseq
        %v2247 = vshrl.u32 %v2246, 7
        %v2248 = vsub.s32 %v2245, %v2247
        %v2249 = vrot.slane %v2235, %v2248
        %v2250 = vcombine.low %v2226, %v2242
        %v2251 = vcombine.high %v2226, %v2242
        %v2253 = vunpack.c.l.s4 1934713408
        %v2254 = vunpack.c.0.s8 %v2253
        %v2255 = vlaneseq
        %v2256 = vshrl.u32 %v2255, 7
        %v2257 = vsub.s32 %v2254, %v2256
        %v2258 = vrot.slane %v2250, %v2257
        %v2260 = vunpack.c.l.s4 1934713408
        %v2261 = vunpack.c.0.s8 %v2260
        %v2262 = vlaneseq
        %v2263 = vshrl.u32 %v2262, 7
        %v2264 = vsub.s32 %v2261, %v2263
        %v2265 = vrot.slane %v2251, %v2264
        %v2266 = vcombine.low %v2233, %v2249
        %v2267 = vcombine.high %v2233, %v2249
        %v2269 = vunpack.c.l.s4 1934713408
        %v2270 = vunpack.c.0.s8 %v2269
        %v2271 = vlaneseq
        %v2272 = vshrl.u32 %v2271, 7
        %v2273 = vsub.s32 %v2270, %v2272
        %v2274 = vrot.slane %v2266, %v2273
        %v2276 = vunpack.c.l.s4 1934713408
        %v2277 = vunpack.c.0.s8 %v2276
        %v2278 = vlaneseq
        %v2279 = vshrl.u32 %v2278, 7
        %v2280 = vsub.s32 %v2277, %v2279
        %v2281 = vrot.slane %v2267, %v2280
        %v2282 = vcombine.high %v2258, 0.0
        %v2283 = vcombine.high %v2265, 0.0
        %v2284 = vcombine.high %v2274, 0.0
        %v2285 = vcombine.high %v2281, 0.0
        %v2286 = vcombine.low %v2258, %v2265
        %v2288 = vunpack.c.l.s4 1983009808
        %v2289 = vunpack.c.0.s8 %v2288
        %v2290 = vlaneseq
        %v2291 = vshrl.u32 %v2290, 7
        %v2292 = vsub.s32 %v2289, %v2291
        %v2293 = vrot.slane %v2286, %v2292
        %v2294 = vcombine.low %v2282, %v2283
        %v2296 = vunpack.c.l.s4 1983009808
        %v2297 = vunpack.c.0.s8 %v2296
        %v2298 = vlaneseq
        %v2299 = vshrl.u32 %v2298, 7
        %v2300 = vsub.s32 %v2297, %v2299
        %v2301 = vrot.slane %v2294, %v2300
        %v2302 = vcombine.low %v2274, %v2281
        %v2304 = vunpack.c.l.s4 1983009808
        %v2305 = vunpack.c.0.s8 %v2304
        %v2306 = vlaneseq
        %v2307 = vshrl.u32 %v2306, 7
        %v2308 = vsub.s32 %v2305, %v2307
        %v2309 = vrot.slane %v2302, %v2308
        %v2310 = vcombine.low %v2284, %v2285
        %v2312 = vunpack.c.l.s4 1983009808
        %v2313 = vunpack.c.0.s8 %v2312
        %v2314 = vlaneseq
        %v2315 = vshrl.u32 %v2314, 7
        %v2316 = vsub.s32 %v2313, %v2315
        %v2317 = vrot.slane %v2310, %v2316
        %v2318 = vcombine.low %v2293, %v2301
        %v2319 = vcombine.high %v2293, %v2301
        %v2321 = vunpack.c.l.s4 1934713408
        %v2322 = vunpack.c.0.s8 %v2321
        %v2323 = vlaneseq
        %v2324 = vshrl.u32 %v2323, 7
        %v2325 = vsub.s32 %v2322, %v2324
        %v2326 = vrot.slane %v2318, %v2325
        %v2328 = vunpack.c.l.s4 1934713408
        %v2329 = vunpack.c.0.s8 %v2328
        %v2330 = vlaneseq
        %v2331 = vshrl.u32 %v2330, 7
        %v2332 = vsub.s32 %v2329, %v2331
        %v2333 = vrot.slane %v2319, %v2332
        %v2334 = vcombine.low %v2309, %v2317
        %v2335 = vcombine.high %v2309, %v2317
        %v2337 = vunpack.c.l.s4 1934713408
        %v2338 = vunpack.c.0.s8 %v2337
        %v2339 = vlaneseq
        %v2340 = vshrl.u32 %v2339, 7
        %v2341 = vsub.s32 %v2338, %v2340
        %v2342 = vrot.slane %v2334, %v2341
        %v2344 = vunpack.c.l.s4 1934713408
        %v2345 = vunpack.c.0.s8 %v2344
        %v2346 = vlaneseq
        %v2347 = vshrl.u32 %v2346, 7
        %v2348 = vsub.s32 %v2345, %v2347
        %v2349 = vrot.slane %v2335, %v2348
        %v2350 = vcombine.low %v2326, %v2342
        %v2351 = vcombine.high %v2326, %v2342
        %v2352 = vcombine.low %v2333, %v2349
        %v2353 = vcombine.high %v2333, %v2349
        %2355 = vrot.lane.b32.xlu0 %v2351, 8
        %v2356 = vpop.permute.xlu0 %2355
        %2359 = vrot.lane.b32.xlu0 %v2352, 16
        %v2360 = vpop.permute.xlu0 %2359
        %2363 = vrot.lane.b32.xlu0 %v2353, 24
        %v2364 = vpop.permute.xlu0 %2363
        %v2366 = vsel %vm1564, %v2350, %v2356
        %v2367 = vsel %vm1881, %v2366, %v2360
        %vm2368 = vcmask 195584
        %v2369 = vsel %vm2368, %v2367, %v2364
        %v2370 = vld [vmem:[#allocation15] sm:$0xff]
        %v2371 = vld [vmem:[#allocation15 + $0x8] sm:$0xff]
        %v2372 = vld [vmem:[#allocation15 + $0x10] sm:$0xff]
        %v2373 = vld [vmem:[#allocation15 + $0x18] sm:$0xff]
        %v2374 = vld [vmem:[%s10] sm:$0x1]
        %v2376 = vlaneseq
        %v2377 = vshrl.u32 %v2376, 7
        %v2378 = vsub.s32 0, %v2377
        %v2379 = vrot.slane %v2374, %v2378
        %v2382 = vsel %vm1328, %v2369, 0
        %2384 = vmatprep.subr.mxu0 0.0
        %2385 = vmatpush1.msra.mxu0 0.0
        %2386 = vmatprep.subr.mxu0 0.0
        %2387 = vmatpush1.msra.mxu0 0.0
        %2388 = vmatprep.subr.mxu0 0.0
        %2389 = vmatpush1.msra.mxu0 0.0
        %2390 = vmatprep.subr.mxu0 0.0
        %2391 = vmatpush1.msra.mxu0 0.0
        %2392 = vmatprep.subr.mxu0 0.0
        %2393 = vmatpush1.msra.mxu0 0.0
        %2394 = vmatprep.subr.mxu0 0.0
        %2395 = vmatpush1.msra.mxu0 0.0
        %2396 = vmatprep.subr.mxu0 0.0
        %2397 = vmatpush1.msra.mxu0 0.0
        %2398 = vmatprep.subr.mxu0 0.0
        %2399 = vmatpush1.msra.mxu0 0.0
        %2400 = vmatprep.subr.mxu0 0.0
        %2401 = vmatpush1.msra.mxu0 0.0
        %2402 = vmatprep.subr.mxu0 0.0
        %2403 = vmatpush1.msra.mxu0 0.0
        %2404 = vmatprep.subr.mxu0 0.0
        %2405 = vmatpush1.msra.mxu0 0.0
        %2406 = vmatprep.subr.mxu0 0.0
        %2407 = vmatpush1.msra.mxu0 0.0
        %2408 = vmatprep.subr.mxu0 0.0
        %2409 = vmatpush1.msra.mxu0 %v2373
        %2410 = vmatprep.subr.mxu0 0.0
        %2411 = vmatpush1.msra.mxu0 %v2372
        %2412 = vmatprep.subr.mxu0 0.0
        %2413 = vmatpush1.msra.mxu0 %v2371
        %2414 = vmatprep.subr.mxu0 0.0
        %2415 = vmatpush1.msra.mxu0 %v2370
        %2416 = vmatprep.subr.mxu0 0.0
        %2417 = vmatpush2.msra.mxu0 0.0
        %2418 = vmatprep.subr.mxu0 0.0
        %2419 = vmatpush2.msra.mxu0 0.0
        %2420 = vmatprep.subr.mxu0 0.0
        %2421 = vmatpush2.msra.mxu0 0.0
        %2422 = vmatprep.subr.mxu0 0.0
        %2423 = vmatpush2.msra.mxu0 0.0
        %2424 = vmatprep.subr.mxu0 0.0
        %2425 = vmatpush2.msra.mxu0 0.0
        %2426 = vmatprep.subr.mxu0 0.0
        %2427 = vmatpush2.msra.mxu0 0.0
        %2428 = vmatprep.subr.mxu0 0.0
        %2429 = vmatpush2.msra.mxu0 0.0
        %2430 = vmatprep.subr.mxu0 0.0
        %2431 = vmatpush2.msra.mxu0 0.0
        %2432 = vmatprep.subr.mxu0 0.0
        %2433 = vmatpush2.msra.mxu0 0.0
        %2434 = vmatprep.subr.mxu0 0.0
        %2435 = vmatpush2.msra.mxu0 0.0
        %2436 = vmatprep.subr.mxu0 0.0
        %2437 = vmatpush2.msra.mxu0 0.0
        %2438 = vmatprep.subr.mxu0 0.0
        %2439 = vmatpush2.msra.mxu0 0.0
        %2440 = vmatprep.subr.mxu0 0.0
        %2441 = vmatpush2.msra.mxu0 0.0
        %2442 = vmatprep.subr.mxu0 0.0
        %2443 = vmatpush2.msra.mxu0 0.0
        %2444 = vmatprep.subr.mxu0 0.0
        %2445 = vmatpush2.msra.mxu0 0.0
        %2446 = vmatprep.subr.mxu0 0.0
        %2447 = vmatpush2.msra.mxu0 0.0
        %2448 = vmatprep.mubr.f32.mxu0 0.0
        %2449 = vmatmul.mubr.f32.gmra.mxu0 %v2382
        %v2450 = vpop.f32.mrf.mxu0
        %v2451 = vadd.f32 %v2379, %v2450
        %v2452 = vpop.f32.mrf.mxu0
        %2453 = vdwg.mxu0
        %2454 = vst.msk [vmem:[%s521] sm:$0xff] %vm1328, %v2451
        %s2455 = sand.u32 %s301, 1
        %s2456 = scalar_lea.sflag [#allocation6], %s2455
        %s2457 = sand.u32 %s301, 1
        %s2458 = smul.addr %s2457, 8
        %s2459 = scalar_lea.vmem [#allocation16], %s2458
        // Predicated region
        $region97: #{tpu_custom_call.1} parent=63 // pred_check
          %p2460 = pneg %p311
        $region98: #{tpu_custom_call.1} parent=63 // pred_check_branch
          %2462 = sbr.rel (%p2460) target = $region100
        $region99: #{tpu_custom_call.1} parent=63 // pred_region
          %s2464 = ssub.s32 128, 128
          %2465 = vsyncadd %s2456, %s2464
          %s2466 = sadd.s32 %s36, %s35
          %s2467 = smul.addr %s2466, 128
          %s2468 = scalar_lea.hbm %s11, %s2467
          %s2470 = sshll.u32 %s2459, 4
          %s2471 = int_to_ptr.vmem [resolvable:$true] %s2470
          %2473 = dma.vmem_to_hbm [thread:$0]  %s2471, 128, %s2468, %s2456
        $region100: #{tpu_custom_call.1} parent=63 // pred_fallthru
          _
      $region64: #{tpu_custom_call.1} parent=5 // pred_fallthru
        _
      %p2474 = scmp.le.s32.totalorder 2, %s26
      // Predicated region
      $region101: #{tpu_custom_call.1} parent=5 // pred_check
        %p2475 = pneg %p2474
      $region102: #{tpu_custom_call.1} parent=5 // pred_check_branch
        %2477 = sbr.rel (%p2475) target = $region104
      $region103: #{tpu_custom_call.1} parent=5 // pred_region
        %s2478 = ssub.s32 %s26, 2
        // Predicated region
        $region105: #{tpu_custom_call.1} parent=103 // pred_check
          %p2479 = pneg %p317
        $region106: #{tpu_custom_call.1} parent=103 // pred_check_branch
          %2481 = sbr.rel (%p2479) target = $region108
        $region107: #{tpu_custom_call.1} parent=103 // pred_region
          %s2482 = sand.u32 %s302, 1
          %s2483 = scalar_lea.sflag [#allocation6], %s2482
          %s2484 = sand.u32 %s302, 1
          %s2485 = smul.addr %s2484, 8
          %s2486 = scalar_lea.vmem [#allocation16], %s2485
          %2487 = dma.done %s2483, 128
        $region108: #{tpu_custom_call.1} parent=103 // pred_fallthru
          _
      $region104: #{tpu_custom_call.1} parent=5 // pred_fallthru
        _
    $region6: #{tpu_custom_call.1} parent=1 // loop_footer
      %s30 = sadd.s32 1, %s26
    $region7: #{tpu_custom_call.1} parent=1 // loop_footer_branch
      %25 = sbr.rel target = $region3
    $region8: #{tpu_custom_call.1} parent=1 // loop_exit
      _
    %2488 = vsyncpa [#allocation5], 1
    %s2489 = scalar_lea.sflag [#allocation5], 1
    %2490 = vsyncpa %s2489, 1
    %2491 = vsyncpa [#allocation8], 1
    %2492 = vsyncpa [#allocation11], 1
    %2493 = vsyncpa [#allocation14], 1
    %2494 = vsyncpa [#allocation6], 1
    %s2495 = scalar_lea.sflag [#allocation6], 1
    %2496 = vsyncpa %s2495, 1

// kernel: tpu_custom_call.1
$region0: #{tpu_custom_call.1}
  #allocation0 [shape = 'u32[]', space=smem, size = 0x4, offset = 0x4, fixed_abs, tag = 'smem constant byte address 0x4 - core index']
  #allocation1 [shape = 'u32[144,128]{1,0:T(1,128)}', space=vmem, size = 0x12000, scoped, tag = 'internal scratch']
  #allocation2 [shape = 'f32[4,16,8]{2,1,0:T(8,128)}', space=vmem, size = 0x8000, scoped, tag = 'scratch operand']
  #allocation3 [shape = 'f32[4,16,8]{2,1,0:T(8,128)}', space=vmem, size = 0x8000, scoped, tag = 'scratch operand']
  %s0 = inlined_call_operand.hbm [shape: f32[2,8,32], index: 0, kind: input, shape index: {}]
  %s1 = inlined_call_operand.hbm [shape: f32[2,16,32], index: 1, kind: input, shape index: {}]
  %s2 = inlined_call_operand.hbm [shape: f32[2,16,32], index: 2, kind: input, shape index: {}]
  %s3 = inlined_call_operand.hbm [shape: f32[32,32], index: 3, kind: input, shape index: {}]
  %s4 = inlined_call_operand.vmem [shape: f32[1,32], index: 4, kind: input, shape index: {}]
  %s5 = inlined_call_operand.hbm [shape: f32[32,32], index: 5, kind: input, shape index: {}]
  %s6 = inlined_call_operand.vmem [shape: f32[1,32], index: 6, kind: input, shape index: {}]
  %s7 = inlined_call_operand.hbm [shape: f32[32,32], index: 7, kind: input, shape index: {}]
  %s8 = inlined_call_operand.vmem [shape: f32[1,32], index: 8, kind: input, shape index: {}]
  %s9 = inlined_call_operand.hbm [shape: f32[32,32], index: 9, kind: input, shape index: {}]
  %s10 = inlined_call_operand.vmem [shape: f32[1,32], index: 10, kind: input, shape index: {}]
  %s11 = inlined_call_operand.hbm [shape: f32[2,8,32], index: 11, kind: output, shape index: {}]
  %s12 = sld [smem:[#allocation0]]
  $region109: #{tpu_custom_call.1} parent=0
    _
  %s14 = ssub.s32 1, %s12
  %s15 = scalar_select 0, %s14, %s12
  $region1: #{tpu_custom_call.1} parent=0
    #allocation4 [shape = 'u8[8192]{0}', space=vmem, size = 0x2000, scoped, tag = 'input window, operand 0']
    #allocation5 [shape = 's32[2]{0}', space=sflag, size = 0x8, scoped, tag = 'scoped memory for tpu_custom_call.1']
    #allocation6 [shape = 's32[2]{0}', space=sflag, size = 0x8, scoped, tag = 'scoped memory for tpu_custom_call.1']
    #allocation7 [shape = 'u8[16384]{0}', space=vmem, size = 0x4000, scoped, tag = 'input window, operand 1']
    #allocation8 [shape = 's32[2]{0}', space=sflag, size = 0x8, scoped, tag = 'scoped memory for tpu_custom_call.1']
    #allocation9 [shape = 'u8[16384]{0}', space=vmem, size = 0x4000, scoped, tag = 'input window, operand 2']
    #allocation10 [shape = 'u8[16384]{0}', space=vmem, size = 0x4000, scoped, tag = 'input window, operand 3, single buffered']
    #allocation11 [shape = 's32[1]{0}', space=sflag, size = 0x4, scoped, tag = 'scoped memory for tpu_custom_call.1']
    #allocation12 [shape = 'u8[16384]{0}', space=vmem, size = 0x4000, scoped, tag = 'input window, operand 5, single buffered']
    #allocation13 [shape = 'u8[16384]{0}', space=vmem, size = 0x4000, scoped, tag = 'input window, operand 7, single buffered']
    #allocation14 [shape = 's32[1]{0}', space=sflag, size = 0x4, scoped, tag = 'scoped memory for tpu_custom_call.1']
    #allocation15 [shape = 'u8[16384]{0}', space=vmem, size = 0x4000, scoped, tag = 'input window, operand 9, single buffered']
    #allocation16 [shape = 'u8[8192]{0}', space=vmem, size = 0x2000, scoped, tag = 'output window, operand 0']
    %16 = vsyncpa [#allocation5], 0
    %s17 = scalar_lea.sflag [#allocation5], 1
    %18 = vsyncpa %s17, 0
    %19 = vsyncpa [#allocation8], 0
    %s20 = scalar_lea.sflag [#allocation8], 1
    %21 = vsyncpa %s20, 0
    %22 = vsyncpa [#allocation11], 0
    %23 = vsyncpa [#allocation14], 0
    %24 = vsyncpa [#allocation6], 0
    %s25 = scalar_lea.sflag [#allocation6], 1
    %26 = vsyncpa %s25, 0
    loop: start=0, step=1, limit=4
    $region2: #{tpu_custom_call.1} parent=1 // loop_pre_header
      _
    $region3: #{tpu_custom_call.1} parent=1 // loop_header
      %s28 = sphi 0, %s32
      %p29 = scmp.ge.s32.totalorder %s28, 4
      %s35 = sphi 0, %s47
      %s36 = sphi 0, %s43
      %s37 = sphi 0, %s35
      %s38 = sphi 0, %s36
      %s39 = sphi 0, %s37
      %s40 = sphi 0, %s38
      %s52 = sphi 0, %s54
      %s55 = sphi 0, %s52
      %s56 = sphi 0, %s55
      %s72 = sphi 0, %s56
      %s78 = sphi 0, %s80
      %s81 = sphi 0, %s78
      %s82 = sphi 0, %s81
      %s98 = sphi 0, %s82
      %s104 = sphi 0, %s106
      %s107 = sphi 0, %s104
      %s108 = sphi 0, %s107
      %s124 = sphi 0, %s108
      %s128 = sphi 0, %s128
      %s130 = sphi 0, %s128
      %s131 = sphi 0, %s130
      %s145 = sphi 0, %s131
      %s149 = sphi 0, %s149
      %s151 = sphi 0, %s149
      %s152 = sphi 0, %s151
      %s166 = sphi 0, %s152
      %s170 = sphi 0, %s170
      %s172 = sphi 0, %s170
      %s173 = sphi 0, %s172
      %s187 = sphi 0, %s173
      %s191 = sphi 0, %s191
      %s193 = sphi 0, %s191
      %s194 = sphi 0, %s193
      %s208 = sphi 0, %s194
      %s212 = sphi 0, %s212
      %s214 = sphi 0, %s212
      %s215 = sphi 0, %s214
      %s229 = sphi 0, %s215
      %s233 = sphi 0, %s233
      %s235 = sphi 0, %s233
      %s236 = sphi 0, %s235
      %s250 = sphi 0, %s236
      %s254 = sphi 0, %s254
      %s256 = sphi 0, %s254
      %s257 = sphi 0, %s256
      %s271 = sphi 0, %s257
      %s275 = sphi 0, %s275
      %s277 = sphi 0, %s275
      %s278 = sphi 0, %s277
      %s292 = sphi 0, %s278
      %s300 = sphi 0, %s302
      %s303 = sphi 0, %s300
      %s304 = sphi 0, %s303
      %s320 = sphi 0, %s304
    $region4: #{tpu_custom_call.1} parent=1 // loop_header_branch
      %31 = sbr.rel (%p29) target = $region8
    $region5: #{tpu_custom_call.1} parent=1 // loop_body
      %s33 = ssub.s32 %s28, 1
      %s34 = ssub.s32 %s28, 2
      %s41 = sadd.s32 1, %s36
      %p42 = scmp.ge.s32.totalorder %s41, 1
      %s43 = scalar_select %p42, 0, %s41
      %s44 = sadd.s32 1, %s35
      %s45 = scalar_select %p42, %s44, %s35
      %p46 = scmp.ge.s32.totalorder %s45, 2
      %s47 = scalar_select %p46, 0, %s45
      %s48 = ssub.s32 %s35, %s47
      %s49 = ssub.s32 %s36, %s43
      %s50 = sor.u32 %s48, %s49
      %p51 = scmp.eq.s32.totalorder %s50, 0
      %s53 = sadd.s32 %s52, 1
      %s54 = scalar_select %p51, %s52, %s53
      %p57 = pneg %p51
      %p58 = scmp.eq.s32.totalorder %s28, 1
      %p59 = por %p57, %p58
      %p60 = scmp.ne.s32.totalorder %s52, %s55
      %p61 = scmp.eq.s32.totalorder %s28, 0
      %p62 = por %p60, %p61
      %p63 = scmp.ne.s32.totalorder %s52, %s55
      %p64 = scmp.eq.s32.totalorder %s33, 1
      %p65 = por %p63, %p64
      %p66 = scmp.ne.s32.totalorder %s55, %s56
      %p67 = scmp.eq.s32.totalorder %s33, 0
      %p68 = por %p66, %p67
      %p69 = scmp.ne.s32.totalorder %s55, %s56
      %p70 = scmp.eq.s32.totalorder %s34, 1
      %p71 = por %p69, %p70
      %p73 = scmp.ne.s32.totalorder %s56, %s72
      %p74 = scmp.eq.s32.totalorder %s34, 0
      %p75 = por %p73, %p74
      %s76 = ssub.s32 %s35, %s47
      %p77 = scmp.eq.s32.totalorder %s76, 0
      %s79 = sadd.s32 %s78, 1
      %s80 = scalar_select %p77, %s78, %s79
      %p83 = pneg %p77
      %p84 = scmp.eq.s32.totalorder %s28, 1
      %p85 = por %p83, %p84
      %p86 = scmp.ne.s32.totalorder %s78, %s81
      %p87 = scmp.eq.s32.totalorder %s28, 0
      %p88 = por %p86, %p87
      %p89 = scmp.ne.s32.totalorder %s78, %s81
      %p90 = scmp.eq.s32.totalorder %s33, 1
      %p91 = por %p89, %p90
      %p92 = scmp.ne.s32.totalorder %s81, %s82
      %p93 = scmp.eq.s32.totalorder %s33, 0
      %p94 = por %p92, %p93
      %p95 = scmp.ne.s32.totalorder %s81, %s82
      %p96 = scmp.eq.s32.totalorder %s34, 1
      %p97 = por %p95, %p96
      %p99 = scmp.ne.s32.totalorder %s82, %s98
      %p100 = scmp.eq.s32.totalorder %s34, 0
      %p101 = por %p99, %p100
      %s102 = ssub.s32 %s35, %s47
      %p103 = scmp.eq.s32.totalorder %s102, 0
      %s105 = sadd.s32 %s104, 1
      %s106 = scalar_select %p103, %s104, %s105
      %p109 = pneg %p103
      %p110 = scmp.eq.s32.totalorder %s28, 1
      %p111 = por %p109, %p110
      %p112 = scmp.ne.s32.totalorder %s104, %s107
      %p113 = scmp.eq.s32.totalorder %s28, 0
      %p114 = por %p112, %p113
      %p115 = scmp.ne.s32.totalorder %s104, %s107
      %p116 = scmp.eq.s32.totalorder %s33, 1
      %p117 = por %p115, %p116
      %p118 = scmp.ne.s32.totalorder %s107, %s108
      %p119 = scmp.eq.s32.totalorder %s33, 0
      %p120 = por %p118, %p119
      %p121 = scmp.ne.s32.totalorder %s107, %s108
      %p122 = scmp.eq.s32.totalorder %s34, 1
      %p123 = por %p121, %p122
      %p125 = scmp.ne.s32.totalorder %s108, %s124
      %p126 = scmp.eq.s32.totalorder %s34, 0
      %p127 = por %p125, %p126
      %s129 = sadd.s32 %s128, 1
      %p132 = scmp.eq.s32.totalorder %s28, 1
      %p133 = scmp.ne.s32.totalorder %s128, %s130
      %p134 = scmp.eq.s32.totalorder %s28, 0
      %p135 = por %p133, %p134
      %p136 = scmp.ne.s32.totalorder %s128, %s130
      %p137 = scmp.eq.s32.totalorder %s33, 1
      %p138 = por %p136, %p137
      %p139 = scmp.ne.s32.totalorder %s130, %s131
      %p140 = scmp.eq.s32.totalorder %s33, 0
      %p141 = por %p139, %p140
      %p142 = scmp.ne.s32.totalorder %s130, %s131
      %p143 = scmp.eq.s32.totalorder %s34, 1
      %p144 = por %p142, %p143
      %p146 = scmp.ne.s32.totalorder %s131, %s145
      %p147 = scmp.eq.s32.totalorder %s34, 0
      %p148 = por %p146, %p147
      %s150 = sadd.s32 %s149, 1
      %p153 = scmp.eq.s32.totalorder %s28, 1
      %p154 = scmp.ne.s32.totalorder %s149, %s151
      %p155 = scmp.eq.s32.totalorder %s28, 0
      %p156 = por %p154, %p155
      %p157 = scmp.ne.s32.totalorder %s149, %s151
      %p158 = scmp.eq.s32.totalorder %s33, 1
      %p159 = por %p157, %p158
      %p160 = scmp.ne.s32.totalorder %s151, %s152
      %p161 = scmp.eq.s32.totalorder %s33, 0
      %p162 = por %p160, %p161
      %p163 = scmp.ne.s32.totalorder %s151, %s152
      %p164 = scmp.eq.s32.totalorder %s34, 1
      %p165 = por %p163, %p164
      %p167 = scmp.ne.s32.totalorder %s152, %s166
      %p168 = scmp.eq.s32.totalorder %s34, 0
      %p169 = por %p167, %p168
      %s171 = sadd.s32 %s170, 1
      %p174 = scmp.eq.s32.totalorder %s28, 1
      %p175 = scmp.ne.s32.totalorder %s170, %s172
      %p176 = scmp.eq.s32.totalorder %s28, 0
      %p177 = por %p175, %p176
      %p178 = scmp.ne.s32.totalorder %s170, %s172
      %p179 = scmp.eq.s32.totalorder %s33, 1
      %p180 = por %p178, %p179
      %p181 = scmp.ne.s32.totalorder %s172, %s173
      %p182 = scmp.eq.s32.totalorder %s33, 0
      %p183 = por %p181, %p182
      %p184 = scmp.ne.s32.totalorder %s172, %s173
      %p185 = scmp.eq.s32.totalorder %s34, 1
      %p186 = por %p184, %p185
      %p188 = scmp.ne.s32.totalorder %s173, %s187
      %p189 = scmp.eq.s32.totalorder %s34, 0
      %p190 = por %p188, %p189
      %s192 = sadd.s32 %s191, 1
      %p195 = scmp.eq.s32.totalorder %s28, 1
      %p196 = scmp.ne.s32.totalorder %s191, %s193
      %p197 = scmp.eq.s32.totalorder %s28, 0
      %p198 = por %p196, %p197
      %p199 = scmp.ne.s32.totalorder %s191, %s193
      %p200 = scmp.eq.s32.totalorder %s33, 1
      %p201 = por %p199, %p200
      %p202 = scmp.ne.s32.totalorder %s193, %s194
      %p203 = scmp.eq.s32.totalorder %s33, 0
      %p204 = por %p202, %p203
      %p205 = scmp.ne.s32.totalorder %s193, %s194
      %p206 = scmp.eq.s32.totalorder %s34, 1
      %p207 = por %p205, %p206
      %p209 = scmp.ne.s32.totalorder %s194, %s208
      %p210 = scmp.eq.s32.totalorder %s34, 0
      %p211 = por %p209, %p210
      %s213 = sadd.s32 %s212, 1
      %p216 = scmp.eq.s32.totalorder %s28, 1
      %p217 = scmp.ne.s32.totalorder %s212, %s214
      %p218 = scmp.eq.s32.totalorder %s28, 0
      %p219 = por %p217, %p218
      %p220 = scmp.ne.s32.totalorder %s212, %s214
      %p221 = scmp.eq.s32.totalorder %s33, 1
      %p222 = por %p220, %p221
      %p223 = scmp.ne.s32.totalorder %s214, %s215
      %p224 = scmp.eq.s32.totalorder %s33, 0
      %p225 = por %p223, %p224
      %p226 = scmp.ne.s32.totalorder %s214, %s215
      %p227 = scmp.eq.s32.totalorder %s34, 1
      %p228 = por %p226, %p227
      %p230 = scmp.ne.s32.totalorder %s215, %s229
      %p231 = scmp.eq.s32.totalorder %s34, 0
      %p232 = por %p230, %p231
      %s234 = sadd.s32 %s233, 1
      %p237 = scmp.eq.s32.totalorder %s28, 1
      %p238 = scmp.ne.s32.totalorder %s233, %s235
      %p239 = scmp.eq.s32.totalorder %s28, 0
      %p240 = por %p238, %p239
      %p241 = scmp.ne.s32.totalorder %s233, %s235
      %p242 = scmp.eq.s32.totalorder %s33, 1
      %p243 = por %p241, %p242
      %p244 = scmp.ne.s32.totalorder %s235, %s236
      %p245 = scmp.eq.s32.totalorder %s33, 0
      %p246 = por %p244, %p245
      %p247 = scmp.ne.s32.totalorder %s235, %s236
      %p248 = scmp.eq.s32.totalorder %s34, 1
      %p249 = por %p247, %p248
      %p251 = scmp.ne.s32.totalorder %s236, %s250
      %p252 = scmp.eq.s32.totalorder %s34, 0
      %p253 = por %p251, %p252
      %s255 = sadd.s32 %s254, 1
      %p258 = scmp.eq.s32.totalorder %s28, 1
      %p259 = scmp.ne.s32.totalorder %s254, %s256
      %p260 = scmp.eq.s32.totalorder %s28, 0
      %p261 = por %p259, %p260
      %p262 = scmp.ne.s32.totalorder %s254, %s256
      %p263 = scmp.eq.s32.totalorder %s33, 1
      %p264 = por %p262, %p263
      %p265 = scmp.ne.s32.totalorder %s256, %s257
      %p266 = scmp.eq.s32.totalorder %s33, 0
      %p267 = por %p265, %p266
      %p268 = scmp.ne.s32.totalorder %s256, %s257
      %p269 = scmp.eq.s32.totalorder %s34, 1
      %p270 = por %p268, %p269
      %p272 = scmp.ne.s32.totalorder %s257, %s271
      %p273 = scmp.eq.s32.totalorder %s34, 0
      %p274 = por %p272, %p273
      %s276 = sadd.s32 %s275, 1
      %p279 = scmp.eq.s32.totalorder %s28, 1
      %p280 = scmp.ne.s32.totalorder %s275, %s277
      %p281 = scmp.eq.s32.totalorder %s28, 0
      %p282 = por %p280, %p281
      %p283 = scmp.ne.s32.totalorder %s275, %s277
      %p284 = scmp.eq.s32.totalorder %s33, 1
      %p285 = por %p283, %p284
      %p286 = scmp.ne.s32.totalorder %s277, %s278
      %p287 = scmp.eq.s32.totalorder %s33, 0
      %p288 = por %p286, %p287
      %p289 = scmp.ne.s32.totalorder %s277, %s278
      %p290 = scmp.eq.s32.totalorder %s34, 1
      %p291 = por %p289, %p290
      %p293 = scmp.ne.s32.totalorder %s278, %s292
      %p294 = scmp.eq.s32.totalorder %s34, 0
      %p295 = por %p293, %p294
      %s296 = ssub.s32 %s35, %s47
      %s297 = ssub.s32 %s36, %s43
      %s298 = sor.u32 %s296, %s297
      %p299 = scmp.eq.s32.totalorder %s298, 0
      %s301 = sadd.s32 %s300, 1
      %s302 = scalar_select %p299, %s300, %s301
      %p305 = pneg %p299
      %p306 = scmp.eq.s32.totalorder %s28, 1
      %p307 = por %p305, %p306
      %p308 = scmp.ne.s32.totalorder %s300, %s303
      %p309 = scmp.eq.s32.totalorder %s28, 0
      %p310 = por %p308, %p309
      %p311 = scmp.ne.s32.totalorder %s300, %s303
      %p312 = scmp.eq.s32.totalorder %s33, 1
      %p313 = por %p311, %p312
      %p314 = scmp.ne.s32.totalorder %s303, %s304
      %p315 = scmp.eq.s32.totalorder %s33, 0
      %p316 = por %p314, %p315
      %p317 = scmp.ne.s32.totalorder %s303, %s304
      %p318 = scmp.eq.s32.totalorder %s34, 1
      %p319 = por %p317, %p318
      %p321 = scmp.ne.s32.totalorder %s304, %s320
      %p322 = scmp.eq.s32.totalorder %s34, 0
      %p323 = por %p321, %p322
      %p324 = scmp.le.s32.totalorder 1, %s28
      %p325 = scmp.lt.s32.totalorder %s28, 3
      %p326 = pnand %p324, %p325
      %p327 = pneg %p326
      // Predicated region
      $region9: #{tpu_custom_call.1} parent=5 // pred_check
        _
      $region10: #{tpu_custom_call.1} parent=5 // pred_check_branch
        %329 = sbr.rel (%p326) target = $region12
      $region11: #{tpu_custom_call.1} parent=5 // pred_region
        %s330 = ssub.s32 %s28, 1
        // Predicated region
        $region13: #{tpu_custom_call.1} parent=11 // pred_check
          %p331 = pneg %p141
        $region14: #{tpu_custom_call.1} parent=11 // pred_check_branch
          %333 = sbr.rel (%p331) target = $region16
        $region15: #{tpu_custom_call.1} parent=11 // pred_region
          %s335 = ssub.s32 512, 512
          %336 = vsyncadd [#allocation11], %s335
          %s337 = sshll.u32 [#allocation10], 4
          %s338 = int_to_ptr.vmem [resolvable:$true] %s337
          %343 = dma.hbm_to_vmem [thread:$0]  %s3, 512, %s338, [#allocation11], 128, 128, 8
        $region16: #{tpu_custom_call.1} parent=11 // pred_fallthru
          _
        // Predicated region
        $region17: #{tpu_custom_call.1} parent=11 // pred_check
          %p344 = pneg %p162
        $region18: #{tpu_custom_call.1} parent=11 // pred_check_branch
          %346 = sbr.rel (%p344) target = $region20
        $region19: #{tpu_custom_call.1} parent=11 // pred_region
          _
        $region20: #{tpu_custom_call.1} parent=11 // pred_fallthru
          _
        // Predicated region
        $region21: #{tpu_custom_call.1} parent=11 // pred_check
          %p347 = pneg %p183
        $region22: #{tpu_custom_call.1} parent=11 // pred_check_branch
          %349 = sbr.rel (%p347) target = $region24
        $region23: #{tpu_custom_call.1} parent=11 // pred_region
          %s351 = ssub.s32 512, 512
          %352 = vsyncadd [#allocation11], %s351
          %s353 = sshll.u32 [#allocation12], 4
          %s354 = int_to_ptr.vmem [resolvable:$true] %s353
          %359 = dma.hbm_to_vmem [thread:$0]  %s5, 512, %s354, [#allocation11], 128, 128, 8
        $region24: #{tpu_custom_call.1} parent=11 // pred_fallthru
          _
        // Predicated region
        $region25: #{tpu_custom_call.1} parent=11 // pred_check
          %p360 = pneg %p204
        $region26: #{tpu_custom_call.1} parent=11 // pred_check_branch
          %362 = sbr.rel (%p360) target = $region28
        $region27: #{tpu_custom_call.1} parent=11 // pred_region
          _
        $region28: #{tpu_custom_call.1} parent=11 // pred_fallthru
          _
        // Predicated region
        $region29: #{tpu_custom_call.1} parent=11 // pred_check
          %p363 = pneg %p225
        $region30: #{tpu_custom_call.1} parent=11 // pred_check_branch
          %365 = sbr.rel (%p363) target = $region32
        $region31: #{tpu_custom_call.1} parent=11 // pred_region
          %s367 = ssub.s32 512, 512
          %368 = vsyncadd [#allocation14], %s367
          %s369 = sshll.u32 [#allocation13], 4
          %s370 = int_to_ptr.vmem [resolvable:$true] %s369
          %375 = dma.hbm_to_vmem [thread:$0]  %s7, 512, %s370, [#allocation14], 128, 128, 8
        $region32: #{tpu_custom_call.1} parent=11 // pred_fallthru
          _
        // Predicated region
        $region33: #{tpu_custom_call.1} parent=11 // pred_check
          %p376 = pneg %p246
        $region34: #{tpu_custom_call.1} parent=11 // pred_check_branch
          %378 = sbr.rel (%p376) target = $region36
        $region35: #{tpu_custom_call.1} parent=11 // pred_region
          _
        $region36: #{tpu_custom_call.1} parent=11 // pred_fallthru
          _
        // Predicated region
        $region37: #{tpu_custom_call.1} parent=11 // pred_check
          %p379 = pneg %p267
        $region38: #{tpu_custom_call.1} parent=11 // pred_check_branch
          %381 = sbr.rel (%p379) target = $region40
        $region39: #{tpu_custom_call.1} parent=11 // pred_region
          %s383 = ssub.s32 512, 512
          %384 = vsyncadd [#allocation14], %s383
          %s385 = sshll.u32 [#allocation15], 4
          %s386 = int_to_ptr.vmem [resolvable:$true] %s385
          %391 = dma.hbm_to_vmem [thread:$0]  %s9, 512, %s386, [#allocation14], 128, 128, 8
        $region40: #{tpu_custom_call.1} parent=11 // pred_fallthru
          _
        // Predicated region
        $region41: #{tpu_custom_call.1} parent=11 // pred_check
          %p392 = pneg %p288
        $region42: #{tpu_custom_call.1} parent=11 // pred_check_branch
          %394 = sbr.rel (%p392) target = $region44
        $region43: #{tpu_custom_call.1} parent=11 // pred_region
          _
        $region44: #{tpu_custom_call.1} parent=11 // pred_fallthru
          _
      $region12: #{tpu_custom_call.1} parent=5 // pred_fallthru
        _
      %p395 = scmp.lt.s32.totalorder %s28, 2
      // Predicated region
      $region45: #{tpu_custom_call.1} parent=5 // pred_check
        %p396 = pneg %p395
      $region46: #{tpu_custom_call.1} parent=5 // pred_check_branch
        %398 = sbr.rel (%p396) target = $region48
      $region47: #{tpu_custom_call.1} parent=5 // pred_region
        // Predicated region
        $region49: #{tpu_custom_call.1} parent=47 // pred_check
          %p399 = pneg %p62
        $region50: #{tpu_custom_call.1} parent=47 // pred_check_branch
          %401 = sbr.rel (%p399) target = $region52
        $region51: #{tpu_custom_call.1} parent=47 // pred_region
          %s402 = sand.u32 %s52, 1
          %s403 = scalar_lea.sflag [#allocation5], %s402
          %s404 = sand.u32 %s52, 1
          %s405 = smul.addr %s404, 8
          %s406 = scalar_lea.vmem [#allocation4], %s405
          %s408 = ssub.s32 128, 128
          %409 = vsyncadd %s403, %s408
          %s410 = sadd.s32 %s36, %s35
          %s411 = smul.addr %s410, 128
          %s412 = scalar_lea.hbm %s0, %s411
          %s414 = sshll.u32 %s406, 4
          %s415 = int_to_ptr.vmem [resolvable:$true] %s414
          %417 = dma.hbm_to_vmem [thread:$0]  %s412, 128, %s415, %s403
        $region52: #{tpu_custom_call.1} parent=47 // pred_fallthru
          _
        // Predicated region
        $region53: #{tpu_custom_call.1} parent=47 // pred_check
          %p418 = pneg %p88
        $region54: #{tpu_custom_call.1} parent=47 // pred_check_branch
          %420 = sbr.rel (%p418) target = $region56
        $region55: #{tpu_custom_call.1} parent=47 // pred_region
          %s421 = sand.u32 %s28, 1
          %s422 = scalar_lea.sflag [#allocation8], %s421
          %s423 = sand.u32 %s78, 1
          %s424 = smul.addr %s423, 16
          %s425 = scalar_lea.vmem [#allocation7], %s424
          %s427 = ssub.s32 256, 256
          %428 = vsyncadd %s422, %s427
          %s429 = smul.addr %s35, 2
          %s430 = smul.addr %s429, 128
          %s431 = scalar_lea.hbm %s1, %s430
          %s432 = sshll.u32 %s425, 4
          %s433 = int_to_ptr.vmem [resolvable:$true] %s432
          %438 = dma.hbm_to_vmem [thread:$0]  %s431, 256, %s433, %s422, 128, 128, 8
        $region56: #{tpu_custom_call.1} parent=47 // pred_fallthru
          _
        // Predicated region
        $region57: #{tpu_custom_call.1} parent=47 // pred_check
          %p439 = pneg %p114
        $region58: #{tpu_custom_call.1} parent=47 // pred_check_branch
          %441 = sbr.rel (%p439) target = $region60
        $region59: #{tpu_custom_call.1} parent=47 // pred_region
          %s442 = sand.u32 %s28, 1
          %s443 = scalar_lea.sflag [#allocation8], %s442
          %s444 = sand.u32 %s104, 1
          %s445 = smul.addr %s444, 16
          %s446 = scalar_lea.vmem [#allocation9], %s445
          %s448 = ssub.s32 256, 256
          %449 = vsyncadd %s443, %s448
          %s450 = smul.addr %s35, 2
          %s451 = smul.addr %s450, 128
          %s452 = scalar_lea.hbm %s2, %s451
          %s453 = sshll.u32 %s446, 4
          %s454 = int_to_ptr.vmem [resolvable:$true] %s453
          %459 = dma.hbm_to_vmem [thread:$0]  %s452, 256, %s454, %s443, 128, 128, 8
        $region60: #{tpu_custom_call.1} parent=47 // pred_fallthru
          _
      $region48: #{tpu_custom_call.1} parent=5 // pred_fallthru
        _
      %p460 = scmp.le.s32.totalorder 1, %s28
      %p461 = scmp.lt.s32.totalorder %s28, 3
      %p462 = pnand %p460, %p461
      %p463 = pneg %p462
      // Predicated region
      $region61: #{tpu_custom_call.1} parent=5 // pred_check
        _
      $region62: #{tpu_custom_call.1} parent=5 // pred_check_branch
        %465 = sbr.rel (%p462) target = $region64
      $region63: #{tpu_custom_call.1} parent=5 // pred_region
        %s466 = ssub.s32 %s28, 1
        %s467 = sand.u32 %s55, 1
        %s468 = scalar_lea.sflag [#allocation5], %s467
        %s469 = sand.u32 %s55, 1
        %s470 = smul.addr %s469, 8
        %s471 = scalar_lea.vmem [#allocation4], %s470
        // Predicated region
        $region65: #{tpu_custom_call.1} parent=63 // pred_check
          %p472 = pneg %p68
        $region66: #{tpu_custom_call.1} parent=63 // pred_check_branch
          %474 = sbr.rel (%p472) target = $region68
        $region67: #{tpu_custom_call.1} parent=63 // pred_region
          %475 = dma.done %s468, 128
        $region68: #{tpu_custom_call.1} parent=63 // pred_fallthru
          _
        %s476 = sand.u32 %s33, 1
        %s477 = scalar_lea.sflag [#allocation8], %s476
        %s478 = sand.u32 %s81, 1
        %s479 = smul.addr %s478, 16
        %s480 = scalar_lea.vmem [#allocation7], %s479
        // Predicated region
        $region69: #{tpu_custom_call.1} parent=63 // pred_check
          %p481 = pneg %p94
        $region70: #{tpu_custom_call.1} parent=63 // pred_check_branch
          %483 = sbr.rel (%p481) target = $region72
        $region71: #{tpu_custom_call.1} parent=63 // pred_region
          %484 = dma.done %s477, 256
        $region72: #{tpu_custom_call.1} parent=63 // pred_fallthru
          _
        %s485 = sand.u32 %s33, 1
        %s486 = scalar_lea.sflag [#allocation8], %s485
        %s487 = sand.u32 %s107, 1
        %s488 = smul.addr %s487, 16
        %s489 = scalar_lea.vmem [#allocation9], %s488
        // Predicated region
        $region73: #{tpu_custom_call.1} parent=63 // pred_check
          %p490 = pneg %p120
        $region74: #{tpu_custom_call.1} parent=63 // pred_check_branch
          %492 = sbr.rel (%p490) target = $region76
        $region75: #{tpu_custom_call.1} parent=63 // pred_region
          %493 = dma.done %s486, 256
        $region76: #{tpu_custom_call.1} parent=63 // pred_fallthru
          _
        // Predicated region
        $region77: #{tpu_custom_call.1} parent=63 // pred_check
          %p494 = pneg %p141
        $region78: #{tpu_custom_call.1} parent=63 // pred_check_branch
          %496 = sbr.rel (%p494) target = $region80
        $region79: #{tpu_custom_call.1} parent=63 // pred_region
          %497 = dma.done [#allocation11], 512
        $region80: #{tpu_custom_call.1} parent=63 // pred_fallthru
          _
        // Predicated region
        $region81: #{tpu_custom_call.1} parent=63 // pred_check
          %p498 = pneg %p183
        $region82: #{tpu_custom_call.1} parent=63 // pred_check_branch
          %500 = sbr.rel (%p498) target = $region84
        $region83: #{tpu_custom_call.1} parent=63 // pred_region
          %501 = dma.done [#allocation11], 512
        $region84: #{tpu_custom_call.1} parent=63 // pred_fallthru
          _
        // Predicated region
        $region85: #{tpu_custom_call.1} parent=63 // pred_check
          %p502 = pneg %p225
        $region86: #{tpu_custom_call.1} parent=63 // pred_check_branch
          %504 = sbr.rel (%p502) target = $region88
        $region87: #{tpu_custom_call.1} parent=63 // pred_region
          %505 = dma.done [#allocation14], 512
        $region88: #{tpu_custom_call.1} parent=63 // pred_fallthru
          _
        // Predicated region
        $region89: #{tpu_custom_call.1} parent=63 // pred_check
          %p506 = pneg %p267
        $region90: #{tpu_custom_call.1} parent=63 // pred_check_branch
          %508 = sbr.rel (%p506) target = $region92
        $region91: #{tpu_custom_call.1} parent=63 // pred_region
          %509 = dma.done [#allocation14], 512
        $region92: #{tpu_custom_call.1} parent=63 // pred_fallthru
          _
        %s510 = sand.u32 %s55, 1
        %s511 = scalar_lea.sflag [#allocation5], %s510
        %s512 = sand.u32 %s55, 1
        %s513 = smul.addr %s512, 8
        %s514 = scalar_lea.vmem [#allocation4], %s513
        %p515 = pneg %p68
        %p516 = pneg %p65
        %s517 = sand.u32 %s33, 1
        %s518 = scalar_lea.sflag [#allocation8], %s517
        %s519 = sand.u32 %s81, 1
        %s520 = smul.addr %s519, 16
        %s521 = scalar_lea.vmem [#allocation7], %s520
        %p522 = pneg %p94
        %p523 = pneg %p91
        %s524 = sand.u32 %s33, 1
        %s525 = scalar_lea.sflag [#allocation8], %s524
        %s526 = sand.u32 %s107, 1
        %s527 = smul.addr %s526, 16
        %s528 = scalar_lea.vmem [#allocation9], %s527
        %p529 = pneg %p120
        %p530 = pneg %p117
        %p531 = pneg %p141
        %p532 = pneg %p138
        %p533 = pneg %p162
        %p534 = pneg %p159
        %p535 = pneg %p183
        %p536 = pneg %p180
        %p537 = pneg %p204
        %p538 = pneg %p201
        %p539 = pneg %p225
        %p540 = pneg %p222
        %p541 = pneg %p246
        %p542 = pneg %p243
        %p543 = pneg %p267
        %p544 = pneg %p264
        %p545 = pneg %p288
        %p546 = pneg %p285
        %p547 = pneg %p316
        %p548 = pneg %p313
        %s549 = sand.u32 %s303, 1
        %s550 = scalar_lea.sflag [#allocation6], %s549
        %s551 = sand.u32 %s303, 1
        %s552 = smul.addr %s551, 8
        %s553 = scalar_lea.vmem [#allocation16], %s552
        %p554 = scmp.eq.s32.totalorder %s38, 0
        // Predicated region
        $region93: #{tpu_custom_call.1} parent=63 // pred_check
          %p555 = pneg %p554
        $region94: #{tpu_custom_call.1} parent=63 // pred_check_branch
          %557 = sbr.rel (%p555) target = $region96
        $region95: #{tpu_custom_call.1} parent=63 // pred_region
          %v558 = vld [vmem:[%s480] sm:$0xff]
          %v559 = vld [vmem:[%s480 + $0x8] sm:$0xff]
          %v560 = vld [vmem:[%s489] sm:$0xff]
          %v561 = vld [vmem:[%s489 + $0x8] sm:$0xff]
          %v562 = vld [vmem:[#allocation12] sm:$0xff]
          %v563 = vld [vmem:[#allocation12 + $0x8] sm:$0xff]
          %v564 = vld [vmem:[#allocation12 + $0x10] sm:$0xff]
          %v565 = vld [vmem:[#allocation12 + $0x18] sm:$0xff]
          %v566 = vld [vmem:[%s6] sm:$0x1]
          %v568 = vlaneseq
          %v569 = vshrl.u32 %v568, 7
          %v570 = vsub.s32 0, %v569
          %v571 = vrot.slane %v566, %v570
          %vm573 = vcmask 261120
          %v575 = vsel %vm573, %v558, 0
          %v578 = vsel %vm573, %v559, 0
          %580 = vmatprep.subr.mxu0 0.0
          %581 = vmatpush1.msra.mxu0 0.0
          %582 = vmatprep.subr.mxu0 0.0
          %583 = vmatpush1.msra.mxu0 0.0
          %584 = vmatprep.subr.mxu0 0.0
          %585 = vmatpush1.msra.mxu0 0.0
          %586 = vmatprep.subr.mxu0 0.0
          %587 = vmatpush1.msra.mxu0 0.0
          %588 = vmatprep.subr.mxu0 0.0
          %589 = vmatpush1.msra.mxu0 0.0
          %590 = vmatprep.subr.mxu0 0.0
          %591 = vmatpush1.msra.mxu0 0.0
          %592 = vmatprep.subr.mxu0 0.0
          %593 = vmatpush1.msra.mxu0 0.0
          %594 = vmatprep.subr.mxu0 0.0
          %595 = vmatpush1.msra.mxu0 0.0
          %596 = vmatprep.subr.mxu0 0.0
          %597 = vmatpush1.msra.mxu0 0.0
          %598 = vmatprep.subr.mxu0 0.0
          %599 = vmatpush1.msra.mxu0 0.0
          %600 = vmatprep.subr.mxu0 0.0
          %601 = vmatpush1.msra.mxu0 0.0
          %602 = vmatprep.subr.mxu0 0.0
          %603 = vmatpush1.msra.mxu0 0.0
          %604 = vmatprep.subr.mxu0 0.0
          %605 = vmatpush1.msra.mxu0 %v565
          %606 = vmatprep.subr.mxu0 0.0
          %607 = vmatpush1.msra.mxu0 %v564
          %608 = vmatprep.subr.mxu0 0.0
          %609 = vmatpush1.msra.mxu0 %v563
          %610 = vmatprep.subr.mxu0 0.0
          %611 = vmatpush1.msra.mxu0 %v562
          %612 = vmatprep.subr.mxu0 0.0
          %613 = vmatpush2.msra.mxu0 0.0
          %614 = vmatprep.subr.mxu0 0.0
          %615 = vmatpush2.msra.mxu0 0.0
          %616 = vmatprep.subr.mxu0 0.0
          %617 = vmatpush2.msra.mxu0 0.0
          %618 = vmatprep.subr.mxu0 0.0
          %619 = vmatpush2.msra.mxu0 0.0
          %620 = vmatprep.subr.mxu0 0.0
          %621 = vmatpush2.msra.mxu0 0.0
          %622 = vmatprep.subr.mxu0 0.0
          %623 = vmatpush2.msra.mxu0 0.0
          %624 = vmatprep.subr.mxu0 0.0
          %625 = vmatpush2.msra.mxu0 0.0
          %626 = vmatprep.subr.mxu0 0.0
          %627 = vmatpush2.msra.mxu0 0.0
          %628 = vmatprep.subr.mxu0 0.0
          %629 = vmatpush2.msra.mxu0 0.0
          %630 = vmatprep.subr.mxu0 0.0
          %631 = vmatpush2.msra.mxu0 0.0
          %632 = vmatprep.subr.mxu0 0.0
          %633 = vmatpush2.msra.mxu0 0.0
          %634 = vmatprep.subr.mxu0 0.0
          %635 = vmatpush2.msra.mxu0 0.0
          %636 = vmatprep.subr.mxu0 0.0
          %637 = vmatpush2.msra.mxu0 0.0
          %638 = vmatprep.subr.mxu0 0.0
          %639 = vmatpush2.msra.mxu0 0.0
          %640 = vmatprep.subr.mxu0 0.0
          %641 = vmatpush2.msra.mxu0 0.0
          %642 = vmatprep.subr.mxu0 0.0
          %643 = vmatpush2.msra.mxu0 0.0
          %644 = vmatprep.mubr.f32.mxu0 0.0
          %645 = vmatmul.mubr.f32.gmra.mxu0 %v575
          %v646 = vpop.f32.mrf.mxu0
          %v647 = vadd.f32 %v571, %v646
          %v648 = vpop.f32.mrf.mxu0
          %649 = vmatprep.mubr.f32.mxu0 0.0
          %650 = vmatmul.mubr.f32.gmra.mxu0 %v578
          %v651 = vpop.f32.mrf.mxu0
          %v652 = vadd.f32 %v571, %v651
          %v653 = vpop.f32.mrf.mxu0
          %654 = vdwg.mxu0
          %v655 = vld [vmem:[#allocation13] sm:$0xff]
          %v656 = vld [vmem:[#allocation13 + $0x8] sm:$0xff]
          %v657 = vld [vmem:[#allocation13 + $0x10] sm:$0xff]
          %v658 = vld [vmem:[#allocation13 + $0x18] sm:$0xff]
          %v659 = vld [vmem:[%s8] sm:$0x1]
          %v661 = vlaneseq
          %v662 = vshrl.u32 %v661, 7
          %v663 = vsub.s32 0, %v662
          %v664 = vrot.slane %v659, %v663
          %v667 = vsel %vm573, %v560, 0
          %v670 = vsel %vm573, %v561, 0
          %672 = vmatprep.subr.mxu0 0.0
          %673 = vmatpush1.msra.mxu0 0.0
          %674 = vmatprep.subr.mxu0 0.0
          %675 = vmatpush1.msra.mxu0 0.0
          %676 = vmatprep.subr.mxu0 0.0
          %677 = vmatpush1.msra.mxu0 0.0
          %678 = vmatprep.subr.mxu0 0.0
          %679 = vmatpush1.msra.mxu0 0.0
          %680 = vmatprep.subr.mxu0 0.0
          %681 = vmatpush1.msra.mxu0 0.0
          %682 = vmatprep.subr.mxu0 0.0
          %683 = vmatpush1.msra.mxu0 0.0
          %684 = vmatprep.subr.mxu0 0.0
          %685 = vmatpush1.msra.mxu0 0.0
          %686 = vmatprep.subr.mxu0 0.0
          %687 = vmatpush1.msra.mxu0 0.0
          %688 = vmatprep.subr.mxu0 0.0
          %689 = vmatpush1.msra.mxu0 0.0
          %690 = vmatprep.subr.mxu0 0.0
          %691 = vmatpush1.msra.mxu0 0.0
          %692 = vmatprep.subr.mxu0 0.0
          %693 = vmatpush1.msra.mxu0 0.0
          %694 = vmatprep.subr.mxu0 0.0
          %695 = vmatpush1.msra.mxu0 0.0
          %696 = vmatprep.subr.mxu0 0.0
          %697 = vmatpush1.msra.mxu0 %v658
          %698 = vmatprep.subr.mxu0 0.0
          %699 = vmatpush1.msra.mxu0 %v657
          %700 = vmatprep.subr.mxu0 0.0
          %701 = vmatpush1.msra.mxu0 %v656
          %702 = vmatprep.subr.mxu0 0.0
          %703 = vmatpush1.msra.mxu0 %v655
          %704 = vmatprep.subr.mxu0 0.0
          %705 = vmatpush2.msra.mxu0 0.0
          %706 = vmatprep.subr.mxu0 0.0
          %707 = vmatpush2.msra.mxu0 0.0
          %708 = vmatprep.subr.mxu0 0.0
          %709 = vmatpush2.msra.mxu0 0.0
          %710 = vmatprep.subr.mxu0 0.0
          %711 = vmatpush2.msra.mxu0 0.0
          %712 = vmatprep.subr.mxu0 0.0
          %713 = vmatpush2.msra.mxu0 0.0
          %714 = vmatprep.subr.mxu0 0.0
          %715 = vmatpush2.msra.mxu0 0.0
          %716 = vmatprep.subr.mxu0 0.0
          %717 = vmatpush2.msra.mxu0 0.0
          %718 = vmatprep.subr.mxu0 0.0
          %719 = vmatpush2.msra.mxu0 0.0
          %720 = vmatprep.subr.mxu0 0.0
          %721 = vmatpush2.msra.mxu0 0.0
          %722 = vmatprep.subr.mxu0 0.0
          %723 = vmatpush2.msra.mxu0 0.0
          %724 = vmatprep.subr.mxu0 0.0
          %725 = vmatpush2.msra.mxu0 0.0
          %726 = vmatprep.subr.mxu0 0.0
          %727 = vmatpush2.msra.mxu0 0.0
          %728 = vmatprep.subr.mxu0 0.0
          %729 = vmatpush2.msra.mxu0 0.0
          %730 = vmatprep.subr.mxu0 0.0
          %731 = vmatpush2.msra.mxu0 0.0
          %732 = vmatprep.subr.mxu0 0.0
          %733 = vmatpush2.msra.mxu0 0.0
          %734 = vmatprep.subr.mxu0 0.0
          %735 = vmatpush2.msra.mxu0 0.0
          %736 = vmatprep.mubr.f32.mxu0 0.0
          %737 = vmatmul.mubr.f32.gmra.mxu0 %v667
          %v738 = vpop.f32.mrf.mxu0
          %v739 = vadd.f32 %v664, %v738
          %v740 = vpop.f32.mrf.mxu0
          %741 = vmatprep.mubr.f32.mxu0 0.0
          %742 = vmatmul.mubr.f32.gmra.mxu0 %v670
          %v743 = vpop.f32.mrf.mxu0
          %v744 = vadd.f32 %v664, %v743
          %v745 = vpop.f32.mrf.mxu0
          %746 = vdwg.mxu0
          %749 = vrot.lane.b32.xlu0 %v647, 120
          %v750 = vpop.permute.xlu0 %749
          %751 = vrot.lane.b32.xlu0 %v652, 120
          %v752 = vpop.permute.xlu0 %751
          %755 = vrot.lane.b32.xlu0 %v647, 112
          %v756 = vpop.permute.xlu0 %755
          %757 = vrot.lane.b32.xlu0 %v652, 112
          %v758 = vpop.permute.xlu0 %757
          %761 = vrot.lane.b32.xlu0 %v647, 104
          %v762 = vpop.permute.xlu0 %761
          %763 = vrot.lane.b32.xlu0 %v652, 104
          %v764 = vpop.permute.xlu0 %763
          %v767 = vcombine.low %v647, %v756
          %v768 = vcombine.high %v647, %v756
          %v770 = vunpack.c.l.s4 1983009808
          %v771 = vunpack.c.0.s8 %v770
          %v772 = vlaneseq
          %v773 = vshrl.u32 %v772, 7
          %v774 = vsub.s32 %v771, %v773
          %v775 = vrot.slane %v767, %v774
          %v777 = vunpack.c.l.s4 1983009808
          %v778 = vunpack.c.0.s8 %v777
          %v779 = vlaneseq
          %v780 = vshrl.u32 %v779, 7
          %v781 = vsub.s32 %v778, %v780
          %v782 = vrot.slane %v768, %v781
          %v783 = vcombine.low %v750, %v762
          %v784 = vcombine.high %v750, %v762
          %v786 = vunpack.c.l.s4 1983009808
          %v787 = vunpack.c.0.s8 %v786
          %v788 = vlaneseq
          %v789 = vshrl.u32 %v788, 7
          %v790 = vsub.s32 %v787, %v789
          %v791 = vrot.slane %v783, %v790
          %v793 = vunpack.c.l.s4 1983009808
          %v794 = vunpack.c.0.s8 %v793
          %v795 = vlaneseq
          %v796 = vshrl.u32 %v795, 7
          %v797 = vsub.s32 %v794, %v796
          %v798 = vrot.slane %v784, %v797
          %v799 = vcombine.low %v775, %v791
          %v800 = vcombine.high %v775, %v791
          %v802 = vunpack.c.l.s4 1934713408
          %v803 = vunpack.c.0.s8 %v802
          %v804 = vlaneseq
          %v805 = vshrl.u32 %v804, 7
          %v806 = vsub.s32 %v803, %v805
          %v807 = vrot.slane %v799, %v806
          %v809 = vunpack.c.l.s4 1934713408
          %v810 = vunpack.c.0.s8 %v809
          %v811 = vlaneseq
          %v812 = vshrl.u32 %v811, 7
          %v813 = vsub.s32 %v810, %v812
          %v814 = vrot.slane %v800, %v813
          %v815 = vcombine.low %v782, %v798
          %v816 = vcombine.high %v782, %v798
          %v818 = vunpack.c.l.s4 1934713408
          %v819 = vunpack.c.0.s8 %v818
          %v820 = vlaneseq
          %v821 = vshrl.u32 %v820, 7
          %v822 = vsub.s32 %v819, %v821
          %v823 = vrot.slane %v815, %v822
          %v825 = vunpack.c.l.s4 1934713408
          %v826 = vunpack.c.0.s8 %v825
          %v827 = vlaneseq
          %v828 = vshrl.u32 %v827, 7
          %v829 = vsub.s32 %v826, %v828
          %v830 = vrot.slane %v816, %v829
          %v831 = vcombine.high %v807, 0.0
          %v832 = vcombine.high %v814, 0.0
          %v833 = vcombine.high %v823, 0.0
          %v834 = vcombine.high %v830, 0.0
          %v835 = vcombine.low %v652, %v758
          %v836 = vcombine.high %v652, %v758
          %v838 = vunpack.c.l.s4 1983009808
          %v839 = vunpack.c.0.s8 %v838
          %v840 = vlaneseq
          %v841 = vshrl.u32 %v840, 7
          %v842 = vsub.s32 %v839, %v841
          %v843 = vrot.slane %v835, %v842
          %v845 = vunpack.c.l.s4 1983009808
          %v846 = vunpack.c.0.s8 %v845
          %v847 = vlaneseq
          %v848 = vshrl.u32 %v847, 7
          %v849 = vsub.s32 %v846, %v848
          %v850 = vrot.slane %v836, %v849
          %v851 = vcombine.low %v752, %v764
          %v852 = vcombine.high %v752, %v764
          %v854 = vunpack.c.l.s4 1983009808
          %v855 = vunpack.c.0.s8 %v854
          %v856 = vlaneseq
          %v857 = vshrl.u32 %v856, 7
          %v858 = vsub.s32 %v855, %v857
          %v859 = vrot.slane %v851, %v858
          %v861 = vunpack.c.l.s4 1983009808
          %v862 = vunpack.c.0.s8 %v861
          %v863 = vlaneseq
          %v864 = vshrl.u32 %v863, 7
          %v865 = vsub.s32 %v862, %v864
          %v866 = vrot.slane %v852, %v865
          %v867 = vcombine.low %v843, %v859
          %v868 = vcombine.high %v843, %v859
          %v870 = vunpack.c.l.s4 1934713408
          %v871 = vunpack.c.0.s8 %v870
          %v872 = vlaneseq
          %v873 = vshrl.u32 %v872, 7
          %v874 = vsub.s32 %v871, %v873
          %v875 = vrot.slane %v867, %v874
          %v877 = vunpack.c.l.s4 1934713408
          %v878 = vunpack.c.0.s8 %v877
          %v879 = vlaneseq
          %v880 = vshrl.u32 %v879, 7
          %v881 = vsub.s32 %v878, %v880
          %v882 = vrot.slane %v868, %v881
          %v883 = vcombine.low %v850, %v866
          %v884 = vcombine.high %v850, %v866
          %v886 = vunpack.c.l.s4 1934713408
          %v887 = vunpack.c.0.s8 %v886
          %v888 = vlaneseq
          %v889 = vshrl.u32 %v888, 7
          %v890 = vsub.s32 %v887, %v889
          %v891 = vrot.slane %v883, %v890
          %v893 = vunpack.c.l.s4 1934713408
          %v894 = vunpack.c.0.s8 %v893
          %v895 = vlaneseq
          %v896 = vshrl.u32 %v895, 7
          %v897 = vsub.s32 %v894, %v896
          %v898 = vrot.slane %v884, %v897
          %v899 = vcombine.high %v875, 0.0
          %v900 = vcombine.high %v882, 0.0
          %v901 = vcombine.high %v891, 0.0
          %v902 = vcombine.high %v898, 0.0
          %v903 = vcombine.low %v807, %v814
          %v905 = vunpack.c.l.s4 1983009808
          %v906 = vunpack.c.0.s8 %v905
          %v907 = vlaneseq
          %v908 = vshrl.u32 %v907, 7
          %v909 = vsub.s32 %v906, %v908
          %v910 = vrot.slane %v903, %v909
          %v911 = vcombine.low %v831, %v832
          %v913 = vunpack.c.l.s4 1983009808
          %v914 = vunpack.c.0.s8 %v913
          %v915 = vlaneseq
          %v916 = vshrl.u32 %v915, 7
          %v917 = vsub.s32 %v914, %v916
          %v918 = vrot.slane %v911, %v917
          %v919 = vcombine.low %v823, %v830
          %v921 = vunpack.c.l.s4 1983009808
          %v922 = vunpack.c.0.s8 %v921
          %v923 = vlaneseq
          %v924 = vshrl.u32 %v923, 7
          %v925 = vsub.s32 %v922, %v924
          %v926 = vrot.slane %v919, %v925
          %v927 = vcombine.low %v833, %v834
          %v929 = vunpack.c.l.s4 1983009808
          %v930 = vunpack.c.0.s8 %v929
          %v931 = vlaneseq
          %v932 = vshrl.u32 %v931, 7
          %v933 = vsub.s32 %v930, %v932
          %v934 = vrot.slane %v927, %v933
          %v935 = vcombine.low %v910, %v918
          %v936 = vcombine.high %v910, %v918
          %v938 = vunpack.c.l.s4 1934713408
          %v939 = vunpack.c.0.s8 %v938
          %v940 = vlaneseq
          %v941 = vshrl.u32 %v940, 7
          %v942 = vsub.s32 %v939, %v941
          %v943 = vrot.slane %v935, %v942
          %v945 = vunpack.c.l.s4 1934713408
          %v946 = vunpack.c.0.s8 %v945
          %v947 = vlaneseq
          %v948 = vshrl.u32 %v947, 7
          %v949 = vsub.s32 %v946, %v948
          %v950 = vrot.slane %v936, %v949
          %v951 = vcombine.low %v926, %v934
          %v952 = vcombine.high %v926, %v934
          %v954 = vunpack.c.l.s4 1934713408
          %v955 = vunpack.c.0.s8 %v954
          %v956 = vlaneseq
          %v957 = vshrl.u32 %v956, 7
          %v958 = vsub.s32 %v955, %v957
          %v959 = vrot.slane %v951, %v958
          %v961 = vunpack.c.l.s4 1934713408
          %v962 = vunpack.c.0.s8 %v961
          %v963 = vlaneseq
          %v964 = vshrl.u32 %v963, 7
          %v965 = vsub.s32 %v962, %v964
          %v966 = vrot.slane %v952, %v965
          %v967 = vcombine.low %v943, %v959
          %v968 = vcombine.high %v943, %v959
          %v969 = vcombine.low %v950, %v966
          %v970 = vcombine.high %v950, %v966
          %v971 = vcombine.low %v875, %v882
          %v973 = vunpack.c.l.s4 1983009808
          %v974 = vunpack.c.0.s8 %v973
          %v975 = vlaneseq
          %v976 = vshrl.u32 %v975, 7
          %v977 = vsub.s32 %v974, %v976
          %v978 = vrot.slane %v971, %v977
          %v979 = vcombine.low %v899, %v900
          %v981 = vunpack.c.l.s4 1983009808
          %v982 = vunpack.c.0.s8 %v981
          %v983 = vlaneseq
          %v984 = vshrl.u32 %v983, 7
          %v985 = vsub.s32 %v982, %v984
          %v986 = vrot.slane %v979, %v985
          %v987 = vcombine.low %v891, %v898
          %v989 = vunpack.c.l.s4 1983009808
          %v990 = vunpack.c.0.s8 %v989
          %v991 = vlaneseq
          %v992 = vshrl.u32 %v991, 7
          %v993 = vsub.s32 %v990, %v992
          %v994 = vrot.slane %v987, %v993
          %v995 = vcombine.low %v901, %v902
          %v997 = vunpack.c.l.s4 1983009808
          %v998 = vunpack.c.0.s8 %v997
          %v999 = vlaneseq
          %v1000 = vshrl.u32 %v999, 7
          %v1001 = vsub.s32 %v998, %v1000
          %v1002 = vrot.slane %v995, %v1001
          %v1003 = vcombine.low %v978, %v986
          %v1004 = vcombine.high %v978, %v986
          %v1006 = vunpack.c.l.s4 1934713408
          %v1007 = vunpack.c.0.s8 %v1006
          %v1008 = vlaneseq
          %v1009 = vshrl.u32 %v1008, 7
          %v1010 = vsub.s32 %v1007, %v1009
          %v1011 = vrot.slane %v1003, %v1010
          %v1013 = vunpack.c.l.s4 1934713408
          %v1014 = vunpack.c.0.s8 %v1013
          %v1015 = vlaneseq
          %v1016 = vshrl.u32 %v1015, 7
          %v1017 = vsub.s32 %v1014, %v1016
          %v1018 = vrot.slane %v1004, %v1017
          %v1019 = vcombine.low %v994, %v1002
          %v1020 = vcombine.high %v994, %v1002
          %v1022 = vunpack.c.l.s4 1934713408
          %v1023 = vunpack.c.0.s8 %v1022
          %v1024 = vlaneseq
          %v1025 = vshrl.u32 %v1024, 7
          %v1026 = vsub.s32 %v1023, %v1025
          %v1027 = vrot.slane %v1019, %v1026
          %v1029 = vunpack.c.l.s4 1934713408
          %v1030 = vunpack.c.0.s8 %v1029
          %v1031 = vlaneseq
          %v1032 = vshrl.u32 %v1031, 7
          %v1033 = vsub.s32 %v1030, %v1032
          %v1034 = vrot.slane %v1020, %v1033
          %v1035 = vcombine.low %v1011, %v1027
          %v1036 = vcombine.high %v1011, %v1027
          %v1037 = vcombine.low %v1018, %v1034
          %v1038 = vcombine.high %v1018, %v1034
          %vm1039 = vcmask 64512
          %1040 = vst.msk [vmem:[#allocation2] sm:$0xff] %vm1039, %v967
          %1041 = vst.msk [vmem:[#allocation2 + $0x8] sm:$0xff] %vm1039, %v1035
          %1042 = vst.msk [vmem:[#allocation2 + $0x10] sm:$0xff] %vm1039, %v968
          %1043 = vst.msk [vmem:[#allocation2 + $0x18] sm:$0xff] %vm1039, %v1036
          %1044 = vst.msk [vmem:[#allocation2 + $0x20] sm:$0xff] %vm1039, %v969
          %1045 = vst.msk [vmem:[#allocation2 + $0x28] sm:$0xff] %vm1039, %v1037
          %1046 = vst.msk [vmem:[#allocation2 + $0x30] sm:$0xff] %vm1039, %v970
          %1047 = vst.msk [vmem:[#allocation2 + $0x38] sm:$0xff] %vm1039, %v1038
          %1050 = vrot.lane.b32.xlu0 %v739, 120
          %v1051 = vpop.permute.xlu0 %1050
          %1052 = vrot.lane.b32.xlu0 %v744, 120
          %v1053 = vpop.permute.xlu0 %1052
          %1056 = vrot.lane.b32.xlu0 %v739, 112
          %v1057 = vpop.permute.xlu0 %1056
          %1058 = vrot.lane.b32.xlu0 %v744, 112
          %v1059 = vpop.permute.xlu0 %1058
          %1062 = vrot.lane.b32.xlu0 %v739, 104
          %v1063 = vpop.permute.xlu0 %1062
          %1064 = vrot.lane.b32.xlu0 %v744, 104
          %v1065 = vpop.permute.xlu0 %1064
          %v1068 = vcombine.low %v739, %v1057
          %v1069 = vcombine.high %v739, %v1057
          %v1071 = vunpack.c.l.s4 1983009808
          %v1072 = vunpack.c.0.s8 %v1071
          %v1073 = vlaneseq
          %v1074 = vshrl.u32 %v1073, 7
          %v1075 = vsub.s32 %v1072, %v1074
          %v1076 = vrot.slane %v1068, %v1075
          %v1078 = vunpack.c.l.s4 1983009808
          %v1079 = vunpack.c.0.s8 %v1078
          %v1080 = vlaneseq
          %v1081 = vshrl.u32 %v1080, 7
          %v1082 = vsub.s32 %v1079, %v1081
          %v1083 = vrot.slane %v1069, %v1082
          %v1084 = vcombine.low %v1051, %v1063
          %v1085 = vcombine.high %v1051, %v1063
          %v1087 = vunpack.c.l.s4 1983009808
          %v1088 = vunpack.c.0.s8 %v1087
          %v1089 = vlaneseq
          %v1090 = vshrl.u32 %v1089, 7
          %v1091 = vsub.s32 %v1088, %v1090
          %v1092 = vrot.slane %v1084, %v1091
          %v1094 = vunpack.c.l.s4 1983009808
          %v1095 = vunpack.c.0.s8 %v1094
          %v1096 = vlaneseq
          %v1097 = vshrl.u32 %v1096, 7
          %v1098 = vsub.s32 %v1095, %v1097
          %v1099 = vrot.slane %v1085, %v1098
          %v1100 = vcombine.low %v1076, %v1092
          %v1101 = vcombine.high %v1076, %v1092
          %v1103 = vunpack.c.l.s4 1934713408
          %v1104 = vunpack.c.0.s8 %v1103
          %v1105 = vlaneseq
          %v1106 = vshrl.u32 %v1105, 7
          %v1107 = vsub.s32 %v1104, %v1106
          %v1108 = vrot.slane %v1100, %v1107
          %v1110 = vunpack.c.l.s4 1934713408
          %v1111 = vunpack.c.0.s8 %v1110
          %v1112 = vlaneseq
          %v1113 = vshrl.u32 %v1112, 7
          %v1114 = vsub.s32 %v1111, %v1113
          %v1115 = vrot.slane %v1101, %v1114
          %v1116 = vcombine.low %v1083, %v1099
          %v1117 = vcombine.high %v1083, %v1099
          %v1119 = vunpack.c.l.s4 1934713408
          %v1120 = vunpack.c.0.s8 %v1119
          %v1121 = vlaneseq
          %v1122 = vshrl.u32 %v1121, 7
          %v1123 = vsub.s32 %v1120, %v1122
          %v1124 = vrot.slane %v1116, %v1123
          %v1126 = vunpack.c.l.s4 1934713408
          %v1127 = vunpack.c.0.s8 %v1126
          %v1128 = vlaneseq
          %v1129 = vshrl.u32 %v1128, 7
          %v1130 = vsub.s32 %v1127, %v1129
          %v1131 = vrot.slane %v1117, %v1130
          %v1132 = vcombine.high %v1108, 0.0
          %v1133 = vcombine.high %v1115, 0.0
          %v1134 = vcombine.high %v1124, 0.0
          %v1135 = vcombine.high %v1131, 0.0
          %v1136 = vcombine.low %v744, %v1059
          %v1137 = vcombine.high %v744, %v1059
          %v1139 = vunpack.c.l.s4 1983009808
          %v1140 = vunpack.c.0.s8 %v1139
          %v1141 = vlaneseq
          %v1142 = vshrl.u32 %v1141, 7
          %v1143 = vsub.s32 %v1140, %v1142
          %v1144 = vrot.slane %v1136, %v1143
          %v1146 = vunpack.c.l.s4 1983009808
          %v1147 = vunpack.c.0.s8 %v1146
          %v1148 = vlaneseq
          %v1149 = vshrl.u32 %v1148, 7
          %v1150 = vsub.s32 %v1147, %v1149
          %v1151 = vrot.slane %v1137, %v1150
          %v1152 = vcombine.low %v1053, %v1065
          %v1153 = vcombine.high %v1053, %v1065
          %v1155 = vunpack.c.l.s4 1983009808
          %v1156 = vunpack.c.0.s8 %v1155
          %v1157 = vlaneseq
          %v1158 = vshrl.u32 %v1157, 7
          %v1159 = vsub.s32 %v1156, %v1158
          %v1160 = vrot.slane %v1152, %v1159
          %v1162 = vunpack.c.l.s4 1983009808
          %v1163 = vunpack.c.0.s8 %v1162
          %v1164 = vlaneseq
          %v1165 = vshrl.u32 %v1164, 7
          %v1166 = vsub.s32 %v1163, %v1165
          %v1167 = vrot.slane %v1153, %v1166
          %v1168 = vcombine.low %v1144, %v1160
          %v1169 = vcombine.high %v1144, %v1160
          %v1171 = vunpack.c.l.s4 1934713408
          %v1172 = vunpack.c.0.s8 %v1171
          %v1173 = vlaneseq
          %v1174 = vshrl.u32 %v1173, 7
          %v1175 = vsub.s32 %v1172, %v1174
          %v1176 = vrot.slane %v1168, %v1175
          %v1178 = vunpack.c.l.s4 1934713408
          %v1179 = vunpack.c.0.s8 %v1178
          %v1180 = vlaneseq
          %v1181 = vshrl.u32 %v1180, 7
          %v1182 = vsub.s32 %v1179, %v1181
          %v1183 = vrot.slane %v1169, %v1182
          %v1184 = vcombine.low %v1151, %v1167
          %v1185 = vcombine.high %v1151, %v1167
          %v1187 = vunpack.c.l.s4 1934713408
          %v1188 = vunpack.c.0.s8 %v1187
          %v1189 = vlaneseq
          %v1190 = vshrl.u32 %v1189, 7
          %v1191 = vsub.s32 %v1188, %v1190
          %v1192 = vrot.slane %v1184, %v1191
          %v1194 = vunpack.c.l.s4 1934713408
          %v1195 = vunpack.c.0.s8 %v1194
          %v1196 = vlaneseq
          %v1197 = vshrl.u32 %v1196, 7
          %v1198 = vsub.s32 %v1195, %v1197
          %v1199 = vrot.slane %v1185, %v1198
          %v1200 = vcombine.high %v1176, 0.0
          %v1201 = vcombine.high %v1183, 0.0
          %v1202 = vcombine.high %v1192, 0.0
          %v1203 = vcombine.high %v1199, 0.0
          %v1204 = vcombine.low %v1108, %v1115
          %v1206 = vunpack.c.l.s4 1983009808
          %v1207 = vunpack.c.0.s8 %v1206
          %v1208 = vlaneseq
          %v1209 = vshrl.u32 %v1208, 7
          %v1210 = vsub.s32 %v1207, %v1209
          %v1211 = vrot.slane %v1204, %v1210
          %v1212 = vcombine.low %v1132, %v1133
          %v1214 = vunpack.c.l.s4 1983009808
          %v1215 = vunpack.c.0.s8 %v1214
          %v1216 = vlaneseq
          %v1217 = vshrl.u32 %v1216, 7
          %v1218 = vsub.s32 %v1215, %v1217
          %v1219 = vrot.slane %v1212, %v1218
          %v1220 = vcombine.low %v1124, %v1131
          %v1222 = vunpack.c.l.s4 1983009808
          %v1223 = vunpack.c.0.s8 %v1222
          %v1224 = vlaneseq
          %v1225 = vshrl.u32 %v1224, 7
          %v1226 = vsub.s32 %v1223, %v1225
          %v1227 = vrot.slane %v1220, %v1226
          %v1228 = vcombine.low %v1134, %v1135
          %v1230 = vunpack.c.l.s4 1983009808
          %v1231 = vunpack.c.0.s8 %v1230
          %v1232 = vlaneseq
          %v1233 = vshrl.u32 %v1232, 7
          %v1234 = vsub.s32 %v1231, %v1233
          %v1235 = vrot.slane %v1228, %v1234
          %v1236 = vcombine.low %v1211, %v1219
          %v1237 = vcombine.high %v1211, %v1219
          %v1239 = vunpack.c.l.s4 1934713408
          %v1240 = vunpack.c.0.s8 %v1239
          %v1241 = vlaneseq
          %v1242 = vshrl.u32 %v1241, 7
          %v1243 = vsub.s32 %v1240, %v1242
          %v1244 = vrot.slane %v1236, %v1243
          %v1246 = vunpack.c.l.s4 1934713408
          %v1247 = vunpack.c.0.s8 %v1246
          %v1248 = vlaneseq
          %v1249 = vshrl.u32 %v1248, 7
          %v1250 = vsub.s32 %v1247, %v1249
          %v1251 = vrot.slane %v1237, %v1250
          %v1252 = vcombine.low %v1227, %v1235
          %v1253 = vcombine.high %v1227, %v1235
          %v1255 = vunpack.c.l.s4 1934713408
          %v1256 = vunpack.c.0.s8 %v1255
          %v1257 = vlaneseq
          %v1258 = vshrl.u32 %v1257, 7
          %v1259 = vsub.s32 %v1256, %v1258
          %v1260 = vrot.slane %v1252, %v1259
          %v1262 = vunpack.c.l.s4 1934713408
          %v1263 = vunpack.c.0.s8 %v1262
          %v1264 = vlaneseq
          %v1265 = vshrl.u32 %v1264, 7
          %v1266 = vsub.s32 %v1263, %v1265
          %v1267 = vrot.slane %v1253, %v1266
          %v1268 = vcombine.low %v1244, %v1260
          %v1269 = vcombine.high %v1244, %v1260
          %v1270 = vcombine.low %v1251, %v1267
          %v1271 = vcombine.high %v1251, %v1267
          %v1272 = vcombine.low %v1176, %v1183
          %v1274 = vunpack.c.l.s4 1983009808
          %v1275 = vunpack.c.0.s8 %v1274
          %v1276 = vlaneseq
          %v1277 = vshrl.u32 %v1276, 7
          %v1278 = vsub.s32 %v1275, %v1277
          %v1279 = vrot.slane %v1272, %v1278
          %v1280 = vcombine.low %v1200, %v1201
          %v1282 = vunpack.c.l.s4 1983009808
          %v1283 = vunpack.c.0.s8 %v1282
          %v1284 = vlaneseq
          %v1285 = vshrl.u32 %v1284, 7
          %v1286 = vsub.s32 %v1283, %v1285
          %v1287 = vrot.slane %v1280, %v1286
          %v1288 = vcombine.low %v1192, %v1199
          %v1290 = vunpack.c.l.s4 1983009808
          %v1291 = vunpack.c.0.s8 %v1290
          %v1292 = vlaneseq
          %v1293 = vshrl.u32 %v1292, 7
          %v1294 = vsub.s32 %v1291, %v1293
          %v1295 = vrot.slane %v1288, %v1294
          %v1296 = vcombine.low %v1202, %v1203
          %v1298 = vunpack.c.l.s4 1983009808
          %v1299 = vunpack.c.0.s8 %v1298
          %v1300 = vlaneseq
          %v1301 = vshrl.u32 %v1300, 7
          %v1302 = vsub.s32 %v1299, %v1301
          %v1303 = vrot.slane %v1296, %v1302
          %v1304 = vcombine.low %v1279, %v1287
          %v1305 = vcombine.high %v1279, %v1287
          %v1307 = vunpack.c.l.s4 1934713408
          %v1308 = vunpack.c.0.s8 %v1307
          %v1309 = vlaneseq
          %v1310 = vshrl.u32 %v1309, 7
          %v1311 = vsub.s32 %v1308, %v1310
          %v1312 = vrot.slane %v1304, %v1311
          %v1314 = vunpack.c.l.s4 1934713408
          %v1315 = vunpack.c.0.s8 %v1314
          %v1316 = vlaneseq
          %v1317 = vshrl.u32 %v1316, 7
          %v1318 = vsub.s32 %v1315, %v1317
          %v1319 = vrot.slane %v1305, %v1318
          %v1320 = vcombine.low %v1295, %v1303
          %v1321 = vcombine.high %v1295, %v1303
          %v1323 = vunpack.c.l.s4 1934713408
          %v1324 = vunpack.c.0.s8 %v1323
          %v1325 = vlaneseq
          %v1326 = vshrl.u32 %v1325, 7
          %v1327 = vsub.s32 %v1324, %v1326
          %v1328 = vrot.slane %v1320, %v1327
          %v1330 = vunpack.c.l.s4 1934713408
          %v1331 = vunpack.c.0.s8 %v1330
          %v1332 = vlaneseq
          %v1333 = vshrl.u32 %v1332, 7
          %v1334 = vsub.s32 %v1331, %v1333
          %v1335 = vrot.slane %v1321, %v1334
          %v1336 = vcombine.low %v1312, %v1328
          %v1337 = vcombine.high %v1312, %v1328
          %v1338 = vcombine.low %v1319, %v1335
          %v1339 = vcombine.high %v1319, %v1335
          %1340 = vst.msk [vmem:[#allocation3] sm:$0xff] %vm1039, %v1268
          %1341 = vst.msk [vmem:[#allocation3 + $0x8] sm:$0xff] %vm1039, %v1336
          %1342 = vst.msk [vmem:[#allocation3 + $0x10] sm:$0xff] %vm1039, %v1269
          %1343 = vst.msk [vmem:[#allocation3 + $0x18] sm:$0xff] %vm1039, %v1337
          %1344 = vst.msk [vmem:[#allocation3 + $0x20] sm:$0xff] %vm1039, %v1270
          %1345 = vst.msk [vmem:[#allocation3 + $0x28] sm:$0xff] %vm1039, %v1338
          %1346 = vst.msk [vmem:[#allocation3 + $0x30] sm:$0xff] %vm1039, %v1271
          %1347 = vst.msk [vmem:[#allocation3 + $0x38] sm:$0xff] %vm1039, %v1339
        $region96: #{tpu_custom_call.1} parent=63 // pred_fallthru
          _
        %v1348 = vld [vmem:[%s471] sm:$0xff]
        %v1349 = vld [vmem:[#allocation10] sm:$0xff]
        %v1350 = vld [vmem:[#allocation10 + $0x8] sm:$0xff]
        %v1351 = vld [vmem:[#allocation10 + $0x10] sm:$0xff]
        %v1352 = vld [vmem:[#allocation10 + $0x18] sm:$0xff]
        %v1353 = vld [vmem:[%s4] sm:$0x1]
        %v1355 = vlaneseq
        %v1356 = vshrl.u32 %v1355, 7
        %v1357 = vsub.s32 0, %v1356
        %v1358 = vrot.slane %v1353, %v1357
        %vm1360 = vcmask 261120
        %v1362 = vsel %vm1360, %v1348, 0
        %1364 = vmatprep.subr.mxu0 0.0
        %1365 = vmatpush1.msra.mxu0 0.0
        %1366 = vmatprep.subr.mxu0 0.0
        %1367 = vmatpush1.msra.mxu0 0.0
        %1368 = vmatprep.subr.mxu0 0.0
        %1369 = vmatpush1.msra.mxu0 0.0
        %1370 = vmatprep.subr.mxu0 0.0
        %1371 = vmatpush1.msra.mxu0 0.0
        %1372 = vmatprep.subr.mxu0 0.0
        %1373 = vmatpush1.msra.mxu0 0.0
        %1374 = vmatprep.subr.mxu0 0.0
        %1375 = vmatpush1.msra.mxu0 0.0
        %1376 = vmatprep.subr.mxu0 0.0
        %1377 = vmatpush1.msra.mxu0 0.0
        %1378 = vmatprep.subr.mxu0 0.0
        %1379 = vmatpush1.msra.mxu0 0.0
        %1380 = vmatprep.subr.mxu0 0.0
        %1381 = vmatpush1.msra.mxu0 0.0
        %1382 = vmatprep.subr.mxu0 0.0
        %1383 = vmatpush1.msra.mxu0 0.0
        %1384 = vmatprep.subr.mxu0 0.0
        %1385 = vmatpush1.msra.mxu0 0.0
        %1386 = vmatprep.subr.mxu0 0.0
        %1387 = vmatpush1.msra.mxu0 0.0
        %1388 = vmatprep.subr.mxu0 0.0
        %1389 = vmatpush1.msra.mxu0 %v1352
        %1390 = vmatprep.subr.mxu0 0.0
        %1391 = vmatpush1.msra.mxu0 %v1351
        %1392 = vmatprep.subr.mxu0 0.0
        %1393 = vmatpush1.msra.mxu0 %v1350
        %1394 = vmatprep.subr.mxu0 0.0
        %1395 = vmatpush1.msra.mxu0 %v1349
        %1396 = vmatprep.subr.mxu0 0.0
        %1397 = vmatpush2.msra.mxu0 0.0
        %1398 = vmatprep.subr.mxu0 0.0
        %1399 = vmatpush2.msra.mxu0 0.0
        %1400 = vmatprep.subr.mxu0 0.0
        %1401 = vmatpush2.msra.mxu0 0.0
        %1402 = vmatprep.subr.mxu0 0.0
        %1403 = vmatpush2.msra.mxu0 0.0
        %1404 = vmatprep.subr.mxu0 0.0
        %1405 = vmatpush2.msra.mxu0 0.0
        %1406 = vmatprep.subr.mxu0 0.0
        %1407 = vmatpush2.msra.mxu0 0.0
        %1408 = vmatprep.subr.mxu0 0.0
        %1409 = vmatpush2.msra.mxu0 0.0
        %1410 = vmatprep.subr.mxu0 0.0
        %1411 = vmatpush2.msra.mxu0 0.0
        %1412 = vmatprep.subr.mxu0 0.0
        %1413 = vmatpush2.msra.mxu0 0.0
        %1414 = vmatprep.subr.mxu0 0.0
        %1415 = vmatpush2.msra.mxu0 0.0
        %1416 = vmatprep.subr.mxu0 0.0
        %1417 = vmatpush2.msra.mxu0 0.0
        %1418 = vmatprep.subr.mxu0 0.0
        %1419 = vmatpush2.msra.mxu0 0.0
        %1420 = vmatprep.subr.mxu0 0.0
        %1421 = vmatpush2.msra.mxu0 0.0
        %1422 = vmatprep.subr.mxu0 0.0
        %1423 = vmatpush2.msra.mxu0 0.0
        %1424 = vmatprep.subr.mxu0 0.0
        %1425 = vmatpush2.msra.mxu0 0.0
        %1426 = vmatprep.subr.mxu0 0.0
        %1427 = vmatpush2.msra.mxu0 0.0
        %1428 = vmatprep.mubr.f32.mxu0 0.0
        %1429 = vmatmul.mubr.f32.gmra.mxu0 %v1362
        %v1430 = vpop.f32.mrf.mxu0
        %v1431 = vadd.f32 %v1358, %v1430
        %v1432 = vpop.f32.mrf.mxu0
        %1433 = vdwg.mxu0
        %1435 = vrot.lane.b32.xlu0 %v1431, 120
        %v1436 = vpop.permute.xlu0 %1435
        %1438 = vrot.lane.b32.xlu0 %v1431, 112
        %v1439 = vpop.permute.xlu0 %1438
        %1441 = vrot.lane.b32.xlu0 %v1431, 104
        %v1442 = vpop.permute.xlu0 %1441
        %v1444 = vcombine.low %v1431, %v1439
        %v1445 = vcombine.high %v1431, %v1439
        %v1447 = vunpack.c.l.s4 1983009808
        %v1448 = vunpack.c.0.s8 %v1447
        %v1449 = vlaneseq
        %v1450 = vshrl.u32 %v1449, 7
        %v1451 = vsub.s32 %v1448, %v1450
        %v1452 = vrot.slane %v1444, %v1451
        %v1454 = vunpack.c.l.s4 1983009808
        %v1455 = vunpack.c.0.s8 %v1454
        %v1456 = vlaneseq
        %v1457 = vshrl.u32 %v1456, 7
        %v1458 = vsub.s32 %v1455, %v1457
        %v1459 = vrot.slane %v1445, %v1458
        %v1460 = vcombine.low %v1436, %v1442
        %v1461 = vcombine.high %v1436, %v1442
        %v1463 = vunpack.c.l.s4 1983009808
        %v1464 = vunpack.c.0.s8 %v1463
        %v1465 = vlaneseq
        %v1466 = vshrl.u32 %v1465, 7
        %v1467 = vsub.s32 %v1464, %v1466
        %v1468 = vrot.slane %v1460, %v1467
        %v1470 = vunpack.c.l.s4 1983009808
        %v1471 = vunpack.c.0.s8 %v1470
        %v1472 = vlaneseq
        %v1473 = vshrl.u32 %v1472, 7
        %v1474 = vsub.s32 %v1471, %v1473
        %v1475 = vrot.slane %v1461, %v1474
        %v1476 = vcombine.low %v1452, %v1468
        %v1477 = vcombine.high %v1452, %v1468
        %v1479 = vunpack.c.l.s4 1934713408
        %v1480 = vunpack.c.0.s8 %v1479
        %v1481 = vlaneseq
        %v1482 = vshrl.u32 %v1481, 7
        %v1483 = vsub.s32 %v1480, %v1482
        %v1484 = vrot.slane %v1476, %v1483
        %v1486 = vunpack.c.l.s4 1934713408
        %v1487 = vunpack.c.0.s8 %v1486
        %v1488 = vlaneseq
        %v1489 = vshrl.u32 %v1488, 7
        %v1490 = vsub.s32 %v1487, %v1489
        %v1491 = vrot.slane %v1477, %v1490
        %v1492 = vcombine.low %v1459, %v1475
        %v1493 = vcombine.high %v1459, %v1475
        %v1495 = vunpack.c.l.s4 1934713408
        %v1496 = vunpack.c.0.s8 %v1495
        %v1497 = vlaneseq
        %v1498 = vshrl.u32 %v1497, 7
        %v1499 = vsub.s32 %v1496, %v1498
        %v1500 = vrot.slane %v1492, %v1499
        %v1502 = vunpack.c.l.s4 1934713408
        %v1503 = vunpack.c.0.s8 %v1502
        %v1504 = vlaneseq
        %v1505 = vshrl.u32 %v1504, 7
        %v1506 = vsub.s32 %v1503, %v1505
        %v1507 = vrot.slane %v1493, %v1506
        %v1508 = vcombine.high %v1484, 0.0
        %v1509 = vcombine.high %v1491, 0.0
        %v1510 = vcombine.high %v1500, 0.0
        %v1511 = vcombine.high %v1507, 0.0
        %v1512 = vcombine.low %v1484, %v1491
        %v1514 = vunpack.c.l.s4 1983009808
        %v1515 = vunpack.c.0.s8 %v1514
        %v1516 = vlaneseq
        %v1517 = vshrl.u32 %v1516, 7
        %v1518 = vsub.s32 %v1515, %v1517
        %v1519 = vrot.slane %v1512, %v1518
        %v1520 = vcombine.low %v1508, %v1509
        %v1522 = vunpack.c.l.s4 1983009808
        %v1523 = vunpack.c.0.s8 %v1522
        %v1524 = vlaneseq
        %v1525 = vshrl.u32 %v1524, 7
        %v1526 = vsub.s32 %v1523, %v1525
        %v1527 = vrot.slane %v1520, %v1526
        %v1528 = vcombine.low %v1500, %v1507
        %v1530 = vunpack.c.l.s4 1983009808
        %v1531 = vunpack.c.0.s8 %v1530
        %v1532 = vlaneseq
        %v1533 = vshrl.u32 %v1532, 7
        %v1534 = vsub.s32 %v1531, %v1533
        %v1535 = vrot.slane %v1528, %v1534
        %v1536 = vcombine.low %v1510, %v1511
        %v1538 = vunpack.c.l.s4 1983009808
        %v1539 = vunpack.c.0.s8 %v1538
        %v1540 = vlaneseq
        %v1541 = vshrl.u32 %v1540, 7
        %v1542 = vsub.s32 %v1539, %v1541
        %v1543 = vrot.slane %v1536, %v1542
        %v1544 = vcombine.low %v1519, %v1527
        %v1545 = vcombine.high %v1519, %v1527
        %v1547 = vunpack.c.l.s4 1934713408
        %v1548 = vunpack.c.0.s8 %v1547
        %v1549 = vlaneseq
        %v1550 = vshrl.u32 %v1549, 7
        %v1551 = vsub.s32 %v1548, %v1550
        %v1552 = vrot.slane %v1544, %v1551
        %v1554 = vunpack.c.l.s4 1934713408
        %v1555 = vunpack.c.0.s8 %v1554
        %v1556 = vlaneseq
        %v1557 = vshrl.u32 %v1556, 7
        %v1558 = vsub.s32 %v1555, %v1557
        %v1559 = vrot.slane %v1545, %v1558
        %v1560 = vcombine.low %v1535, %v1543
        %v1561 = vcombine.high %v1535, %v1543
        %v1563 = vunpack.c.l.s4 1934713408
        %v1564 = vunpack.c.0.s8 %v1563
        %v1565 = vlaneseq
        %v1566 = vshrl.u32 %v1565, 7
        %v1567 = vsub.s32 %v1564, %v1566
        %v1568 = vrot.slane %v1560, %v1567
        %v1570 = vunpack.c.l.s4 1934713408
        %v1571 = vunpack.c.0.s8 %v1570
        %v1572 = vlaneseq
        %v1573 = vshrl.u32 %v1572, 7
        %v1574 = vsub.s32 %v1571, %v1573
        %v1575 = vrot.slane %v1561, %v1574
        %v1576 = vcombine.low %v1552, %v1568
        %v1577 = vcombine.high %v1552, %v1568
        %v1578 = vcombine.low %v1559, %v1575
        %v1579 = vcombine.high %v1559, %v1575
        %v1580 = vld [vmem:[#allocation2] sm:$0xff]
        %v1581 = vld [vmem:[#allocation2 + $0x8] sm:$0xff]
        %v1582 = vld [vmem:[#allocation2 + $0x10] sm:$0xff]
        %v1583 = vld [vmem:[#allocation2 + $0x18] sm:$0xff]
        %v1584 = vld [vmem:[#allocation2 + $0x20] sm:$0xff]
        %v1585 = vld [vmem:[#allocation2 + $0x28] sm:$0xff]
        %v1586 = vld [vmem:[#allocation2 + $0x30] sm:$0xff]
        %v1587 = vld [vmem:[#allocation2 + $0x38] sm:$0xff]
        %v1588 = vld [vmem:[#allocation3] sm:$0xff]
        %v1589 = vld [vmem:[#allocation3 + $0x8] sm:$0xff]
        %v1590 = vld [vmem:[#allocation3 + $0x10] sm:$0xff]
        %v1591 = vld [vmem:[#allocation3 + $0x18] sm:$0xff]
        %v1592 = vld [vmem:[#allocation3 + $0x20] sm:$0xff]
        %v1593 = vld [vmem:[#allocation3 + $0x28] sm:$0xff]
        %v1594 = vld [vmem:[#allocation3 + $0x30] sm:$0xff]
        %v1595 = vld [vmem:[#allocation3 + $0x38] sm:$0xff]
        %vm1596 = vcmask 64512
        %v1598 = vsel %vm1596, %v1576, 0
        %v1601 = vsel %vm1596, %v1580, 0
        %v1604 = vsel %vm1596, %v1581, 0
        %1606 = vmatprep.subr.mxu0 0.0
        %1607 = vmatpush1.xpose.msra.mxu0 0.0
        %1608 = vmatprep.subr.mxu0 0.0
        %1609 = vmatpush1.xpose.msra.mxu0 0.0
        %1610 = vmatprep.subr.mxu0 0.0
        %1611 = vmatpush1.xpose.msra.mxu0 0.0
        %1612 = vmatprep.subr.mxu0 0.0
        %1613 = vmatpush1.xpose.msra.mxu0 0.0
        %1614 = vmatprep.subr.mxu0 0.0
        %1615 = vmatpush1.xpose.msra.mxu0 0.0
        %1616 = vmatprep.subr.mxu0 0.0
        %1617 = vmatpush1.xpose.msra.mxu0 0.0
        %1618 = vmatprep.subr.mxu0 0.0
        %1619 = vmatpush1.xpose.msra.mxu0 0.0
        %1620 = vmatprep.subr.mxu0 0.0
        %1621 = vmatpush1.xpose.msra.mxu0 0.0
        %1622 = vmatprep.subr.mxu0 0.0
        %1623 = vmatpush1.xpose.msra.mxu0 0.0
        %1624 = vmatprep.subr.mxu0 0.0
        %1625 = vmatpush1.xpose.msra.mxu0 0.0
        %1626 = vmatprep.subr.mxu0 0.0
        %1627 = vmatpush1.xpose.msra.mxu0 0.0
        %1628 = vmatprep.subr.mxu0 0.0
        %1629 = vmatpush1.xpose.msra.mxu0 0.0
        %1630 = vmatprep.subr.mxu0 0.0
        %1631 = vmatpush1.xpose.msra.mxu0 0.0
        %1632 = vmatprep.subr.mxu0 0.0
        %1633 = vmatpush1.xpose.msra.mxu0 0.0
        %1634 = vmatprep.subr.mxu0 0.0
        %1635 = vmatpush1.xpose.msra.mxu0 %v1604
        %1636 = vmatprep.subr.mxu0 0.0
        %1637 = vmatpush1.xpose.msra.mxu0 %v1601
        %1638 = vmatprep.subr.mxu0 0.0
        %1639 = vmatpush2.xpose.msra.mxu0 0.0
        %1640 = vmatprep.subr.mxu0 0.0
        %1641 = vmatpush2.xpose.msra.mxu0 0.0
        %1642 = vmatprep.subr.mxu0 0.0
        %1643 = vmatpush2.xpose.msra.mxu0 0.0
        %1644 = vmatprep.subr.mxu0 0.0
        %1645 = vmatpush2.xpose.msra.mxu0 0.0
        %1646 = vmatprep.subr.mxu0 0.0
        %1647 = vmatpush2.xpose.msra.mxu0 0.0
        %1648 = vmatprep.subr.mxu0 0.0
        %1649 = vmatpush2.xpose.msra.mxu0 0.0
        %1650 = vmatprep.subr.mxu0 0.0
        %1651 = vmatpush2.xpose.msra.mxu0 0.0
        %1652 = vmatprep.subr.mxu0 0.0
        %1653 = vmatpush2.xpose.msra.mxu0 0.0
        %1654 = vmatprep.subr.mxu0 0.0
        %1655 = vmatpush2.xpose.msra.mxu0 0.0
        %1656 = vmatprep.subr.mxu0 0.0
        %1657 = vmatpush2.xpose.msra.mxu0 0.0
        %1658 = vmatprep.subr.mxu0 0.0
        %1659 = vmatpush2.xpose.msra.mxu0 0.0
        %1660 = vmatprep.subr.mxu0 0.0
        %1661 = vmatpush2.xpose.msra.mxu0 0.0
        %1662 = vmatprep.subr.mxu0 0.0
        %1663 = vmatpush2.xpose.msra.mxu0 0.0
        %1664 = vmatprep.subr.mxu0 0.0
        %1665 = vmatpush2.xpose.msra.mxu0 0.0
        %1666 = vmatprep.subr.mxu0 0.0
        %1667 = vmatpush2.xpose.msra.mxu0 0.0
        %1668 = vmatprep.subr.mxu0 0.0
        %1669 = vmatpush2.xpose.msra.mxu0 0.0
        %1670 = vmatprep.mubr.f32.mxu0 0.0
        %1671 = vmatmul.mubr.f32.gmra.mxu0 %v1598
        %v1672 = vpop.f32.mrf.mxu0
        %v1673 = vadd.f32 0.0, %v1672
        %v1674 = vpop.f32.mrf.mxu0
        %1675 = vdwg.mxu0
        %v1677 = vsel %vm1596, %v1577, 0
        %v1680 = vsel %vm1596, %v1582, 0
        %v1683 = vsel %vm1596, %v1583, 0
        %1685 = vmatprep.subr.mxu0 0.0
        %1686 = vmatpush1.xpose.msra.mxu0 0.0
        %1687 = vmatprep.subr.mxu0 0.0
        %1688 = vmatpush1.xpose.msra.mxu0 0.0
        %1689 = vmatprep.subr.mxu0 0.0
        %1690 = vmatpush1.xpose.msra.mxu0 0.0
        %1691 = vmatprep.subr.mxu0 0.0
        %1692 = vmatpush1.xpose.msra.mxu0 0.0
        %1693 = vmatprep.subr.mxu0 0.0
        %1694 = vmatpush1.xpose.msra.mxu0 0.0
        %1695 = vmatprep.subr.mxu0 0.0
        %1696 = vmatpush1.xpose.msra.mxu0 0.0
        %1697 = vmatprep.subr.mxu0 0.0
        %1698 = vmatpush1.xpose.msra.mxu0 0.0
        %1699 = vmatprep.subr.mxu0 0.0
        %1700 = vmatpush1.xpose.msra.mxu0 0.0
        %1701 = vmatprep.subr.mxu0 0.0
        %1702 = vmatpush1.xpose.msra.mxu0 0.0
        %1703 = vmatprep.subr.mxu0 0.0
        %1704 = vmatpush1.xpose.msra.mxu0 0.0
        %1705 = vmatprep.subr.mxu0 0.0
        %1706 = vmatpush1.xpose.msra.mxu0 0.0
        %1707 = vmatprep.subr.mxu0 0.0
        %1708 = vmatpush1.xpose.msra.mxu0 0.0
        %1709 = vmatprep.subr.mxu0 0.0
        %1710 = vmatpush1.xpose.msra.mxu0 0.0
        %1711 = vmatprep.subr.mxu0 0.0
        %1712 = vmatpush1.xpose.msra.mxu0 0.0
        %1713 = vmatprep.subr.mxu0 0.0
        %1714 = vmatpush1.xpose.msra.mxu0 %v1683
        %1715 = vmatprep.subr.mxu0 0.0
        %1716 = vmatpush1.xpose.msra.mxu0 %v1680
        %1717 = vmatprep.subr.mxu0 0.0
        %1718 = vmatpush2.xpose.msra.mxu0 0.0
        %1719 = vmatprep.subr.mxu0 0.0
        %1720 = vmatpush2.xpose.msra.mxu0 0.0
        %1721 = vmatprep.subr.mxu0 0.0
        %1722 = vmatpush2.xpose.msra.mxu0 0.0
        %1723 = vmatprep.subr.mxu0 0.0
        %1724 = vmatpush2.xpose.msra.mxu0 0.0
        %1725 = vmatprep.subr.mxu0 0.0
        %1726 = vmatpush2.xpose.msra.mxu0 0.0
        %1727 = vmatprep.subr.mxu0 0.0
        %1728 = vmatpush2.xpose.msra.mxu0 0.0
        %1729 = vmatprep.subr.mxu0 0.0
        %1730 = vmatpush2.xpose.msra.mxu0 0.0
        %1731 = vmatprep.subr.mxu0 0.0
        %1732 = vmatpush2.xpose.msra.mxu0 0.0
        %1733 = vmatprep.subr.mxu0 0.0
        %1734 = vmatpush2.xpose.msra.mxu0 0.0
        %1735 = vmatprep.subr.mxu0 0.0
        %1736 = vmatpush2.xpose.msra.mxu0 0.0
        %1737 = vmatprep.subr.mxu0 0.0
        %1738 = vmatpush2.xpose.msra.mxu0 0.0
        %1739 = vmatprep.subr.mxu0 0.0
        %1740 = vmatpush2.xpose.msra.mxu0 0.0
        %1741 = vmatprep.subr.mxu0 0.0
        %1742 = vmatpush2.xpose.msra.mxu0 0.0
        %1743 = vmatprep.subr.mxu0 0.0
        %1744 = vmatpush2.xpose.msra.mxu0 0.0
        %1745 = vmatprep.subr.mxu0 0.0
        %1746 = vmatpush2.xpose.msra.mxu0 0.0
        %1747 = vmatprep.subr.mxu0 0.0
        %1748 = vmatpush2.xpose.msra.mxu0 0.0
        %1749 = vmatprep.mubr.f32.mxu0 0.0
        %1750 = vmatmul.mubr.f32.gmra.mxu0 %v1677
        %v1751 = vpop.f32.mrf.mxu0
        %v1752 = vadd.f32 0.0, %v1751
        %v1753 = vpop.f32.mrf.mxu0
        %1754 = vdwg.mxu0
        %v1756 = vsel %vm1596, %v1578, 0
        %v1759 = vsel %vm1596, %v1584, 0
        %v1762 = vsel %vm1596, %v1585, 0
        %1764 = vmatprep.subr.mxu0 0.0
        %1765 = vmatpush1.xpose.msra.mxu0 0.0
        %1766 = vmatprep.subr.mxu0 0.0
        %1767 = vmatpush1.xpose.msra.mxu0 0.0
        %1768 = vmatprep.subr.mxu0 0.0
        %1769 = vmatpush1.xpose.msra.mxu0 0.0
        %1770 = vmatprep.subr.mxu0 0.0
        %1771 = vmatpush1.xpose.msra.mxu0 0.0
        %1772 = vmatprep.subr.mxu0 0.0
        %1773 = vmatpush1.xpose.msra.mxu0 0.0
        %1774 = vmatprep.subr.mxu0 0.0
        %1775 = vmatpush1.xpose.msra.mxu0 0.0
        %1776 = vmatprep.subr.mxu0 0.0
        %1777 = vmatpush1.xpose.msra.mxu0 0.0
        %1778 = vmatprep.subr.mxu0 0.0
        %1779 = vmatpush1.xpose.msra.mxu0 0.0
        %1780 = vmatprep.subr.mxu0 0.0
        %1781 = vmatpush1.xpose.msra.mxu0 0.0
        %1782 = vmatprep.subr.mxu0 0.0
        %1783 = vmatpush1.xpose.msra.mxu0 0.0
        %1784 = vmatprep.subr.mxu0 0.0
        %1785 = vmatpush1.xpose.msra.mxu0 0.0
        %1786 = vmatprep.subr.mxu0 0.0
        %1787 = vmatpush1.xpose.msra.mxu0 0.0
        %1788 = vmatprep.subr.mxu0 0.0
        %1789 = vmatpush1.xpose.msra.mxu0 0.0
        %1790 = vmatprep.subr.mxu0 0.0
        %1791 = vmatpush1.xpose.msra.mxu0 0.0
        %1792 = vmatprep.subr.mxu0 0.0
        %1793 = vmatpush1.xpose.msra.mxu0 %v1762
        %1794 = vmatprep.subr.mxu0 0.0
        %1795 = vmatpush1.xpose.msra.mxu0 %v1759
        %1796 = vmatprep.subr.mxu0 0.0
        %1797 = vmatpush2.xpose.msra.mxu0 0.0
        %1798 = vmatprep.subr.mxu0 0.0
        %1799 = vmatpush2.xpose.msra.mxu0 0.0
        %1800 = vmatprep.subr.mxu0 0.0
        %1801 = vmatpush2.xpose.msra.mxu0 0.0
        %1802 = vmatprep.subr.mxu0 0.0
        %1803 = vmatpush2.xpose.msra.mxu0 0.0
        %1804 = vmatprep.subr.mxu0 0.0
        %1805 = vmatpush2.xpose.msra.mxu0 0.0
        %1806 = vmatprep.subr.mxu0 0.0
        %1807 = vmatpush2.xpose.msra.mxu0 0.0
        %1808 = vmatprep.subr.mxu0 0.0
        %1809 = vmatpush2.xpose.msra.mxu0 0.0
        %1810 = vmatprep.subr.mxu0 0.0
        %1811 = vmatpush2.xpose.msra.mxu0 0.0
        %1812 = vmatprep.subr.mxu0 0.0
        %1813 = vmatpush2.xpose.msra.mxu0 0.0
        %1814 = vmatprep.subr.mxu0 0.0
        %1815 = vmatpush2.xpose.msra.mxu0 0.0
        %1816 = vmatprep.subr.mxu0 0.0
        %1817 = vmatpush2.xpose.msra.mxu0 0.0
        %1818 = vmatprep.subr.mxu0 0.0
        %1819 = vmatpush2.xpose.msra.mxu0 0.0
        %1820 = vmatprep.subr.mxu0 0.0
        %1821 = vmatpush2.xpose.msra.mxu0 0.0
        %1822 = vmatprep.subr.mxu0 0.0
        %1823 = vmatpush2.xpose.msra.mxu0 0.0
        %1824 = vmatprep.subr.mxu0 0.0
        %1825 = vmatpush2.xpose.msra.mxu0 0.0
        %1826 = vmatprep.subr.mxu0 0.0
        %1827 = vmatpush2.xpose.msra.mxu0 0.0
        %1828 = vmatprep.mubr.f32.mxu0 0.0
        %1829 = vmatmul.mubr.f32.gmra.mxu0 %v1756
        %v1830 = vpop.f32.mrf.mxu0
        %v1831 = vadd.f32 0.0, %v1830
        %v1832 = vpop.f32.mrf.mxu0
        %1833 = vdwg.mxu0
        %v1835 = vsel %vm1596, %v1579, 0
        %v1838 = vsel %vm1596, %v1586, 0
        %v1841 = vsel %vm1596, %v1587, 0
        %1843 = vmatprep.subr.mxu0 0.0
        %1844 = vmatpush1.xpose.msra.mxu0 0.0
        %1845 = vmatprep.subr.mxu0 0.0
        %1846 = vmatpush1.xpose.msra.mxu0 0.0
        %1847 = vmatprep.subr.mxu0 0.0
        %1848 = vmatpush1.xpose.msra.mxu0 0.0
        %1849 = vmatprep.subr.mxu0 0.0
        %1850 = vmatpush1.xpose.msra.mxu0 0.0
        %1851 = vmatprep.subr.mxu0 0.0
        %1852 = vmatpush1.xpose.msra.mxu0 0.0
        %1853 = vmatprep.subr.mxu0 0.0
        %1854 = vmatpush1.xpose.msra.mxu0 0.0
        %1855 = vmatprep.subr.mxu0 0.0
        %1856 = vmatpush1.xpose.msra.mxu0 0.0
        %1857 = vmatprep.subr.mxu0 0.0
        %1858 = vmatpush1.xpose.msra.mxu0 0.0
        %1859 = vmatprep.subr.mxu0 0.0
        %1860 = vmatpush1.xpose.msra.mxu0 0.0
        %1861 = vmatprep.subr.mxu0 0.0
        %1862 = vmatpush1.xpose.msra.mxu0 0.0
        %1863 = vmatprep.subr.mxu0 0.0
        %1864 = vmatpush1.xpose.msra.mxu0 0.0
        %1865 = vmatprep.subr.mxu0 0.0
        %1866 = vmatpush1.xpose.msra.mxu0 0.0
        %1867 = vmatprep.subr.mxu0 0.0
        %1868 = vmatpush1.xpose.msra.mxu0 0.0
        %1869 = vmatprep.subr.mxu0 0.0
        %1870 = vmatpush1.xpose.msra.mxu0 0.0
        %1871 = vmatprep.subr.mxu0 0.0
        %1872 = vmatpush1.xpose.msra.mxu0 %v1841
        %1873 = vmatprep.subr.mxu0 0.0
        %1874 = vmatpush1.xpose.msra.mxu0 %v1838
        %1875 = vmatprep.subr.mxu0 0.0
        %1876 = vmatpush2.xpose.msra.mxu0 0.0
        %1877 = vmatprep.subr.mxu0 0.0
        %1878 = vmatpush2.xpose.msra.mxu0 0.0
        %1879 = vmatprep.subr.mxu0 0.0
        %1880 = vmatpush2.xpose.msra.mxu0 0.0
        %1881 = vmatprep.subr.mxu0 0.0
        %1882 = vmatpush2.xpose.msra.mxu0 0.0
        %1883 = vmatprep.subr.mxu0 0.0
        %1884 = vmatpush2.xpose.msra.mxu0 0.0
        %1885 = vmatprep.subr.mxu0 0.0
        %1886 = vmatpush2.xpose.msra.mxu0 0.0
        %1887 = vmatprep.subr.mxu0 0.0
        %1888 = vmatpush2.xpose.msra.mxu0 0.0
        %1889 = vmatprep.subr.mxu0 0.0
        %1890 = vmatpush2.xpose.msra.mxu0 0.0
        %1891 = vmatprep.subr.mxu0 0.0
        %1892 = vmatpush2.xpose.msra.mxu0 0.0
        %1893 = vmatprep.subr.mxu0 0.0
        %1894 = vmatpush2.xpose.msra.mxu0 0.0
        %1895 = vmatprep.subr.mxu0 0.0
        %1896 = vmatpush2.xpose.msra.mxu0 0.0
        %1897 = vmatprep.subr.mxu0 0.0
        %1898 = vmatpush2.xpose.msra.mxu0 0.0
        %1899 = vmatprep.subr.mxu0 0.0
        %1900 = vmatpush2.xpose.msra.mxu0 0.0
        %1901 = vmatprep.subr.mxu0 0.0
        %1902 = vmatpush2.xpose.msra.mxu0 0.0
        %1903 = vmatprep.subr.mxu0 0.0
        %1904 = vmatpush2.xpose.msra.mxu0 0.0
        %1905 = vmatprep.subr.mxu0 0.0
        %1906 = vmatpush2.xpose.msra.mxu0 0.0
        %1907 = vmatprep.mubr.f32.mxu0 0.0
        %1908 = vmatmul.mubr.f32.gmra.mxu0 %v1835
        %v1909 = vpop.f32.mrf.mxu0
        %v1910 = vadd.f32 0.0, %v1909
        %v1911 = vpop.f32.mrf.mxu0
        %1912 = vdwg.mxu0
        %vm1913 = vcmask 130048
        %v1914 = vsel %vm1913, %v1673, -inf
        %1915 = vmax.xlane.f32.xlu0 %v1914
        %v1916 = vpop.xlane.xlu0 %1915
        %v1917 = vsel %vm1913, %v1752, -inf
        %1918 = vmax.xlane.f32.xlu0 %v1917
        %v1919 = vpop.xlane.xlu0 %1918
        %v1920 = vsel %vm1913, %v1831, -inf
        %1921 = vmax.xlane.f32.xlu0 %v1920
        %v1922 = vpop.xlane.xlu0 %1921
        %v1923 = vsel %vm1913, %v1910, -inf
        %1924 = vmax.xlane.f32.xlu0 %v1923
        %v1925 = vpop.xlane.xlu0 %1924
        %v1926 = vsub.f32 %v1673, %v1916
        %v1927 = vsub.f32 %v1752, %v1919
        %v1928 = vsub.f32 %v1831, %v1922
        %v1929 = vsub.f32 %v1910, %v1925
        %v1930 = vmul.f32 %v1926, 1.442695
        %v1931 = vpow.pop %v1930
        %v1932 = vmul.f32 %v1927, 1.442695
        %v1933 = vpow.pop %v1932
        %v1934 = vmul.f32 %v1928, 1.442695
        %v1935 = vpow.pop %v1934
        %v1936 = vmul.f32 %v1929, 1.442695
        %v1937 = vpow.pop %v1936
        %v1938 = vsel %vm1913, %v1931, 0.0
        %1939 = vadd.xlane.f32.xlu0 %v1938
        %v1940 = vpop.xlane.xlu0 %1939
        %v1941 = vsel %vm1913, %v1933, 0.0
        %1942 = vadd.xlane.f32.xlu0 %v1941
        %v1943 = vpop.xlane.xlu0 %1942
        %v1944 = vsel %vm1913, %v1935, 0.0
        %1945 = vadd.xlane.f32.xlu0 %v1944
        %v1946 = vpop.xlane.xlu0 %1945
        %v1947 = vsel %vm1913, %v1937, 0.0
        %1948 = vadd.xlane.f32.xlu0 %v1947
        %v1949 = vpop.xlane.xlu0 %1948
        %v1951 = vsel %vm1913, %v1931, 0
        %1953 = vmatprep.subr.mxu0 0.0
        %1954 = vmatpush1.msra.mxu0 0.0
        %1955 = vmatprep.subr.mxu0 0.0
        %1956 = vmatpush1.msra.mxu0 0.0
        %1957 = vmatprep.subr.mxu0 0.0
        %1958 = vmatpush1.msra.mxu0 0.0
        %1959 = vmatprep.subr.mxu0 0.0
        %1960 = vmatpush1.msra.mxu0 0.0
        %1961 = vmatprep.subr.mxu0 0.0
        %1962 = vmatpush1.msra.mxu0 0.0
        %1963 = vmatprep.subr.mxu0 0.0
        %1964 = vmatpush1.msra.mxu0 0.0
        %1965 = vmatprep.subr.mxu0 0.0
        %1966 = vmatpush1.msra.mxu0 0.0
        %1967 = vmatprep.subr.mxu0 0.0
        %1968 = vmatpush1.msra.mxu0 0.0
        %1969 = vmatprep.subr.mxu0 0.0
        %1970 = vmatpush1.msra.mxu0 0.0
        %1971 = vmatprep.subr.mxu0 0.0
        %1972 = vmatpush1.msra.mxu0 0.0
        %1973 = vmatprep.subr.mxu0 0.0
        %1974 = vmatpush1.msra.mxu0 0.0
        %1975 = vmatprep.subr.mxu0 0.0
        %1976 = vmatpush1.msra.mxu0 0.0
        %1977 = vmatprep.subr.mxu0 0.0
        %1978 = vmatpush1.msra.mxu0 0.0
        %1979 = vmatprep.subr.mxu0 0.0
        %1980 = vmatpush1.msra.mxu0 0.0
        %1981 = vmatprep.subr.mxu0 0.0
        %1982 = vmatpush1.msra.mxu0 %v1589
        %1983 = vmatprep.subr.mxu0 0.0
        %1984 = vmatpush1.msra.mxu0 %v1588
        %1985 = vmatprep.subr.mxu0 0.0
        %1986 = vmatpush2.msra.mxu0 0.0
        %1987 = vmatprep.subr.mxu0 0.0
        %1988 = vmatpush2.msra.mxu0 0.0
        %1989 = vmatprep.subr.mxu0 0.0
        %1990 = vmatpush2.msra.mxu0 0.0
        %1991 = vmatprep.subr.mxu0 0.0
        %1992 = vmatpush2.msra.mxu0 0.0
        %1993 = vmatprep.subr.mxu0 0.0
        %1994 = vmatpush2.msra.mxu0 0.0
        %1995 = vmatprep.subr.mxu0 0.0
        %1996 = vmatpush2.msra.mxu0 0.0
        %1997 = vmatprep.subr.mxu0 0.0
        %1998 = vmatpush2.msra.mxu0 0.0
        %1999 = vmatprep.subr.mxu0 0.0
        %2000 = vmatpush2.msra.mxu0 0.0
        %2001 = vmatprep.subr.mxu0 0.0
        %2002 = vmatpush2.msra.mxu0 0.0
        %2003 = vmatprep.subr.mxu0 0.0
        %2004 = vmatpush2.msra.mxu0 0.0
        %2005 = vmatprep.subr.mxu0 0.0
        %2006 = vmatpush2.msra.mxu0 0.0
        %2007 = vmatprep.subr.mxu0 0.0
        %2008 = vmatpush2.msra.mxu0 0.0
        %2009 = vmatprep.subr.mxu0 0.0
        %2010 = vmatpush2.msra.mxu0 0.0
        %2011 = vmatprep.subr.mxu0 0.0
        %2012 = vmatpush2.msra.mxu0 0.0
        %2013 = vmatprep.subr.mxu0 0.0
        %2014 = vmatpush2.msra.mxu0 0.0
        %2015 = vmatprep.subr.mxu0 0.0
        %2016 = vmatpush2.msra.mxu0 0.0
        %2017 = vmatprep.mubr.f32.mxu0 0.0
        %2018 = vmatmul.mubr.f32.gmra.mxu0 %v1951
        %v2019 = vpop.f32.mrf.mxu0
        %v2020 = vadd.f32 0.0, %v2019
        %v2021 = vpop.f32.mrf.mxu0
        %2022 = vdwg.mxu0
        %v2024 = vsel %vm1913, %v1933, 0
        %2026 = vmatprep.subr.mxu0 0.0
        %2027 = vmatpush1.msra.mxu0 0.0
        %2028 = vmatprep.subr.mxu0 0.0
        %2029 = vmatpush1.msra.mxu0 0.0
        %2030 = vmatprep.subr.mxu0 0.0
        %2031 = vmatpush1.msra.mxu0 0.0
        %2032 = vmatprep.subr.mxu0 0.0
        %2033 = vmatpush1.msra.mxu0 0.0
        %2034 = vmatprep.subr.mxu0 0.0
        %2035 = vmatpush1.msra.mxu0 0.0
        %2036 = vmatprep.subr.mxu0 0.0
        %2037 = vmatpush1.msra.mxu0 0.0
        %2038 = vmatprep.subr.mxu0 0.0
        %2039 = vmatpush1.msra.mxu0 0.0
        %2040 = vmatprep.subr.mxu0 0.0
        %2041 = vmatpush1.msra.mxu0 0.0
        %2042 = vmatprep.subr.mxu0 0.0
        %2043 = vmatpush1.msra.mxu0 0.0
        %2044 = vmatprep.subr.mxu0 0.0
        %2045 = vmatpush1.msra.mxu0 0.0
        %2046 = vmatprep.subr.mxu0 0.0
        %2047 = vmatpush1.msra.mxu0 0.0
        %2048 = vmatprep.subr.mxu0 0.0
        %2049 = vmatpush1.msra.mxu0 0.0
        %2050 = vmatprep.subr.mxu0 0.0
        %2051 = vmatpush1.msra.mxu0 0.0
        %2052 = vmatprep.subr.mxu0 0.0
        %2053 = vmatpush1.msra.mxu0 0.0
        %2054 = vmatprep.subr.mxu0 0.0
        %2055 = vmatpush1.msra.mxu0 %v1591
        %2056 = vmatprep.subr.mxu0 0.0
        %2057 = vmatpush1.msra.mxu0 %v1590
        %2058 = vmatprep.subr.mxu0 0.0
        %2059 = vmatpush2.msra.mxu0 0.0
        %2060 = vmatprep.subr.mxu0 0.0
        %2061 = vmatpush2.msra.mxu0 0.0
        %2062 = vmatprep.subr.mxu0 0.0
        %2063 = vmatpush2.msra.mxu0 0.0
        %2064 = vmatprep.subr.mxu0 0.0
        %2065 = vmatpush2.msra.mxu0 0.0
        %2066 = vmatprep.subr.mxu0 0.0
        %2067 = vmatpush2.msra.mxu0 0.0
        %2068 = vmatprep.subr.mxu0 0.0
        %2069 = vmatpush2.msra.mxu0 0.0
        %2070 = vmatprep.subr.mxu0 0.0
        %2071 = vmatpush2.msra.mxu0 0.0
        %2072 = vmatprep.subr.mxu0 0.0
        %2073 = vmatpush2.msra.mxu0 0.0
        %2074 = vmatprep.subr.mxu0 0.0
        %2075 = vmatpush2.msra.mxu0 0.0
        %2076 = vmatprep.subr.mxu0 0.0
        %2077 = vmatpush2.msra.mxu0 0.0
        %2078 = vmatprep.subr.mxu0 0.0
        %2079 = vmatpush2.msra.mxu0 0.0
        %2080 = vmatprep.subr.mxu0 0.0
        %2081 = vmatpush2.msra.mxu0 0.0
        %2082 = vmatprep.subr.mxu0 0.0
        %2083 = vmatpush2.msra.mxu0 0.0
        %2084 = vmatprep.subr.mxu0 0.0
        %2085 = vmatpush2.msra.mxu0 0.0
        %2086 = vmatprep.subr.mxu0 0.0
        %2087 = vmatpush2.msra.mxu0 0.0
        %2088 = vmatprep.subr.mxu0 0.0
        %2089 = vmatpush2.msra.mxu0 0.0
        %2090 = vmatprep.mubr.f32.mxu0 0.0
        %2091 = vmatmul.mubr.f32.gmra.mxu0 %v2024
        %v2092 = vpop.f32.mrf.mxu0
        %v2093 = vadd.f32 0.0, %v2092
        %v2094 = vpop.f32.mrf.mxu0
        %2095 = vdwg.mxu0
        %v2097 = vsel %vm1913, %v1935, 0
        %2099 = vmatprep.subr.mxu0 0.0
        %2100 = vmatpush1.msra.mxu0 0.0
        %2101 = vmatprep.subr.mxu0 0.0
        %2102 = vmatpush1.msra.mxu0 0.0
        %2103 = vmatprep.subr.mxu0 0.0
        %2104 = vmatpush1.msra.mxu0 0.0
        %2105 = vmatprep.subr.mxu0 0.0
        %2106 = vmatpush1.msra.mxu0 0.0
        %2107 = vmatprep.subr.mxu0 0.0
        %2108 = vmatpush1.msra.mxu0 0.0
        %2109 = vmatprep.subr.mxu0 0.0
        %2110 = vmatpush1.msra.mxu0 0.0
        %2111 = vmatprep.subr.mxu0 0.0
        %2112 = vmatpush1.msra.mxu0 0.0
        %2113 = vmatprep.subr.mxu0 0.0
        %2114 = vmatpush1.msra.mxu0 0.0
        %2115 = vmatprep.subr.mxu0 0.0
        %2116 = vmatpush1.msra.mxu0 0.0
        %2117 = vmatprep.subr.mxu0 0.0
        %2118 = vmatpush1.msra.mxu0 0.0
        %2119 = vmatprep.subr.mxu0 0.0
        %2120 = vmatpush1.msra.mxu0 0.0
        %2121 = vmatprep.subr.mxu0 0.0
        %2122 = vmatpush1.msra.mxu0 0.0
        %2123 = vmatprep.subr.mxu0 0.0
        %2124 = vmatpush1.msra.mxu0 0.0
        %2125 = vmatprep.subr.mxu0 0.0
        %2126 = vmatpush1.msra.mxu0 0.0
        %2127 = vmatprep.subr.mxu0 0.0
        %2128 = vmatpush1.msra.mxu0 %v1593
        %2129 = vmatprep.subr.mxu0 0.0
        %2130 = vmatpush1.msra.mxu0 %v1592
        %2131 = vmatprep.subr.mxu0 0.0
        %2132 = vmatpush2.msra.mxu0 0.0
        %2133 = vmatprep.subr.mxu0 0.0
        %2134 = vmatpush2.msra.mxu0 0.0
        %2135 = vmatprep.subr.mxu0 0.0
        %2136 = vmatpush2.msra.mxu0 0.0
        %2137 = vmatprep.subr.mxu0 0.0
        %2138 = vmatpush2.msra.mxu0 0.0
        %2139 = vmatprep.subr.mxu0 0.0
        %2140 = vmatpush2.msra.mxu0 0.0
        %2141 = vmatprep.subr.mxu0 0.0
        %2142 = vmatpush2.msra.mxu0 0.0
        %2143 = vmatprep.subr.mxu0 0.0
        %2144 = vmatpush2.msra.mxu0 0.0
        %2145 = vmatprep.subr.mxu0 0.0
        %2146 = vmatpush2.msra.mxu0 0.0
        %2147 = vmatprep.subr.mxu0 0.0
        %2148 = vmatpush2.msra.mxu0 0.0
        %2149 = vmatprep.subr.mxu0 0.0
        %2150 = vmatpush2.msra.mxu0 0.0
        %2151 = vmatprep.subr.mxu0 0.0
        %2152 = vmatpush2.msra.mxu0 0.0
        %2153 = vmatprep.subr.mxu0 0.0
        %2154 = vmatpush2.msra.mxu0 0.0
        %2155 = vmatprep.subr.mxu0 0.0
        %2156 = vmatpush2.msra.mxu0 0.0
        %2157 = vmatprep.subr.mxu0 0.0
        %2158 = vmatpush2.msra.mxu0 0.0
        %2159 = vmatprep.subr.mxu0 0.0
        %2160 = vmatpush2.msra.mxu0 0.0
        %2161 = vmatprep.subr.mxu0 0.0
        %2162 = vmatpush2.msra.mxu0 0.0
        %2163 = vmatprep.mubr.f32.mxu0 0.0
        %2164 = vmatmul.mubr.f32.gmra.mxu0 %v2097
        %v2165 = vpop.f32.mrf.mxu0
        %v2166 = vadd.f32 0.0, %v2165
        %v2167 = vpop.f32.mrf.mxu0
        %2168 = vdwg.mxu0
        %v2170 = vsel %vm1913, %v1937, 0
        %2172 = vmatprep.subr.mxu0 0.0
        %2173 = vmatpush1.msra.mxu0 0.0
        %2174 = vmatprep.subr.mxu0 0.0
        %2175 = vmatpush1.msra.mxu0 0.0
        %2176 = vmatprep.subr.mxu0 0.0
        %2177 = vmatpush1.msra.mxu0 0.0
        %2178 = vmatprep.subr.mxu0 0.0
        %2179 = vmatpush1.msra.mxu0 0.0
        %2180 = vmatprep.subr.mxu0 0.0
        %2181 = vmatpush1.msra.mxu0 0.0
        %2182 = vmatprep.subr.mxu0 0.0
        %2183 = vmatpush1.msra.mxu0 0.0
        %2184 = vmatprep.subr.mxu0 0.0
        %2185 = vmatpush1.msra.mxu0 0.0
        %2186 = vmatprep.subr.mxu0 0.0
        %2187 = vmatpush1.msra.mxu0 0.0
        %2188 = vmatprep.subr.mxu0 0.0
        %2189 = vmatpush1.msra.mxu0 0.0
        %2190 = vmatprep.subr.mxu0 0.0
        %2191 = vmatpush1.msra.mxu0 0.0
        %2192 = vmatprep.subr.mxu0 0.0
        %2193 = vmatpush1.msra.mxu0 0.0
        %2194 = vmatprep.subr.mxu0 0.0
        %2195 = vmatpush1.msra.mxu0 0.0
        %2196 = vmatprep.subr.mxu0 0.0
        %2197 = vmatpush1.msra.mxu0 0.0
        %2198 = vmatprep.subr.mxu0 0.0
        %2199 = vmatpush1.msra.mxu0 0.0
        %2200 = vmatprep.subr.mxu0 0.0
        %2201 = vmatpush1.msra.mxu0 %v1595
        %2202 = vmatprep.subr.mxu0 0.0
        %2203 = vmatpush1.msra.mxu0 %v1594
        %2204 = vmatprep.subr.mxu0 0.0
        %2205 = vmatpush2.msra.mxu0 0.0
        %2206 = vmatprep.subr.mxu0 0.0
        %2207 = vmatpush2.msra.mxu0 0.0
        %2208 = vmatprep.subr.mxu0 0.0
        %2209 = vmatpush2.msra.mxu0 0.0
        %2210 = vmatprep.subr.mxu0 0.0
        %2211 = vmatpush2.msra.mxu0 0.0
        %2212 = vmatprep.subr.mxu0 0.0
        %2213 = vmatpush2.msra.mxu0 0.0
        %2214 = vmatprep.subr.mxu0 0.0
        %2215 = vmatpush2.msra.mxu0 0.0
        %2216 = vmatprep.subr.mxu0 0.0
        %2217 = vmatpush2.msra.mxu0 0.0
        %2218 = vmatprep.subr.mxu0 0.0
        %2219 = vmatpush2.msra.mxu0 0.0
        %2220 = vmatprep.subr.mxu0 0.0
        %2221 = vmatpush2.msra.mxu0 0.0
        %2222 = vmatprep.subr.mxu0 0.0
        %2223 = vmatpush2.msra.mxu0 0.0
        %2224 = vmatprep.subr.mxu0 0.0
        %2225 = vmatpush2.msra.mxu0 0.0
        %2226 = vmatprep.subr.mxu0 0.0
        %2227 = vmatpush2.msra.mxu0 0.0
        %2228 = vmatprep.subr.mxu0 0.0
        %2229 = vmatpush2.msra.mxu0 0.0
        %2230 = vmatprep.subr.mxu0 0.0
        %2231 = vmatpush2.msra.mxu0 0.0
        %2232 = vmatprep.subr.mxu0 0.0
        %2233 = vmatpush2.msra.mxu0 0.0
        %2234 = vmatprep.subr.mxu0 0.0
        %2235 = vmatpush2.msra.mxu0 0.0
        %2236 = vmatprep.mubr.f32.mxu0 0.0
        %2237 = vmatmul.mubr.f32.gmra.mxu0 %v2170
        %v2238 = vpop.f32.mrf.mxu0
        %v2239 = vadd.f32 0.0, %v2238
        %v2240 = vpop.f32.mrf.mxu0
        %2241 = vdwg.mxu0
        %v2242 = vrcp.pop %v1940
        %v2243 = vrcp.pop %v1943
        %v2244 = vrcp.pop %v1946
        %v2245 = vrcp.pop %v1949
        %v2246 = vmul.f32 %v2020, %v2242
        %v2247 = vmul.f32 %v2093, %v2243
        %v2248 = vmul.f32 %v2166, %v2244
        %v2249 = vmul.f32 %v2239, %v2245
        %v2250 = vcombine.low %v2246, %v2248
        %v2251 = vcombine.high %v2246, %v2248
        %v2253 = vunpack.c.l.s4 1983009808
        %v2254 = vunpack.c.0.s8 %v2253
        %v2255 = vlaneseq
        %v2256 = vshrl.u32 %v2255, 7
        %v2257 = vsub.s32 %v2254, %v2256
        %v2258 = vrot.slane %v2250, %v2257
        %v2260 = vunpack.c.l.s4 1983009808
        %v2261 = vunpack.c.0.s8 %v2260
        %v2262 = vlaneseq
        %v2263 = vshrl.u32 %v2262, 7
        %v2264 = vsub.s32 %v2261, %v2263
        %v2265 = vrot.slane %v2251, %v2264
        %v2266 = vcombine.low %v2247, %v2249
        %v2267 = vcombine.high %v2247, %v2249
        %v2269 = vunpack.c.l.s4 1983009808
        %v2270 = vunpack.c.0.s8 %v2269
        %v2271 = vlaneseq
        %v2272 = vshrl.u32 %v2271, 7
        %v2273 = vsub.s32 %v2270, %v2272
        %v2274 = vrot.slane %v2266, %v2273
        %v2276 = vunpack.c.l.s4 1983009808
        %v2277 = vunpack.c.0.s8 %v2276
        %v2278 = vlaneseq
        %v2279 = vshrl.u32 %v2278, 7
        %v2280 = vsub.s32 %v2277, %v2279
        %v2281 = vrot.slane %v2267, %v2280
        %v2282 = vcombine.low %v2258, %v2274
        %v2283 = vcombine.high %v2258, %v2274
        %v2285 = vunpack.c.l.s4 1934713408
        %v2286 = vunpack.c.0.s8 %v2285
        %v2287 = vlaneseq
        %v2288 = vshrl.u32 %v2287, 7
        %v2289 = vsub.s32 %v2286, %v2288
        %v2290 = vrot.slane %v2282, %v2289
        %v2292 = vunpack.c.l.s4 1934713408
        %v2293 = vunpack.c.0.s8 %v2292
        %v2294 = vlaneseq
        %v2295 = vshrl.u32 %v2294, 7
        %v2296 = vsub.s32 %v2293, %v2295
        %v2297 = vrot.slane %v2283, %v2296
        %v2298 = vcombine.low %v2265, %v2281
        %v2299 = vcombine.high %v2265, %v2281
        %v2301 = vunpack.c.l.s4 1934713408
        %v2302 = vunpack.c.0.s8 %v2301
        %v2303 = vlaneseq
        %v2304 = vshrl.u32 %v2303, 7
        %v2305 = vsub.s32 %v2302, %v2304
        %v2306 = vrot.slane %v2298, %v2305
        %v2308 = vunpack.c.l.s4 1934713408
        %v2309 = vunpack.c.0.s8 %v2308
        %v2310 = vlaneseq
        %v2311 = vshrl.u32 %v2310, 7
        %v2312 = vsub.s32 %v2309, %v2311
        %v2313 = vrot.slane %v2299, %v2312
        %v2314 = vcombine.high %v2290, 0.0
        %v2315 = vcombine.high %v2297, 0.0
        %v2316 = vcombine.high %v2306, 0.0
        %v2317 = vcombine.high %v2313, 0.0
        %v2318 = vcombine.low %v2290, %v2297
        %v2320 = vunpack.c.l.s4 1983009808
        %v2321 = vunpack.c.0.s8 %v2320
        %v2322 = vlaneseq
        %v2323 = vshrl.u32 %v2322, 7
        %v2324 = vsub.s32 %v2321, %v2323
        %v2325 = vrot.slane %v2318, %v2324
        %v2326 = vcombine.low %v2314, %v2315
        %v2328 = vunpack.c.l.s4 1983009808
        %v2329 = vunpack.c.0.s8 %v2328
        %v2330 = vlaneseq
        %v2331 = vshrl.u32 %v2330, 7
        %v2332 = vsub.s32 %v2329, %v2331
        %v2333 = vrot.slane %v2326, %v2332
        %v2334 = vcombine.low %v2306, %v2313
        %v2336 = vunpack.c.l.s4 1983009808
        %v2337 = vunpack.c.0.s8 %v2336
        %v2338 = vlaneseq
        %v2339 = vshrl.u32 %v2338, 7
        %v2340 = vsub.s32 %v2337, %v2339
        %v2341 = vrot.slane %v2334, %v2340
        %v2342 = vcombine.low %v2316, %v2317
        %v2344 = vunpack.c.l.s4 1983009808
        %v2345 = vunpack.c.0.s8 %v2344
        %v2346 = vlaneseq
        %v2347 = vshrl.u32 %v2346, 7
        %v2348 = vsub.s32 %v2345, %v2347
        %v2349 = vrot.slane %v2342, %v2348
        %v2350 = vcombine.low %v2325, %v2333
        %v2351 = vcombine.high %v2325, %v2333
        %v2353 = vunpack.c.l.s4 1934713408
        %v2354 = vunpack.c.0.s8 %v2353
        %v2355 = vlaneseq
        %v2356 = vshrl.u32 %v2355, 7
        %v2357 = vsub.s32 %v2354, %v2356
        %v2358 = vrot.slane %v2350, %v2357
        %v2360 = vunpack.c.l.s4 1934713408
        %v2361 = vunpack.c.0.s8 %v2360
        %v2362 = vlaneseq
        %v2363 = vshrl.u32 %v2362, 7
        %v2364 = vsub.s32 %v2361, %v2363
        %v2365 = vrot.slane %v2351, %v2364
        %v2366 = vcombine.low %v2341, %v2349
        %v2367 = vcombine.high %v2341, %v2349
        %v2369 = vunpack.c.l.s4 1934713408
        %v2370 = vunpack.c.0.s8 %v2369
        %v2371 = vlaneseq
        %v2372 = vshrl.u32 %v2371, 7
        %v2373 = vsub.s32 %v2370, %v2372
        %v2374 = vrot.slane %v2366, %v2373
        %v2376 = vunpack.c.l.s4 1934713408
        %v2377 = vunpack.c.0.s8 %v2376
        %v2378 = vlaneseq
        %v2379 = vshrl.u32 %v2378, 7
        %v2380 = vsub.s32 %v2377, %v2379
        %v2381 = vrot.slane %v2367, %v2380
        %v2382 = vcombine.low %v2358, %v2374
        %v2383 = vcombine.high %v2358, %v2374
        %v2384 = vcombine.low %v2365, %v2381
        %v2385 = vcombine.high %v2365, %v2381
        %2387 = vrot.lane.b32.xlu0 %v2383, 8
        %v2388 = vpop.permute.xlu0 %2387
        %2391 = vrot.lane.b32.xlu0 %v2384, 16
        %v2392 = vpop.permute.xlu0 %2391
        %2395 = vrot.lane.b32.xlu0 %v2385, 24
        %v2396 = vpop.permute.xlu0 %2395
        %v2398 = vsel %vm1596, %v2382, %v2388
        %v2399 = vsel %vm1913, %v2398, %v2392
        %vm2400 = vcmask 195584
        %v2401 = vsel %vm2400, %v2399, %v2396
        %v2402 = vld [vmem:[#allocation15] sm:$0xff]
        %v2403 = vld [vmem:[#allocation15 + $0x8] sm:$0xff]
        %v2404 = vld [vmem:[#allocation15 + $0x10] sm:$0xff]
        %v2405 = vld [vmem:[#allocation15 + $0x18] sm:$0xff]
        %v2406 = vld [vmem:[%s10] sm:$0x1]
        %v2408 = vlaneseq
        %v2409 = vshrl.u32 %v2408, 7
        %v2410 = vsub.s32 0, %v2409
        %v2411 = vrot.slane %v2406, %v2410
        %v2414 = vsel %vm1360, %v2401, 0
        %2416 = vmatprep.subr.mxu0 0.0
        %2417 = vmatpush1.msra.mxu0 0.0
        %2418 = vmatprep.subr.mxu0 0.0
        %2419 = vmatpush1.msra.mxu0 0.0
        %2420 = vmatprep.subr.mxu0 0.0
        %2421 = vmatpush1.msra.mxu0 0.0
        %2422 = vmatprep.subr.mxu0 0.0
        %2423 = vmatpush1.msra.mxu0 0.0
        %2424 = vmatprep.subr.mxu0 0.0
        %2425 = vmatpush1.msra.mxu0 0.0
        %2426 = vmatprep.subr.mxu0 0.0
        %2427 = vmatpush1.msra.mxu0 0.0
        %2428 = vmatprep.subr.mxu0 0.0
        %2429 = vmatpush1.msra.mxu0 0.0
        %2430 = vmatprep.subr.mxu0 0.0
        %2431 = vmatpush1.msra.mxu0 0.0
        %2432 = vmatprep.subr.mxu0 0.0
        %2433 = vmatpush1.msra.mxu0 0.0
        %2434 = vmatprep.subr.mxu0 0.0
        %2435 = vmatpush1.msra.mxu0 0.0
        %2436 = vmatprep.subr.mxu0 0.0
        %2437 = vmatpush1.msra.mxu0 0.0
        %2438 = vmatprep.subr.mxu0 0.0
        %2439 = vmatpush1.msra.mxu0 0.0
        %2440 = vmatprep.subr.mxu0 0.0
        %2441 = vmatpush1.msra.mxu0 %v2405
        %2442 = vmatprep.subr.mxu0 0.0
        %2443 = vmatpush1.msra.mxu0 %v2404
        %2444 = vmatprep.subr.mxu0 0.0
        %2445 = vmatpush1.msra.mxu0 %v2403
        %2446 = vmatprep.subr.mxu0 0.0
        %2447 = vmatpush1.msra.mxu0 %v2402
        %2448 = vmatprep.subr.mxu0 0.0
        %2449 = vmatpush2.msra.mxu0 0.0
        %2450 = vmatprep.subr.mxu0 0.0
        %2451 = vmatpush2.msra.mxu0 0.0
        %2452 = vmatprep.subr.mxu0 0.0
        %2453 = vmatpush2.msra.mxu0 0.0
        %2454 = vmatprep.subr.mxu0 0.0
        %2455 = vmatpush2.msra.mxu0 0.0
        %2456 = vmatprep.subr.mxu0 0.0
        %2457 = vmatpush2.msra.mxu0 0.0
        %2458 = vmatprep.subr.mxu0 0.0
        %2459 = vmatpush2.msra.mxu0 0.0
        %2460 = vmatprep.subr.mxu0 0.0
        %2461 = vmatpush2.msra.mxu0 0.0
        %2462 = vmatprep.subr.mxu0 0.0
        %2463 = vmatpush2.msra.mxu0 0.0
        %2464 = vmatprep.subr.mxu0 0.0
        %2465 = vmatpush2.msra.mxu0 0.0
        %2466 = vmatprep.subr.mxu0 0.0
        %2467 = vmatpush2.msra.mxu0 0.0
        %2468 = vmatprep.subr.mxu0 0.0
        %2469 = vmatpush2.msra.mxu0 0.0
        %2470 = vmatprep.subr.mxu0 0.0
        %2471 = vmatpush2.msra.mxu0 0.0
        %2472 = vmatprep.subr.mxu0 0.0
        %2473 = vmatpush2.msra.mxu0 0.0
        %2474 = vmatprep.subr.mxu0 0.0
        %2475 = vmatpush2.msra.mxu0 0.0
        %2476 = vmatprep.subr.mxu0 0.0
        %2477 = vmatpush2.msra.mxu0 0.0
        %2478 = vmatprep.subr.mxu0 0.0
        %2479 = vmatpush2.msra.mxu0 0.0
        %2480 = vmatprep.mubr.f32.mxu0 0.0
        %2481 = vmatmul.mubr.f32.gmra.mxu0 %v2414
        %v2482 = vpop.f32.mrf.mxu0
        %v2483 = vadd.f32 %v2411, %v2482
        %v2484 = vpop.f32.mrf.mxu0
        %2485 = vdwg.mxu0
        %2486 = vst.msk [vmem:[%s553] sm:$0xff] %vm1360, %v2483
        %s2487 = sand.u32 %s303, 1
        %s2488 = scalar_lea.sflag [#allocation6], %s2487
        %s2489 = sand.u32 %s303, 1
        %s2490 = smul.addr %s2489, 8
        %s2491 = scalar_lea.vmem [#allocation16], %s2490
        // Predicated region
        $region97: #{tpu_custom_call.1} parent=63 // pred_check
          %p2492 = pneg %p313
        $region98: #{tpu_custom_call.1} parent=63 // pred_check_branch
          %2494 = sbr.rel (%p2492) target = $region100
        $region99: #{tpu_custom_call.1} parent=63 // pred_region
          %s2496 = ssub.s32 128, 128
          %2497 = vsyncadd %s2488, %s2496
          %s2498 = sadd.s32 %s38, %s37
          %s2499 = smul.addr %s2498, 128
          %s2500 = scalar_lea.hbm %s11, %s2499
          %s2502 = sshll.u32 %s2491, 4
          %s2503 = int_to_ptr.vmem [resolvable:$true] %s2502
          %2505 = dma.vmem_to_hbm [thread:$0]  %s2503, 128, %s2500, %s2488
        $region100: #{tpu_custom_call.1} parent=63 // pred_fallthru
          _
      $region64: #{tpu_custom_call.1} parent=5 // pred_fallthru
        _
      %p2506 = scmp.le.s32.totalorder 2, %s28
      // Predicated region
      $region101: #{tpu_custom_call.1} parent=5 // pred_check
        %p2507 = pneg %p2506
      $region102: #{tpu_custom_call.1} parent=5 // pred_check_branch
        %2509 = sbr.rel (%p2507) target = $region104
      $region103: #{tpu_custom_call.1} parent=5 // pred_region
        %s2510 = ssub.s32 %s28, 2
        // Predicated region
        $region105: #{tpu_custom_call.1} parent=103 // pred_check
          %p2511 = pneg %p319
        $region106: #{tpu_custom_call.1} parent=103 // pred_check_branch
          %2513 = sbr.rel (%p2511) target = $region108
        $region107: #{tpu_custom_call.1} parent=103 // pred_region
          %s2514 = sand.u32 %s304, 1
          %s2515 = scalar_lea.sflag [#allocation6], %s2514
          %s2516 = sand.u32 %s304, 1
          %s2517 = smul.addr %s2516, 8
          %s2518 = scalar_lea.vmem [#allocation16], %s2517
          %2519 = dma.done %s2515, 128
        $region108: #{tpu_custom_call.1} parent=103 // pred_fallthru
          _
      $region104: #{tpu_custom_call.1} parent=5 // pred_fallthru
        _
    $region6: #{tpu_custom_call.1} parent=1 // loop_footer
      %s32 = sadd.s32 1, %s28
    $region7: #{tpu_custom_call.1} parent=1 // loop_footer_branch
      %27 = sbr.rel target = $region3
    $region8: #{tpu_custom_call.1} parent=1 // loop_exit
      _
    %2520 = vsyncpa [#allocation5], 1
    %s2521 = scalar_lea.sflag [#allocation5], 1
    %2522 = vsyncpa %s2521, 1
    %2523 = vsyncpa [#allocation8], 1
    %s2524 = scalar_lea.sflag [#allocation8], 1
    %2525 = vsyncpa %s2524, 1
    %2526 = vsyncpa [#allocation11], 1
    %2527 = vsyncpa [#allocation14], 1
    %2528 = vsyncpa [#allocation6], 1
    %s2529 = scalar_lea.sflag [#allocation6], 1
    %2530 = vsyncpa %s2529, 1

</llo_original>
